<compile_context>
chip_gen: v5e
topology: v5e:2x2
jax: 0.10.0
libtpu: 0.0.40
codegen_flags: <defaults>
</compile_context>

<pallas_src>
import math
import functools

import jax
import jax.numpy as jnp
from jax import lax
from jax.experimental import pallas as pl
from jax.experimental.pallas import tpu as pltpu


# ----------------------------------------------------------------------------
# Fused WDSR body kernel (one image per grid step).
# ----------------------------------------------------------------------------
def _make_wdsr_kernel(H, W, Wp, M, S0, LP, C_in, F, FE, B, C_out,
                      has_skip, PMAX, CMAX):
    """Build the fused kernel for a static WDSR configuration."""

    def kernel(*refs):
        if has_skip:
            (x_ref, mask_ref, hw_ref, hb_ref, w1_ref, b1_ref, w2_ref, b2_ref,
             tw_ref, tb_ref, sw_ref, sb_ref, o_ref, pad_ref) = refs
        else:
            (x_ref, mask_ref, hw_ref, hb_ref, w1_ref, b1_ref, w2_ref, b2_ref,
             tw_ref, tb_ref, o_ref, pad_ref) = refs

        mask = mask_ref[...]                              # (1, M), 1 on valid cols

        # Zero only the halo prefix / suffix slabs.  The interior [S0, S0+M)
        # is fully overwritten (masked) before every conv, so no full memset.
        pad_ref[:, 0:S0] = jnp.zeros((CMAX, S0), jnp.float32)
        pad_ref[:, S0 + M:LP] = jnp.zeros((CMAX, LP - S0 - M), jnp.float32)

        def stage(val, cin):
            # Stage a conv input into the flat padded buffer.  Masking zeroes
            # the stride-garbage columns, which double as the horizontal
            # padding columns of the padded image.
            pad_ref[0:cin, S0:S0 + M] = val * mask

        def conv_mxu(val, w_taps, bias, K, cin, cout, relu=False):
            # Per-tap accumulated matmuls (Cout, Cin)bf16 x (Cin, M)bf16 -> f32.
            stage(val, cin)
            pk = K // 2
            acc = jnp.zeros((cout, M), jnp.float32)
            for kh in range(K):
                for kw in range(K):
                    s = S0 + (kh - pk) * Wp + (kw - pk)
                    tap = pad_ref[0:cin, s:s + M].astype(jnp.bfloat16)
                    w_t = w_taps[kh * K + kw].astype(jnp.bfloat16)   # (cout, cin)
                    acc = acc + jnp.dot(w_t, tap,
                                        preferred_element_type=jnp.float32)
            acc = acc + bias
            return jnp.maximum(acc, 0.0) if relu else acc

        def conv_vpu(val, w_taps, bias, K, cin, cout, relu=False):
            # Tiny-Cin conv: K*K*cin fused multiply-adds on lane-dense (cout, M)
            # tiles, kept in f32 (no bf16 VPU on v5e).
            stage(val, cin)
            pk = K // 2
            acc = jnp.zeros((cout, M), jnp.float32)
            for kh in range(K):
                for kw in range(K):
                    s = S0 + (kh - pk) * Wp + (kw - pk)
                    w_t = w_taps[kh * K + kw]                        # (cout, cin)
                    for ci in range(cin):
                        acc = acc + w_t[:, ci:ci + 1] * pad_ref[ci:ci + 1, s:s + M]
            acc = acc + bias
            return jnp.maximum(acc, 0.0) if relu else acc

        def conv(val, w_taps, bias, K, cin, cout, relu=False):
            fn = conv_vpu if cin < 8 else conv_mxu
            return fn(val, w_taps, bias, K, cin, cout, relu)

        x = x_ref[0].astype(jnp.float32)                  # (C_in, M)

        # Head conv.
        h = conv(x, hw_ref[...], hb_ref[...], 3, C_in, F)

        # Residual blocks under fori_loop: wide intermediate never leaves
        # VMEM/vregs and only one block's working set is live at a time.
        def block_body(b, h_cur):
            t = conv(h_cur, w1_ref[b], b1_ref[b], 3, F, FE, relu=True)
            return conv(t, w2_ref[b], b2_ref[b], 3, FE, F) + h_cur

        h = lax.fori_loop(0, B, block_body, h)

        # Tail conv.
        body = conv(h, tw_ref[...], tb_ref[...], 3, F, C_out)

        # Skip path fused into the same kernel.
        if has_skip:
            y = body + conv(x, sw_ref[...], sb_ref[...], 5, C_in, C_out)
        else:
            y = body + x

        o_ref[0] = y.astype(o_ref.dtype)                  # lane-dense (C_out, M)

    return kernel


def _rep_spec(a):
    nd = a.ndim
    return pl.BlockSpec(a.shape, lambda n, _nd=nd: (0,) * _nd)


def wdsr_body_pallas(x_nchw, params):
    """Fused WDSR body (everything except pixel shuffle), NCHW in / NCHW out."""
    N, C_in, H, W = x_nchw.shape
    hw, hb = params["head"]
    F = hw.shape[-1]
    blocks = params["blocks"]
    B = len(blocks)
    FE = blocks[0][0].shape[-1]
    tw, tb = params["tail"]
    C_out = tw.shape[-1]
    has_skip = params["skip"] is not None
    PMAX = 2 if has_skip else 1          # 5x5 skip conv needs a 2-px halo
    CMAX = max(C_in, F, FE, C_out)

    Wp = W + 2 * PMAX                    # padded row width (stride of the flat layout)
    M = H * Wp                           # flattened spatial extent (lane axis)
    halo = PMAX * (Wp + 1)
    S0 = ((halo + 127) // 128) * 128     # lane-aligned interior start
    LP = ((S0 + M + halo + 127) // 128) * 128

    def taps(w, dtype):
        # (K, K, Cin, Cout) HWIO -> per-tap (K*K, Cout, Cin) for (Cout,Cin)x(Cin,M).
        K, _, ci, co = w.shape
        return jnp.transpose(w.reshape(K * K, ci, co), (0, 2, 1)).astype(dtype)

    def col(b):
        return b.reshape(-1, 1).astype(jnp.float32)       # (Cout, 1), lane-broadcast

    # Strided input: pad each row to Wp with zeros and flatten -> (N, C, M).
    x_flat = jnp.pad(x_nchw.astype(jnp.float32),
                     ((0, 0), (0, 0), (0, 0), (0, Wp - W))).reshape(N, C_in, M)
    mask = jnp.pad(jnp.ones((H, W), jnp.float32),
                   ((0, 0), (0, Wp - W))).reshape(1, M)

    args = [
        x_flat, mask,
        taps(hw, jnp.float32), col(hb),                                   # head (VPU, f32)
        jnp.stack([taps(w1, jnp.bfloat16) for (w1, _, _, _) in blocks]),  # (B,9,FE,F)
        jnp.stack([col(b1) for (_, b1, _, _) in blocks]),                 # (B,FE,1)
        jnp.stack([taps(w2, jnp.bfloat16) for (_, _, w2, _) in blocks]),  # (B,9,F,FE)
        jnp.stack([col(b2) for (_, _, _, b2) in blocks]),                 # (B,F,1)
        taps(tw, jnp.bfloat16), col(tb),                                  # tail (MXU, bf16)
    ]
    if has_skip:
        sw, sb = params["skip"]
        args += [taps(sw, jnp.float32), col(sb)]                          # skip (VPU, f32)

    in_specs = [pl.BlockSpec((1, C_in, M), lambda n: (n, 0, 0))]
    in_specs += [_rep_spec(a) for a in args[1:]]

    kernel = _make_wdsr_kernel(H, W, Wp, M, S0, LP, C_in, F, FE, B, C_out,
                               has_skip, PMAX, CMAX)

    y = pl.pallas_call(
        kernel,
        out_shape=jax.ShapeDtypeStruct((N, C_out, M), jnp.float32),
        grid_spec=pltpu.PrefetchScalarGridSpec(
            num_scalar_prefetch=0,
            grid=(N,),
            in_specs=in_specs,
            out_specs=pl.BlockSpec((1, C_out, M), lambda n: (n, 0, 0)),
            scratch_shapes=[pltpu.VMEM((CMAX, LP), jnp.float32)],
        ),
        compiler_params=pltpu.CompilerParams(
            dimension_semantics=("parallel",)),
    )(*args)

    # Strip the stride-garbage columns -> exact NCHW body+skip output.
    return y.reshape(N, C_out, H, Wp)[:, :, :, :W]


# ----------------------------------------------------------------------------
# Parameter construction (weight_norm with constant g, zero bias)
# ----------------------------------------------------------------------------
def _make_conv_params(key, K, c_in, c_out, g_const):
    # weight_norm: weight = g * v / ||v||, norm over all dims except out-channel.
    v = jax.random.normal(key, (K, K, c_in, c_out), jnp.float32) * 0.1
    norm = jnp.sqrt(jnp.sum(v * v, axis=(0, 1, 2), keepdims=True))
    w = g_const * v / norm
    b = jnp.zeros((c_out,), jnp.float32)
    return w, b


def make_wdsr_params(key, *, scale, num_filters, num_res_blocks,
                     res_block_expansion, num_channels):
    num_outputs = scale * scale * num_channels
    res_scale = 1.0 / math.sqrt(num_res_blocks)
    keys = jax.random.split(key, 3 + 2 * num_res_blocks)
    ki = iter(range(len(keys)))

    params = {}
    params["head"] = _make_conv_params(keys[next(ki)], 3, num_channels,
                                       num_filters, 1.0)
    blocks = []
    for _ in range(num_res_blocks):
        w1, b1 = _make_conv_params(keys[next(ki)], 3, num_filters,
                                   num_filters * res_block_expansion, 2.0)
        w2, b2 = _make_conv_params(keys[next(ki)], 3,
                                   num_filters * res_block_expansion,
                                   num_filters, res_scale)
        blocks.append((w1, b1, w2, b2))
    params["blocks"] = blocks
    params["tail"] = _make_conv_params(keys[next(ki)], 3, num_filters,
                                       num_outputs, 1.0)
    if num_channels != num_outputs:
        params["skip"] = _make_conv_params(keys[next(ki)], 5, num_channels,
                                           num_outputs, 1.0)
    else:
        params["skip"] = None
    return params


# ----------------------------------------------------------------------------
# Forward pass
# ----------------------------------------------------------------------------
def _pixel_shuffle_nchw(y, r):
    N, Cr2, H, W = y.shape
    C = Cr2 // (r * r)
    y = y.reshape(N, C, r, r, H, W)
    y = jnp.transpose(y, (0, 1, 4, 2, 5, 3))
    return y.reshape(N, C, H * r, W * r)


@functools.partial(jax.jit, static_argnames=("scale",))
def wdsr_forward(x_nchw, params, scale):
    y = wdsr_body_pallas(x_nchw, params)          # (N, C*scale^2, H, W)
    if scale > 1:
        y = _pixel_shuffle_nchw(y, scale)         # PixelShuffle in wrapper
    return y


# ----------------------------------------------------------------------------
# Pure-JAX reference (lax.conv) for correctness checking.
# ----------------------------------------------------------------------------
def _conv_ref(x, w, b, relu=False):
    y = lax.conv_general_dilated(
        x, w, window_strides=(1, 1), padding="SAME",
        dimension_numbers=("NHWC", "HWIO", "NHWC"))
    y = y + b.reshape(1, 1, 1, -1)
    return jnp.maximum(y, 0.0) if relu else y


def wdsr_forward_ref(x_nchw, params, scale):
    x = jnp.transpose(x_nchw, (0, 2, 3, 1))
    h = _conv_ref(x, *params["head"])
    for (w1, b1, w2, b2) in params["blocks"]:
        h = _conv_ref(_conv_ref(h, w1, b1, relu=True), w2, b2) + h
    body = _conv_ref(h, *params["tail"])
    if params["skip"] is not None:
        y = body + _conv_ref(x, *params["skip"])
    else:
        y = body + x
    y_nchw = jnp.transpose(y, (0, 3, 1, 2))
    if scale > 1:
        y_nchw = _pixel_shuffle_nchw(y_nchw, scale)
    return y_nchw


# ----------------------------------------------------------------------------
if __name__ == "__main__":
    key = jax.random.PRNGKey(0)
    k_params, k_x = jax.random.split(key)

    # Small configuration consistent with the module's constructor.
    scale = 2
    num_filters = 16
    num_res_blocks = 2
    res_block_expansion = 2
    num_channels = 1
    N, H, W = 2, 16, 16

    params = make_wdsr_params(
        k_params, scale=scale, num_filters=num_filters,
        num_res_blocks=num_res_blocks, res_block_expansion=res_block_expansion,
        num_channels=num_channels)

    x = jax.random.normal(k_x, (N, num_channels, H, W), jnp.float32)

    out = jax.block_until_ready(wdsr_forward(x, params, scale))
    assert out.shape == (N, num_channels, H * scale, W * scale), out.shape

    ref = jax.block_until_ready(wdsr_forward_ref(x, params, scale))
    # Body convs use bf16 MXU operands (f32 accumulation), so allow bf16-level
    # tolerance vs. the all-f32 reference.
    assert jnp.allclose(out, ref, rtol=2e-2, atol=5e-2), \
        float(jnp.max(jnp.abs(out - ref)))

    print("KERNEL_OK")
</pallas_src>

<mosaic_0001>
module attributes {stable_mosaic.version = 11 : i64} {
  func.func @kernel(%arg0: i32, %arg1: memref<1x1x320xf32, #tpu.memory_space<vmem>>, %arg2: memref<1x320xf32, #tpu.memory_space<vmem>>, %arg3: memref<9x16x1xf32, #tpu.memory_space<vmem>>, %arg4: memref<16x1xf32, #tpu.memory_space<vmem>>, %arg5: memref<2x9x32x16xbf16, #tpu.memory_space<vmem>>, %arg6: memref<2x32x1xf32, #tpu.memory_space<vmem>>, %arg7: memref<2x9x16x32xbf16, #tpu.memory_space<vmem>>, %arg8: memref<2x16x1xf32, #tpu.memory_space<vmem>>, %arg9: memref<9x4x16xbf16, #tpu.memory_space<vmem>>, %arg10: memref<4x1xf32, #tpu.memory_space<vmem>>, %arg11: memref<25x4x1xf32, #tpu.memory_space<vmem>>, %arg12: memref<4x1xf32, #tpu.memory_space<vmem>>, %arg13: memref<1x4x320xf32, #tpu.memory_space<vmem>>, %arg14: memref<32x512xf32, #tpu.memory_space<vmem>>) attributes {dimension_semantics = [#tpu.dimension_semantics<parallel>], iteration_bounds = array<i64: 2>, scalar_prefetch = 0 : i64, scratch_operands = 1 : i64, tpu.core_type = #tpu.core_type<tc>, window_params = [{transform_indices = @transform_0, window_bounds = array<i64: 1, 1, 320>}, {pipeline_mode = #tpu.pipeline_mode<synchronous>, transform_indices = @transform_1, window_bounds = array<i64: 1, 320>}, {pipeline_mode = #tpu.pipeline_mode<synchronous>, transform_indices = @transform_2, window_bounds = array<i64: 9, 16, 1>}, {pipeline_mode = #tpu.pipeline_mode<synchronous>, transform_indices = @transform_3, window_bounds = array<i64: 16, 1>}, {pipeline_mode = #tpu.pipeline_mode<synchronous>, transform_indices = @transform_4, window_bounds = array<i64: 2, 9, 32, 16>}, {pipeline_mode = #tpu.pipeline_mode<synchronous>, transform_indices = @transform_5, window_bounds = array<i64: 2, 32, 1>}, {pipeline_mode = #tpu.pipeline_mode<synchronous>, transform_indices = @transform_6, window_bounds = array<i64: 2, 9, 16, 32>}, {pipeline_mode = #tpu.pipeline_mode<synchronous>, transform_indices = @transform_7, window_bounds = array<i64: 2, 16, 1>}, {pipeline_mode = #tpu.pipeline_mode<synchronous>, transform_indices = @transform_8, window_bounds = array<i64: 9, 4, 16>}, {pipeline_mode = #tpu.pipeline_mode<synchronous>, transform_indices = @transform_9, window_bounds = array<i64: 4, 1>}, {pipeline_mode = #tpu.pipeline_mode<synchronous>, transform_indices = @transform_10, window_bounds = array<i64: 25, 4, 1>}, {pipeline_mode = #tpu.pipeline_mode<synchronous>, transform_indices = @transform_11, window_bounds = array<i64: 4, 1>}, {transform_indices = @transform_12, window_bounds = array<i64: 1, 4, 320>}]} {
    %c0 = arith.constant 0 : index
    %c0_0 = arith.constant 0 : index
    %0 = vector.load %arg2[%c0, %c0_0] : memref<1x320xf32, #tpu.memory_space<vmem>>, vector<1x320xf32>
    %cst = arith.constant 0.000000e+00 : f32
    %1 = vector.broadcast %cst : f32 to vector<32x128xf32>
    %c0_1 = arith.constant 0 : index
    %c0_2 = arith.constant 0 : index
    %2 = vector.load %arg14[%c0_1, %c0_2] : memref<32x512xf32, #tpu.memory_space<vmem>>, vector<32x128xf32>
    tpu.vector_store %arg14[%c0_1, %c0_2], %1 {strides = array<i32>} : memref<32x512xf32, #tpu.memory_space<vmem>>, vector<32x128xf32>,
    %cst_3 = arith.constant 0.000000e+00 : f32
    %3 = vector.broadcast %cst_3 : f32 to vector<32x64xf32>
    %c0_4 = arith.constant 0 : index
    %c448 = arith.constant 448 : index
    %4 = vector.load %arg14[%c0_4, %c448] : memref<32x512xf32, #tpu.memory_space<vmem>>, vector<32x64xf32>
    tpu.vector_store %arg14[%c0_4, %c448], %3 {strides = array<i32>} : memref<32x512xf32, #tpu.memory_space<vmem>>, vector<32x64xf32>,
    %c0_5 = arith.constant 0 : index
    %c0_6 = arith.constant 0 : index
    %c0_7 = arith.constant 0 : index
    %5 = vector.load %arg1[%c0_5, %c0_6, %c0_7] : memref<1x1x320xf32, #tpu.memory_space<vmem>>, vector<1x1x320xf32>
    %6 = vector.shape_cast %5 : vector<1x1x320xf32> to vector<1x320xf32>
    %c0_8 = arith.constant 0 : index
    %c0_9 = arith.constant 0 : index
    %c0_10 = arith.constant 0 : index
    %7 = vector.load %arg3[%c0_8, %c0_9, %c0_10] : memref<9x16x1xf32, #tpu.memory_space<vmem>>, vector<9x16x1xf32>
    %c0_11 = arith.constant 0 : index
    %c0_12 = arith.constant 0 : index
    %8 = vector.load %arg4[%c0_11, %c0_12] : memref<16x1xf32, #tpu.memory_space<vmem>>, vector<16x1xf32>
    %9 = arith.mulf %6, %0 : vector<1x320xf32>
    %c0_13 = arith.constant 0 : index
    %c128 = arith.constant 128 : index
    %10 = vector.load %arg14[%c0_13, %c128] : memref<32x512xf32, #tpu.memory_space<vmem>>, vector<1x320xf32>
    tpu.vector_store %arg14[%c0_13, %c128], %9 {strides = array<i32>} : memref<32x512xf32, #tpu.memory_space<vmem>>, vector<1x320xf32>,
    %cst_14 = arith.constant 0.000000e+00 : f32
    %11 = vector.broadcast %cst_14 : f32 to vector<16x320xf32>
    %12 = vector.extract_strided_slice %7 {offsets = [0, 0, 0], sizes = [1, 16, 1], strides = [1, 1, 1]} : vector<9x16x1xf32> to vector<1x16x1xf32>
    %13 = vector.shape_cast %12 : vector<1x16x1xf32> to vector<16x1xf32>
    %c0_15 = arith.constant 0 : index
    %c107 = arith.constant 107 : index
    %14 = vector.load %arg14[%c0_15, %c107] : memref<32x512xf32, #tpu.memory_space<vmem>>, vector<1x320xf32>
    %15 = vector.broadcast %13 : vector<16x1xf32> to vector<16x320xf32>
    %16 = vector.broadcast %14 : vector<1x320xf32> to vector<16x320xf32>
    %17 = arith.mulf %15, %16 : vector<16x320xf32>
    %18 = arith.addf %11, %17 : vector<16x320xf32>
    %19 = vector.extract_strided_slice %7 {offsets = [1, 0, 0], sizes = [1, 16, 1], strides = [1, 1, 1]} : vector<9x16x1xf32> to vector<1x16x1xf32>
    %20 = vector.shape_cast %19 : vector<1x16x1xf32> to vector<16x1xf32>
    %c0_16 = arith.constant 0 : index
    %c108 = arith.constant 108 : index
    %21 = vector.load %arg14[%c0_16, %c108] : memref<32x512xf32, #tpu.memory_space<vmem>>, vector<1x320xf32>
    %22 = vector.broadcast %20 : vector<16x1xf32> to vector<16x320xf32>
    %23 = vector.broadcast %21 : vector<1x320xf32> to vector<16x320xf32>
    %24 = arith.mulf %22, %23 : vector<16x320xf32>
    %25 = arith.addf %18, %24 : vector<16x320xf32>
    %26 = vector.extract_strided_slice %7 {offsets = [2, 0, 0], sizes = [1, 16, 1], strides = [1, 1, 1]} : vector<9x16x1xf32> to vector<1x16x1xf32>
    %27 = vector.shape_cast %26 : vector<1x16x1xf32> to vector<16x1xf32>
    %c0_17 = arith.constant 0 : index
    %c109 = arith.constant 109 : index
    %28 = vector.load %arg14[%c0_17, %c109] : memref<32x512xf32, #tpu.memory_space<vmem>>, vector<1x320xf32>
    %29 = vector.broadcast %27 : vector<16x1xf32> to vector<16x320xf32>
    %30 = vector.broadcast %28 : vector<1x320xf32> to vector<16x320xf32>
    %31 = arith.mulf %29, %30 : vector<16x320xf32>
    %32 = arith.addf %25, %31 : vector<16x320xf32>
    %33 = vector.extract_strided_slice %7 {offsets = [3, 0, 0], sizes = [1, 16, 1], strides = [1, 1, 1]} : vector<9x16x1xf32> to vector<1x16x1xf32>
    %34 = vector.shape_cast %33 : vector<1x16x1xf32> to vector<16x1xf32>
    %c0_18 = arith.constant 0 : index
    %c127 = arith.constant 127 : index
    %35 = vector.load %arg14[%c0_18, %c127] : memref<32x512xf32, #tpu.memory_space<vmem>>, vector<1x320xf32>
    %36 = vector.broadcast %34 : vector<16x1xf32> to vector<16x320xf32>
    %37 = vector.broadcast %35 : vector<1x320xf32> to vector<16x320xf32>
    %38 = arith.mulf %36, %37 : vector<16x320xf32>
    %39 = arith.addf %32, %38 : vector<16x320xf32>
    %40 = vector.extract_strided_slice %7 {offsets = [4, 0, 0], sizes = [1, 16, 1], strides = [1, 1, 1]} : vector<9x16x1xf32> to vector<1x16x1xf32>
    %41 = vector.shape_cast %40 : vector<1x16x1xf32> to vector<16x1xf32>
    %c0_19 = arith.constant 0 : index
    %c128_20 = arith.constant 128 : index
    %42 = vector.load %arg14[%c0_19, %c128_20] : memref<32x512xf32, #tpu.memory_space<vmem>>, vector<1x320xf32>
    %43 = vector.broadcast %41 : vector<16x1xf32> to vector<16x320xf32>
    %44 = vector.broadcast %42 : vector<1x320xf32> to vector<16x320xf32>
    %45 = arith.mulf %43, %44 : vector<16x320xf32>
    %46 = arith.addf %39, %45 : vector<16x320xf32>
    %47 = vector.extract_strided_slice %7 {offsets = [5, 0, 0], sizes = [1, 16, 1], strides = [1, 1, 1]} : vector<9x16x1xf32> to vector<1x16x1xf32>
    %48 = vector.shape_cast %47 : vector<1x16x1xf32> to vector<16x1xf32>
    %c0_21 = arith.constant 0 : index
    %c129 = arith.constant 129 : index
    %49 = vector.load %arg14[%c0_21, %c129] : memref<32x512xf32, #tpu.memory_space<vmem>>, vector<1x320xf32>
    %50 = vector.broadcast %48 : vector<16x1xf32> to vector<16x320xf32>
    %51 = vector.broadcast %49 : vector<1x320xf32> to vector<16x320xf32>
    %52 = arith.mulf %50, %51 : vector<16x320xf32>
    %53 = arith.addf %46, %52 : vector<16x320xf32>
    %54 = vector.extract_strided_slice %7 {offsets = [6, 0, 0], sizes = [1, 16, 1], strides = [1, 1, 1]} : vector<9x16x1xf32> to vector<1x16x1xf32>
    %55 = vector.shape_cast %54 : vector<1x16x1xf32> to vector<16x1xf32>
    %c0_22 = arith.constant 0 : index
    %c147 = arith.constant 147 : index
    %56 = vector.load %arg14[%c0_22, %c147] : memref<32x512xf32, #tpu.memory_space<vmem>>, vector<1x320xf32>
    %57 = vector.broadcast %55 : vector<16x1xf32> to vector<16x320xf32>
    %58 = vector.broadcast %56 : vector<1x320xf32> to vector<16x320xf32>
    %59 = arith.mulf %57, %58 : vector<16x320xf32>
    %60 = arith.addf %53, %59 : vector<16x320xf32>
    %61 = vector.extract_strided_slice %7 {offsets = [7, 0, 0], sizes = [1, 16, 1], strides = [1, 1, 1]} : vector<9x16x1xf32> to vector<1x16x1xf32>
    %62 = vector.shape_cast %61 : vector<1x16x1xf32> to vector<16x1xf32>
    %c0_23 = arith.constant 0 : index
    %c148 = arith.constant 148 : index
    %63 = vector.load %arg14[%c0_23, %c148] : memref<32x512xf32, #tpu.memory_space<vmem>>, vector<1x320xf32>
    %64 = vector.broadcast %62 : vector<16x1xf32> to vector<16x320xf32>
    %65 = vector.broadcast %63 : vector<1x320xf32> to vector<16x320xf32>
    %66 = arith.mulf %64, %65 : vector<16x320xf32>
    %67 = arith.addf %60, %66 : vector<16x320xf32>
    %68 = vector.extract_strided_slice %7 {offsets = [8, 0, 0], sizes = [1, 16, 1], strides = [1, 1, 1]} : vector<9x16x1xf32> to vector<1x16x1xf32>
    %69 = vector.shape_cast %68 : vector<1x16x1xf32> to vector<16x1xf32>
    %c0_24 = arith.constant 0 : index
    %c149 = arith.constant 149 : index
    %70 = vector.load %arg14[%c0_24, %c149] : memref<32x512xf32, #tpu.memory_space<vmem>>, vector<1x320xf32>
    %71 = vector.broadcast %69 : vector<16x1xf32> to vector<16x320xf32>
    %72 = vector.broadcast %70 : vector<1x320xf32> to vector<16x320xf32>
    %73 = arith.mulf %71, %72 : vector<16x320xf32>
    %74 = arith.addf %67, %73 : vector<16x320xf32>
    %75 = vector.broadcast %8 : vector<16x1xf32> to vector<16x320xf32>
    %76 = arith.addf %74, %75 : vector<16x320xf32>
    %c0_i32 = arith.constant 0 : i32
    %c2_i32 = arith.constant 2 : i32
    %77 = arith.addi %c0_i32, %c2_i32 : i32
    %c1_i32 = arith.constant 1 : i32
    %78 = scf.for %arg15 = %c0_i32 to %77 step %c1_i32 iter_args(%arg16 = %76) -> (vector<16x320xf32>)  : i32 {
      %327 = arith.index_cast %arg15 : i32 to index
      %c0_106 = arith.constant 0 : index
      %c0_107 = arith.constant 0 : index
      %c0_108 = arith.constant 0 : index
      %328 = vector.load %arg5[%327, %c0_106, %c0_107, %c0_108] : memref<2x9x32x16xbf16, #tpu.memory_space<vmem>>, vector<1x9x32x16xbf16>
      %329 = vector.shape_cast %328 : vector<1x9x32x16xbf16> to vector<9x32x16xbf16>
      %330 = arith.index_cast %arg15 : i32 to index
      %c0_109 = arith.constant 0 : index
      %c0_110 = arith.constant 0 : index
      %331 = vector.load %arg6[%330, %c0_109, %c0_110] : memref<2x32x1xf32, #tpu.memory_space<vmem>>, vector<1x32x1xf32>
      %332 = vector.shape_cast %331 : vector<1x32x1xf32> to vector<32x1xf32>
      %333 = vector.broadcast %0 : vector<1x320xf32> to vector<16x320xf32>
      %334 = arith.mulf %arg16, %333 : vector<16x320xf32>
      %c0_111 = arith.constant 0 : index
      %c128_112 = arith.constant 128 : index
      %335 = vector.load %arg14[%c0_111, %c128_112] : memref<32x512xf32, #tpu.memory_space<vmem>>, vector<16x320xf32>
      tpu.vector_store %arg14[%c0_111, %c128_112], %334 {strides = array<i32>} : memref<32x512xf32, #tpu.memory_space<vmem>>, vector<16x320xf32>,
      %cst_113 = arith.constant 0.000000e+00 : f32
      %336 = vector.broadcast %cst_113 : f32 to vector<32x320xf32>
      %c0_114 = arith.constant 0 : index
      %c107_115 = arith.constant 107 : index
      %337 = vector.load %arg14[%c0_114, %c107_115] : memref<32x512xf32, #tpu.memory_space<vmem>>, vector<16x320xf32>
      %338 = arith.truncf %337 : vector<16x320xf32> to vector<16x320xbf16>
      %339 = vector.extract_strided_slice %329 {offsets = [0, 0, 0], sizes = [1, 32, 16], strides = [1, 1, 1]} : vector<9x32x16xbf16> to vector<1x32x16xbf16>
      %340 = vector.shape_cast %339 : vector<1x32x16xbf16> to vector<32x16xbf16>
      %cst_116 = arith.constant dense<0.000000e+00> : vector<32x320xf32>
      %341 = tpu.matmul %340, %338, %cst_116 {dimension_numbers = #tpu.dot_dimension_numbers<[1], [0], [0], [1], [0, 0, 1, 1], [], []>} : vector<32x16xbf16>, vector<16x320xbf16>, vector<32x320xf32> -> vector<32x320xf32>
      %342 = arith.addf %336, %341 : vector<32x320xf32>
      %c0_117 = arith.constant 0 : index
      %c108_118 = arith.constant 108 : index
      %343 = vector.load %arg14[%c0_117, %c108_118] : memref<32x512xf32, #tpu.memory_space<vmem>>, vector<16x320xf32>
      %344 = arith.truncf %343 : vector<16x320xf32> to vector<16x320xbf16>
      %345 = vector.extract_strided_slice %329 {offsets = [1, 0, 0], sizes = [1, 32, 16], strides = [1, 1, 1]} : vector<9x32x16xbf16> to vector<1x32x16xbf16>
      %346 = vector.shape_cast %345 : vector<1x32x16xbf16> to vector<32x16xbf16>
      %cst_119 = arith.constant dense<0.000000e+00> : vector<32x320xf32>
      %347 = tpu.matmul %346, %344, %cst_119 {dimension_numbers = #tpu.dot_dimension_numbers<[1], [0], [0], [1], [0, 0, 1, 1], [], []>} : vector<32x16xbf16>, vector<16x320xbf16>, vector<32x320xf32> -> vector<32x320xf32>
      %348 = arith.addf %342, %347 : vector<32x320xf32>
      %c0_120 = arith.constant 0 : index
      %c109_121 = arith.constant 109 : index
      %349 = vector.load %arg14[%c0_120, %c109_121] : memref<32x512xf32, #tpu.memory_space<vmem>>, vector<16x320xf32>
      %350 = arith.truncf %349 : vector<16x320xf32> to vector<16x320xbf16>
      %351 = vector.extract_strided_slice %329 {offsets = [2, 0, 0], sizes = [1, 32, 16], strides = [1, 1, 1]} : vector<9x32x16xbf16> to vector<1x32x16xbf16>
      %352 = vector.shape_cast %351 : vector<1x32x16xbf16> to vector<32x16xbf16>
      %cst_122 = arith.constant dense<0.000000e+00> : vector<32x320xf32>
      %353 = tpu.matmul %352, %350, %cst_122 {dimension_numbers = #tpu.dot_dimension_numbers<[1], [0], [0], [1], [0, 0, 1, 1], [], []>} : vector<32x16xbf16>, vector<16x320xbf16>, vector<32x320xf32> -> vector<32x320xf32>
      %354 = arith.addf %348, %353 : vector<32x320xf32>
      %c0_123 = arith.constant 0 : index
      %c127_124 = arith.constant 127 : index
      %355 = vector.load %arg14[%c0_123, %c127_124] : memref<32x512xf32, #tpu.memory_space<vmem>>, vector<16x320xf32>
      %356 = arith.truncf %355 : vector<16x320xf32> to vector<16x320xbf16>
      %357 = vector.extract_strided_slice %329 {offsets = [3, 0, 0], sizes = [1, 32, 16], strides = [1, 1, 1]} : vector<9x32x16xbf16> to vector<1x32x16xbf16>
      %358 = vector.shape_cast %357 : vector<1x32x16xbf16> to vector<32x16xbf16>
      %cst_125 = arith.constant dense<0.000000e+00> : vector<32x320xf32>
      %359 = tpu.matmul %358, %356, %cst_125 {dimension_numbers = #tpu.dot_dimension_numbers<[1], [0], [0], [1], [0, 0, 1, 1], [], []>} : vector<32x16xbf16>, vector<16x320xbf16>, vector<32x320xf32> -> vector<32x320xf32>
      %360 = arith.addf %354, %359 : vector<32x320xf32>
      %c0_126 = arith.constant 0 : index
      %c128_127 = arith.constant 128 : index
      %361 = vector.load %arg14[%c0_126, %c128_127] : memref<32x512xf32, #tpu.memory_space<vmem>>, vector<16x320xf32>
      %362 = arith.truncf %361 : vector<16x320xf32> to vector<16x320xbf16>
      %363 = vector.extract_strided_slice %329 {offsets = [4, 0, 0], sizes = [1, 32, 16], strides = [1, 1, 1]} : vector<9x32x16xbf16> to vector<1x32x16xbf16>
      %364 = vector.shape_cast %363 : vector<1x32x16xbf16> to vector<32x16xbf16>
      %cst_128 = arith.constant dense<0.000000e+00> : vector<32x320xf32>
      %365 = tpu.matmul %364, %362, %cst_128 {dimension_numbers = #tpu.dot_dimension_numbers<[1], [0], [0], [1], [0, 0, 1, 1], [], []>} : vector<32x16xbf16>, vector<16x320xbf16>, vector<32x320xf32> -> vector<32x320xf32>
      %366 = arith.addf %360, %365 : vector<32x320xf32>
      %c0_129 = arith.constant 0 : index
      %c129_130 = arith.constant 129 : index
      %367 = vector.load %arg14[%c0_129, %c129_130] : memref<32x512xf32, #tpu.memory_space<vmem>>, vector<16x320xf32>
      %368 = arith.truncf %367 : vector<16x320xf32> to vector<16x320xbf16>
      %369 = vector.extract_strided_slice %329 {offsets = [5, 0, 0], sizes = [1, 32, 16], strides = [1, 1, 1]} : vector<9x32x16xbf16> to vector<1x32x16xbf16>
      %370 = vector.shape_cast %369 : vector<1x32x16xbf16> to vector<32x16xbf16>
      %cst_131 = arith.constant dense<0.000000e+00> : vector<32x320xf32>
      %371 = tpu.matmul %370, %368, %cst_131 {dimension_numbers = #tpu.dot_dimension_numbers<[1], [0], [0], [1], [0, 0, 1, 1], [], []>} : vector<32x16xbf16>, vector<16x320xbf16>, vector<32x320xf32> -> vector<32x320xf32>
      %372 = arith.addf %366, %371 : vector<32x320xf32>
      %c0_132 = arith.constant 0 : index
      %c147_133 = arith.constant 147 : index
      %373 = vector.load %arg14[%c0_132, %c147_133] : memref<32x512xf32, #tpu.memory_space<vmem>>, vector<16x320xf32>
      %374 = arith.truncf %373 : vector<16x320xf32> to vector<16x320xbf16>
      %375 = vector.extract_strided_slice %329 {offsets = [6, 0, 0], sizes = [1, 32, 16], strides = [1, 1, 1]} : vector<9x32x16xbf16> to vector<1x32x16xbf16>
      %376 = vector.shape_cast %375 : vector<1x32x16xbf16> to vector<32x16xbf16>
      %cst_134 = arith.constant dense<0.000000e+00> : vector<32x320xf32>
      %377 = tpu.matmul %376, %374, %cst_134 {dimension_numbers = #tpu.dot_dimension_numbers<[1], [0], [0], [1], [0, 0, 1, 1], [], []>} : vector<32x16xbf16>, vector<16x320xbf16>, vector<32x320xf32> -> vector<32x320xf32>
      %378 = arith.addf %372, %377 : vector<32x320xf32>
      %c0_135 = arith.constant 0 : index
      %c148_136 = arith.constant 148 : index
      %379 = vector.load %arg14[%c0_135, %c148_136] : memref<32x512xf32, #tpu.memory_space<vmem>>, vector<16x320xf32>
      %380 = arith.truncf %379 : vector<16x320xf32> to vector<16x320xbf16>
      %381 = vector.extract_strided_slice %329 {offsets = [7, 0, 0], sizes = [1, 32, 16], strides = [1, 1, 1]} : vector<9x32x16xbf16> to vector<1x32x16xbf16>
      %382 = vector.shape_cast %381 : vector<1x32x16xbf16> to vector<32x16xbf16>
      %cst_137 = arith.constant dense<0.000000e+00> : vector<32x320xf32>
      %383 = tpu.matmul %382, %380, %cst_137 {dimension_numbers = #tpu.dot_dimension_numbers<[1], [0], [0], [1], [0, 0, 1, 1], [], []>} : vector<32x16xbf16>, vector<16x320xbf16>, vector<32x320xf32> -> vector<32x320xf32>
      %384 = arith.addf %378, %383 : vector<32x320xf32>
      %c0_138 = arith.constant 0 : index
      %c149_139 = arith.constant 149 : index
      %385 = vector.load %arg14[%c0_138, %c149_139] : memref<32x512xf32, #tpu.memory_space<vmem>>, vector<16x320xf32>
      %386 = arith.truncf %385 : vector<16x320xf32> to vector<16x320xbf16>
      %387 = vector.extract_strided_slice %329 {offsets = [8, 0, 0], sizes = [1, 32, 16], strides = [1, 1, 1]} : vector<9x32x16xbf16> to vector<1x32x16xbf16>
      %388 = vector.shape_cast %387 : vector<1x32x16xbf16> to vector<32x16xbf16>
      %cst_140 = arith.constant dense<0.000000e+00> : vector<32x320xf32>
      %389 = tpu.matmul %388, %386, %cst_140 {dimension_numbers = #tpu.dot_dimension_numbers<[1], [0], [0], [1], [0, 0, 1, 1], [], []>} : vector<32x16xbf16>, vector<16x320xbf16>, vector<32x320xf32> -> vector<32x320xf32>
      %390 = arith.addf %384, %389 : vector<32x320xf32>
      %391 = vector.broadcast %332 : vector<32x1xf32> to vector<32x320xf32>
      %392 = arith.addf %390, %391 : vector<32x320xf32>
      %cst_141 = arith.constant 0.000000e+00 : f32
      %393 = vector.broadcast %cst_141 : f32 to vector<32x320xf32>
      %394 = arith.maximumf %392, %393 : vector<32x320xf32>
      %395 = arith.index_cast %arg15 : i32 to index
      %c0_142 = arith.constant 0 : index
      %c0_143 = arith.constant 0 : index
      %c0_144 = arith.constant 0 : index
      %396 = vector.load %arg7[%395, %c0_142, %c0_143, %c0_144] : memref<2x9x16x32xbf16, #tpu.memory_space<vmem>>, vector<1x9x16x32xbf16>
      %397 = vector.shape_cast %396 : vector<1x9x16x32xbf16> to vector<9x16x32xbf16>
      %398 = arith.index_cast %arg15 : i32 to index
      %c0_145 = arith.constant 0 : index
      %c0_146 = arith.constant 0 : index
      %399 = vector.load %arg8[%398, %c0_145, %c0_146] : memref<2x16x1xf32, #tpu.memory_space<vmem>>, vector<1x16x1xf32>
      %400 = vector.shape_cast %399 : vector<1x16x1xf32> to vector<16x1xf32>
      %401 = vector.broadcast %0 : vector<1x320xf32> to vector<32x320xf32>
      %402 = arith.mulf %394, %401 : vector<32x320xf32>
      %c0_147 = arith.constant 0 : index
      %c128_148 = arith.constant 128 : index
      %403 = vector.load %arg14[%c0_147, %c128_148] : memref<32x512xf32, #tpu.memory_space<vmem>>, vector<32x320xf32>
      tpu.vector_store %arg14[%c0_147, %c128_148], %402 {strides = array<i32>} : memref<32x512xf32, #tpu.memory_space<vmem>>, vector<32x320xf32>,
      %cst_149 = arith.constant 0.000000e+00 : f32
      %404 = vector.broadcast %cst_149 : f32 to vector<16x320xf32>
      %c0_150 = arith.constant 0 : index
      %c107_151 = arith.constant 107 : index
      %405 = vector.load %arg14[%c0_150, %c107_151] : memref<32x512xf32, #tpu.memory_space<vmem>>, vector<32x320xf32>
      %406 = arith.truncf %405 : vector<32x320xf32> to vector<32x320xbf16>
      %407 = vector.extract_strided_slice %397 {offsets = [0, 0, 0], sizes = [1, 16, 32], strides = [1, 1, 1]} : vector<9x16x32xbf16> to vector<1x16x32xbf16>
      %408 = vector.shape_cast %407 : vector<1x16x32xbf16> to vector<16x32xbf16>
      %cst_152 = arith.constant dense<0.000000e+00> : vector<16x320xf32>
      %409 = tpu.matmul %408, %406, %cst_152 {dimension_numbers = #tpu.dot_dimension_numbers<[1], [0], [0], [1], [0, 0, 1, 1], [], []>} : vector<16x32xbf16>, vector<32x320xbf16>, vector<16x320xf32> -> vector<16x320xf32>
      %410 = arith.addf %404, %409 : vector<16x320xf32>
      %c0_153 = arith.constant 0 : index
      %c108_154 = arith.constant 108 : index
      %411 = vector.load %arg14[%c0_153, %c108_154] : memref<32x512xf32, #tpu.memory_space<vmem>>, vector<32x320xf32>
      %412 = arith.truncf %411 : vector<32x320xf32> to vector<32x320xbf16>
      %413 = vector.extract_strided_slice %397 {offsets = [1, 0, 0], sizes = [1, 16, 32], strides = [1, 1, 1]} : vector<9x16x32xbf16> to vector<1x16x32xbf16>
      %414 = vector.shape_cast %413 : vector<1x16x32xbf16> to vector<16x32xbf16>
      %cst_155 = arith.constant dense<0.000000e+00> : vector<16x320xf32>
      %415 = tpu.matmul %414, %412, %cst_155 {dimension_numbers = #tpu.dot_dimension_numbers<[1], [0], [0], [1], [0, 0, 1, 1], [], []>} : vector<16x32xbf16>, vector<32x320xbf16>, vector<16x320xf32> -> vector<16x320xf32>
      %416 = arith.addf %410, %415 : vector<16x320xf32>
      %c0_156 = arith.constant 0 : index
      %c109_157 = arith.constant 109 : index
      %417 = vector.load %arg14[%c0_156, %c109_157] : memref<32x512xf32, #tpu.memory_space<vmem>>, vector<32x320xf32>
      %418 = arith.truncf %417 : vector<32x320xf32> to vector<32x320xbf16>
      %419 = vector.extract_strided_slice %397 {offsets = [2, 0, 0], sizes = [1, 16, 32], strides = [1, 1, 1]} : vector<9x16x32xbf16> to vector<1x16x32xbf16>
      %420 = vector.shape_cast %419 : vector<1x16x32xbf16> to vector<16x32xbf16>
      %cst_158 = arith.constant dense<0.000000e+00> : vector<16x320xf32>
      %421 = tpu.matmul %420, %418, %cst_158 {dimension_numbers = #tpu.dot_dimension_numbers<[1], [0], [0], [1], [0, 0, 1, 1], [], []>} : vector<16x32xbf16>, vector<32x320xbf16>, vector<16x320xf32> -> vector<16x320xf32>
      %422 = arith.addf %416, %421 : vector<16x320xf32>
      %c0_159 = arith.constant 0 : index
      %c127_160 = arith.constant 127 : index
      %423 = vector.load %arg14[%c0_159, %c127_160] : memref<32x512xf32, #tpu.memory_space<vmem>>, vector<32x320xf32>
      %424 = arith.truncf %423 : vector<32x320xf32> to vector<32x320xbf16>
      %425 = vector.extract_strided_slice %397 {offsets = [3, 0, 0], sizes = [1, 16, 32], strides = [1, 1, 1]} : vector<9x16x32xbf16> to vector<1x16x32xbf16>
      %426 = vector.shape_cast %425 : vector<1x16x32xbf16> to vector<16x32xbf16>
      %cst_161 = arith.constant dense<0.000000e+00> : vector<16x320xf32>
      %427 = tpu.matmul %426, %424, %cst_161 {dimension_numbers = #tpu.dot_dimension_numbers<[1], [0], [0], [1], [0, 0, 1, 1], [], []>} : vector<16x32xbf16>, vector<32x320xbf16>, vector<16x320xf32> -> vector<16x320xf32>
      %428 = arith.addf %422, %427 : vector<16x320xf32>
      %c0_162 = arith.constant 0 : index
      %c128_163 = arith.constant 128 : index
      %429 = vector.load %arg14[%c0_162, %c128_163] : memref<32x512xf32, #tpu.memory_space<vmem>>, vector<32x320xf32>
      %430 = arith.truncf %429 : vector<32x320xf32> to vector<32x320xbf16>
      %431 = vector.extract_strided_slice %397 {offsets = [4, 0, 0], sizes = [1, 16, 32], strides = [1, 1, 1]} : vector<9x16x32xbf16> to vector<1x16x32xbf16>
      %432 = vector.shape_cast %431 : vector<1x16x32xbf16> to vector<16x32xbf16>
      %cst_164 = arith.constant dense<0.000000e+00> : vector<16x320xf32>
      %433 = tpu.matmul %432, %430, %cst_164 {dimension_numbers = #tpu.dot_dimension_numbers<[1], [0], [0], [1], [0, 0, 1, 1], [], []>} : vector<16x32xbf16>, vector<32x320xbf16>, vector<16x320xf32> -> vector<16x320xf32>
      %434 = arith.addf %428, %433 : vector<16x320xf32>
      %c0_165 = arith.constant 0 : index
      %c129_166 = arith.constant 129 : index
      %435 = vector.load %arg14[%c0_165, %c129_166] : memref<32x512xf32, #tpu.memory_space<vmem>>, vector<32x320xf32>
      %436 = arith.truncf %435 : vector<32x320xf32> to vector<32x320xbf16>
      %437 = vector.extract_strided_slice %397 {offsets = [5, 0, 0], sizes = [1, 16, 32], strides = [1, 1, 1]} : vector<9x16x32xbf16> to vector<1x16x32xbf16>
      %438 = vector.shape_cast %437 : vector<1x16x32xbf16> to vector<16x32xbf16>
      %cst_167 = arith.constant dense<0.000000e+00> : vector<16x320xf32>
      %439 = tpu.matmul %438, %436, %cst_167 {dimension_numbers = #tpu.dot_dimension_numbers<[1], [0], [0], [1], [0, 0, 1, 1], [], []>} : vector<16x32xbf16>, vector<32x320xbf16>, vector<16x320xf32> -> vector<16x320xf32>
      %440 = arith.addf %434, %439 : vector<16x320xf32>
      %c0_168 = arith.constant 0 : index
      %c147_169 = arith.constant 147 : index
      %441 = vector.load %arg14[%c0_168, %c147_169] : memref<32x512xf32, #tpu.memory_space<vmem>>, vector<32x320xf32>
      %442 = arith.truncf %441 : vector<32x320xf32> to vector<32x320xbf16>
      %443 = vector.extract_strided_slice %397 {offsets = [6, 0, 0], sizes = [1, 16, 32], strides = [1, 1, 1]} : vector<9x16x32xbf16> to vector<1x16x32xbf16>
      %444 = vector.shape_cast %443 : vector<1x16x32xbf16> to vector<16x32xbf16>
      %cst_170 = arith.constant dense<0.000000e+00> : vector<16x320xf32>
      %445 = tpu.matmul %444, %442, %cst_170 {dimension_numbers = #tpu.dot_dimension_numbers<[1], [0], [0], [1], [0, 0, 1, 1], [], []>} : vector<16x32xbf16>, vector<32x320xbf16>, vector<16x320xf32> -> vector<16x320xf32>
      %446 = arith.addf %440, %445 : vector<16x320xf32>
      %c0_171 = arith.constant 0 : index
      %c148_172 = arith.constant 148 : index
      %447 = vector.load %arg14[%c0_171, %c148_172] : memref<32x512xf32, #tpu.memory_space<vmem>>, vector<32x320xf32>
      %448 = arith.truncf %447 : vector<32x320xf32> to vector<32x320xbf16>
      %449 = vector.extract_strided_slice %397 {offsets = [7, 0, 0], sizes = [1, 16, 32], strides = [1, 1, 1]} : vector<9x16x32xbf16> to vector<1x16x32xbf16>
      %450 = vector.shape_cast %449 : vector<1x16x32xbf16> to vector<16x32xbf16>
      %cst_173 = arith.constant dense<0.000000e+00> : vector<16x320xf32>
      %451 = tpu.matmul %450, %448, %cst_173 {dimension_numbers = #tpu.dot_dimension_numbers<[1], [0], [0], [1], [0, 0, 1, 1], [], []>} : vector<16x32xbf16>, vector<32x320xbf16>, vector<16x320xf32> -> vector<16x320xf32>
      %452 = arith.addf %446, %451 : vector<16x320xf32>
      %c0_174 = arith.constant 0 : index
      %c149_175 = arith.constant 149 : index
      %453 = vector.load %arg14[%c0_174, %c149_175] : memref<32x512xf32, #tpu.memory_space<vmem>>, vector<32x320xf32>
      %454 = arith.truncf %453 : vector<32x320xf32> to vector<32x320xbf16>
      %455 = vector.extract_strided_slice %397 {offsets = [8, 0, 0], sizes = [1, 16, 32], strides = [1, 1, 1]} : vector<9x16x32xbf16> to vector<1x16x32xbf16>
      %456 = vector.shape_cast %455 : vector<1x16x32xbf16> to vector<16x32xbf16>
      %cst_176 = arith.constant dense<0.000000e+00> : vector<16x320xf32>
      %457 = tpu.matmul %456, %454, %cst_176 {dimension_numbers = #tpu.dot_dimension_numbers<[1], [0], [0], [1], [0, 0, 1, 1], [], []>} : vector<16x32xbf16>, vector<32x320xbf16>, vector<16x320xf32> -> vector<16x320xf32>
      %458 = arith.addf %452, %457 : vector<16x320xf32>
      %459 = vector.broadcast %400 : vector<16x1xf32> to vector<16x320xf32>
      %460 = arith.addf %458, %459 : vector<16x320xf32>
      %461 = arith.addf %460, %arg16 : vector<16x320xf32>
      scf.yield %461 : vector<16x320xf32>
    }
    %c2_i32_25 = arith.constant 2 : i32
    %c0_26 = arith.constant 0 : index
    %c0_27 = arith.constant 0 : index
    %c0_28 = arith.constant 0 : index
    %79 = vector.load %arg9[%c0_26, %c0_27, %c0_28] : memref<9x4x16xbf16, #tpu.memory_space<vmem>>, vector<9x4x16xbf16>
    %c0_29 = arith.constant 0 : index
    %c0_30 = arith.constant 0 : index
    %80 = vector.load %arg10[%c0_29, %c0_30] : memref<4x1xf32, #tpu.memory_space<vmem>>, vector<4x1xf32>
    %81 = vector.broadcast %0 : vector<1x320xf32> to vector<16x320xf32>
    %82 = arith.mulf %78, %81 : vector<16x320xf32>
    %c0_31 = arith.constant 0 : index
    %c128_32 = arith.constant 128 : index
    %83 = vector.load %arg14[%c0_31, %c128_32] : memref<32x512xf32, #tpu.memory_space<vmem>>, vector<16x320xf32>
    tpu.vector_store %arg14[%c0_31, %c128_32], %82 {strides = array<i32>} : memref<32x512xf32, #tpu.memory_space<vmem>>, vector<16x320xf32>,
    %cst_33 = arith.constant 0.000000e+00 : f32
    %84 = vector.broadcast %cst_33 : f32 to vector<4x320xf32>
    %c0_34 = arith.constant 0 : index
    %c107_35 = arith.constant 107 : index
    %85 = vector.load %arg14[%c0_34, %c107_35] : memref<32x512xf32, #tpu.memory_space<vmem>>, vector<16x320xf32>
    %86 = arith.truncf %85 : vector<16x320xf32> to vector<16x320xbf16>
    %87 = vector.extract_strided_slice %79 {offsets = [0, 0, 0], sizes = [1, 4, 16], strides = [1, 1, 1]} : vector<9x4x16xbf16> to vector<1x4x16xbf16>
    %88 = vector.shape_cast %87 : vector<1x4x16xbf16> to vector<4x16xbf16>
    %cst_36 = arith.constant dense<0.000000e+00> : vector<4x320xf32>
    %89 = tpu.matmul %88, %86, %cst_36 {dimension_numbers = #tpu.dot_dimension_numbers<[1], [0], [0], [1], [0, 0, 1, 1], [], []>} : vector<4x16xbf16>, vector<16x320xbf16>, vector<4x320xf32> -> vector<4x320xf32>
    %90 = arith.addf %84, %89 : vector<4x320xf32>
    %c0_37 = arith.constant 0 : index
    %c108_38 = arith.constant 108 : index
    %91 = vector.load %arg14[%c0_37, %c108_38] : memref<32x512xf32, #tpu.memory_space<vmem>>, vector<16x320xf32>
    %92 = arith.truncf %91 : vector<16x320xf32> to vector<16x320xbf16>
    %93 = vector.extract_strided_slice %79 {offsets = [1, 0, 0], sizes = [1, 4, 16], strides = [1, 1, 1]} : vector<9x4x16xbf16> to vector<1x4x16xbf16>
    %94 = vector.shape_cast %93 : vector<1x4x16xbf16> to vector<4x16xbf16>
    %cst_39 = arith.constant dense<0.000000e+00> : vector<4x320xf32>
    %95 = tpu.matmul %94, %92, %cst_39 {dimension_numbers = #tpu.dot_dimension_numbers<[1], [0], [0], [1], [0, 0, 1, 1], [], []>} : vector<4x16xbf16>, vector<16x320xbf16>, vector<4x320xf32> -> vector<4x320xf32>
    %96 = arith.addf %90, %95 : vector<4x320xf32>
    %c0_40 = arith.constant 0 : index
    %c109_41 = arith.constant 109 : index
    %97 = vector.load %arg14[%c0_40, %c109_41] : memref<32x512xf32, #tpu.memory_space<vmem>>, vector<16x320xf32>
    %98 = arith.truncf %97 : vector<16x320xf32> to vector<16x320xbf16>
    %99 = vector.extract_strided_slice %79 {offsets = [2, 0, 0], sizes = [1, 4, 16], strides = [1, 1, 1]} : vector<9x4x16xbf16> to vector<1x4x16xbf16>
    %100 = vector.shape_cast %99 : vector<1x4x16xbf16> to vector<4x16xbf16>
    %cst_42 = arith.constant dense<0.000000e+00> : vector<4x320xf32>
    %101 = tpu.matmul %100, %98, %cst_42 {dimension_numbers = #tpu.dot_dimension_numbers<[1], [0], [0], [1], [0, 0, 1, 1], [], []>} : vector<4x16xbf16>, vector<16x320xbf16>, vector<4x320xf32> -> vector<4x320xf32>
    %102 = arith.addf %96, %101 : vector<4x320xf32>
    %c0_43 = arith.constant 0 : index
    %c127_44 = arith.constant 127 : index
    %103 = vector.load %arg14[%c0_43, %c127_44] : memref<32x512xf32, #tpu.memory_space<vmem>>, vector<16x320xf32>
    %104 = arith.truncf %103 : vector<16x320xf32> to vector<16x320xbf16>
    %105 = vector.extract_strided_slice %79 {offsets = [3, 0, 0], sizes = [1, 4, 16], strides = [1, 1, 1]} : vector<9x4x16xbf16> to vector<1x4x16xbf16>
    %106 = vector.shape_cast %105 : vector<1x4x16xbf16> to vector<4x16xbf16>
    %cst_45 = arith.constant dense<0.000000e+00> : vector<4x320xf32>
    %107 = tpu.matmul %106, %104, %cst_45 {dimension_numbers = #tpu.dot_dimension_numbers<[1], [0], [0], [1], [0, 0, 1, 1], [], []>} : vector<4x16xbf16>, vector<16x320xbf16>, vector<4x320xf32> -> vector<4x320xf32>
    %108 = arith.addf %102, %107 : vector<4x320xf32>
    %c0_46 = arith.constant 0 : index
    %c128_47 = arith.constant 128 : index
    %109 = vector.load %arg14[%c0_46, %c128_47] : memref<32x512xf32, #tpu.memory_space<vmem>>, vector<16x320xf32>
    %110 = arith.truncf %109 : vector<16x320xf32> to vector<16x320xbf16>
    %111 = vector.extract_strided_slice %79 {offsets = [4, 0, 0], sizes = [1, 4, 16], strides = [1, 1, 1]} : vector<9x4x16xbf16> to vector<1x4x16xbf16>
    %112 = vector.shape_cast %111 : vector<1x4x16xbf16> to vector<4x16xbf16>
    %cst_48 = arith.constant dense<0.000000e+00> : vector<4x320xf32>
    %113 = tpu.matmul %112, %110, %cst_48 {dimension_numbers = #tpu.dot_dimension_numbers<[1], [0], [0], [1], [0, 0, 1, 1], [], []>} : vector<4x16xbf16>, vector<16x320xbf16>, vector<4x320xf32> -> vector<4x320xf32>
    %114 = arith.addf %108, %113 : vector<4x320xf32>
    %c0_49 = arith.constant 0 : index
    %c129_50 = arith.constant 129 : index
    %115 = vector.load %arg14[%c0_49, %c129_50] : memref<32x512xf32, #tpu.memory_space<vmem>>, vector<16x320xf32>
    %116 = arith.truncf %115 : vector<16x320xf32> to vector<16x320xbf16>
    %117 = vector.extract_strided_slice %79 {offsets = [5, 0, 0], sizes = [1, 4, 16], strides = [1, 1, 1]} : vector<9x4x16xbf16> to vector<1x4x16xbf16>
    %118 = vector.shape_cast %117 : vector<1x4x16xbf16> to vector<4x16xbf16>
    %cst_51 = arith.constant dense<0.000000e+00> : vector<4x320xf32>
    %119 = tpu.matmul %118, %116, %cst_51 {dimension_numbers = #tpu.dot_dimension_numbers<[1], [0], [0], [1], [0, 0, 1, 1], [], []>} : vector<4x16xbf16>, vector<16x320xbf16>, vector<4x320xf32> -> vector<4x320xf32>
    %120 = arith.addf %114, %119 : vector<4x320xf32>
    %c0_52 = arith.constant 0 : index
    %c147_53 = arith.constant 147 : index
    %121 = vector.load %arg14[%c0_52, %c147_53] : memref<32x512xf32, #tpu.memory_space<vmem>>, vector<16x320xf32>
    %122 = arith.truncf %121 : vector<16x320xf32> to vector<16x320xbf16>
    %123 = vector.extract_strided_slice %79 {offsets = [6, 0, 0], sizes = [1, 4, 16], strides = [1, 1, 1]} : vector<9x4x16xbf16> to vector<1x4x16xbf16>
    %124 = vector.shape_cast %123 : vector<1x4x16xbf16> to vector<4x16xbf16>
    %cst_54 = arith.constant dense<0.000000e+00> : vector<4x320xf32>
    %125 = tpu.matmul %124, %122, %cst_54 {dimension_numbers = #tpu.dot_dimension_numbers<[1], [0], [0], [1], [0, 0, 1, 1], [], []>} : vector<4x16xbf16>, vector<16x320xbf16>, vector<4x320xf32> -> vector<4x320xf32>
    %126 = arith.addf %120, %125 : vector<4x320xf32>
    %c0_55 = arith.constant 0 : index
    %c148_56 = arith.constant 148 : index
    %127 = vector.load %arg14[%c0_55, %c148_56] : memref<32x512xf32, #tpu.memory_space<vmem>>, vector<16x320xf32>
    %128 = arith.truncf %127 : vector<16x320xf32> to vector<16x320xbf16>
    %129 = vector.extract_strided_slice %79 {offsets = [7, 0, 0], sizes = [1, 4, 16], strides = [1, 1, 1]} : vector<9x4x16xbf16> to vector<1x4x16xbf16>
    %130 = vector.shape_cast %129 : vector<1x4x16xbf16> to vector<4x16xbf16>
    %cst_57 = arith.constant dense<0.000000e+00> : vector<4x320xf32>
    %131 = tpu.matmul %130, %128, %cst_57 {dimension_numbers = #tpu.dot_dimension_numbers<[1], [0], [0], [1], [0, 0, 1, 1], [], []>} : vector<4x16xbf16>, vector<16x320xbf16>, vector<4x320xf32> -> vector<4x320xf32>
    %132 = arith.addf %126, %131 : vector<4x320xf32>
    %c0_58 = arith.constant 0 : index
    %c149_59 = arith.constant 149 : index
    %133 = vector.load %arg14[%c0_58, %c149_59] : memref<32x512xf32, #tpu.memory_space<vmem>>, vector<16x320xf32>
    %134 = arith.truncf %133 : vector<16x320xf32> to vector<16x320xbf16>
    %135 = vector.extract_strided_slice %79 {offsets = [8, 0, 0], sizes = [1, 4, 16], strides = [1, 1, 1]} : vector<9x4x16xbf16> to vector<1x4x16xbf16>
    %136 = vector.shape_cast %135 : vector<1x4x16xbf16> to vector<4x16xbf16>
    %cst_60 = arith.constant dense<0.000000e+00> : vector<4x320xf32>
    %137 = tpu.matmul %136, %134, %cst_60 {dimension_numbers = #tpu.dot_dimension_numbers<[1], [0], [0], [1], [0, 0, 1, 1], [], []>} : vector<4x16xbf16>, vector<16x320xbf16>, vector<4x320xf32> -> vector<4x320xf32>
    %138 = arith.addf %132, %137 : vector<4x320xf32>
    %139 = vector.broadcast %80 : vector<4x1xf32> to vector<4x320xf32>
    %140 = arith.addf %138, %139 : vector<4x320xf32>
    %c0_61 = arith.constant 0 : index
    %c0_62 = arith.constant 0 : index
    %c0_63 = arith.constant 0 : index
    %141 = vector.load %arg11[%c0_61, %c0_62, %c0_63] : memref<25x4x1xf32, #tpu.memory_space<vmem>>, vector<25x4x1xf32>
    %c0_64 = arith.constant 0 : index
    %c0_65 = arith.constant 0 : index
    %142 = vector.load %arg12[%c0_64, %c0_65] : memref<4x1xf32, #tpu.memory_space<vmem>>, vector<4x1xf32>
    %143 = arith.mulf %6, %0 : vector<1x320xf32>
    %c0_66 = arith.constant 0 : index
    %c128_67 = arith.constant 128 : index
    %144 = vector.load %arg14[%c0_66, %c128_67] : memref<32x512xf32, #tpu.memory_space<vmem>>, vector<1x320xf32>
    tpu.vector_store %arg14[%c0_66, %c128_67], %143 {strides = array<i32>} : memref<32x512xf32, #tpu.memory_space<vmem>>, vector<1x320xf32>,
    %cst_68 = arith.constant 0.000000e+00 : f32
    %145 = vector.broadcast %cst_68 : f32 to vector<4x320xf32>
    %146 = vector.extract_strided_slice %141 {offsets = [0, 0, 0], sizes = [1, 4, 1], strides = [1, 1, 1]} : vector<25x4x1xf32> to vector<1x4x1xf32>
    %147 = vector.shape_cast %146 : vector<1x4x1xf32> to vector<4x1xf32>
    %c0_69 = arith.constant 0 : index
    %c86 = arith.constant 86 : index
    %148 = vector.load %arg14[%c0_69, %c86] : memref<32x512xf32, #tpu.memory_space<vmem>>, vector<1x320xf32>
    %149 = vector.broadcast %147 : vector<4x1xf32> to vector<4x320xf32>
    %150 = vector.broadcast %148 : vector<1x320xf32> to vector<4x320xf32>
    %151 = arith.mulf %149, %150 : vector<4x320xf32>
    %152 = arith.addf %145, %151 : vector<4x320xf32>
    %153 = vector.extract_strided_slice %141 {offsets = [1, 0, 0], sizes = [1, 4, 1], strides = [1, 1, 1]} : vector<25x4x1xf32> to vector<1x4x1xf32>
    %154 = vector.shape_cast %153 : vector<1x4x1xf32> to vector<4x1xf32>
    %c0_70 = arith.constant 0 : index
    %c87 = arith.constant 87 : index
    %155 = vector.load %arg14[%c0_70, %c87] : memref<32x512xf32, #tpu.memory_space<vmem>>, vector<1x320xf32>
    %156 = vector.broadcast %154 : vector<4x1xf32> to vector<4x320xf32>
    %157 = vector.broadcast %155 : vector<1x320xf32> to vector<4x320xf32>
    %158 = arith.mulf %156, %157 : vector<4x320xf32>
    %159 = arith.addf %152, %158 : vector<4x320xf32>
    %160 = vector.extract_strided_slice %141 {offsets = [2, 0, 0], sizes = [1, 4, 1], strides = [1, 1, 1]} : vector<25x4x1xf32> to vector<1x4x1xf32>
    %161 = vector.shape_cast %160 : vector<1x4x1xf32> to vector<4x1xf32>
    %c0_71 = arith.constant 0 : index
    %c88 = arith.constant 88 : index
    %162 = vector.load %arg14[%c0_71, %c88] : memref<32x512xf32, #tpu.memory_space<vmem>>, vector<1x320xf32>
    %163 = vector.broadcast %161 : vector<4x1xf32> to vector<4x320xf32>
    %164 = vector.broadcast %162 : vector<1x320xf32> to vector<4x320xf32>
    %165 = arith.mulf %163, %164 : vector<4x320xf32>
    %166 = arith.addf %159, %165 : vector<4x320xf32>
    %167 = vector.extract_strided_slice %141 {offsets = [3, 0, 0], sizes = [1, 4, 1], strides = [1, 1, 1]} : vector<25x4x1xf32> to vector<1x4x1xf32>
    %168 = vector.shape_cast %167 : vector<1x4x1xf32> to vector<4x1xf32>
    %c0_72 = arith.constant 0 : index
    %c89 = arith.constant 89 : index
    %169 = vector.load %arg14[%c0_72, %c89] : memref<32x512xf32, #tpu.memory_space<vmem>>, vector<1x320xf32>
    %170 = vector.broadcast %168 : vector<4x1xf32> to vector<4x320xf32>
    %171 = vector.broadcast %169 : vector<1x320xf32> to vector<4x320xf32>
    %172 = arith.mulf %170, %171 : vector<4x320xf32>
    %173 = arith.addf %166, %172 : vector<4x320xf32>
    %174 = vector.extract_strided_slice %141 {offsets = [4, 0, 0], sizes = [1, 4, 1], strides = [1, 1, 1]} : vector<25x4x1xf32> to vector<1x4x1xf32>
    %175 = vector.shape_cast %174 : vector<1x4x1xf32> to vector<4x1xf32>
    %c0_73 = arith.constant 0 : index
    %c90 = arith.constant 90 : index
    %176 = vector.load %arg14[%c0_73, %c90] : memref<32x512xf32, #tpu.memory_space<vmem>>, vector<1x320xf32>
    %177 = vector.broadcast %175 : vector<4x1xf32> to vector<4x320xf32>
    %178 = vector.broadcast %176 : vector<1x320xf32> to vector<4x320xf32>
    %179 = arith.mulf %177, %178 : vector<4x320xf32>
    %180 = arith.addf %173, %179 : vector<4x320xf32>
    %181 = vector.extract_strided_slice %141 {offsets = [5, 0, 0], sizes = [1, 4, 1], strides = [1, 1, 1]} : vector<25x4x1xf32> to vector<1x4x1xf32>
    %182 = vector.shape_cast %181 : vector<1x4x1xf32> to vector<4x1xf32>
    %c0_74 = arith.constant 0 : index
    %c106 = arith.constant 106 : index
    %183 = vector.load %arg14[%c0_74, %c106] : memref<32x512xf32, #tpu.memory_space<vmem>>, vector<1x320xf32>
    %184 = vector.broadcast %182 : vector<4x1xf32> to vector<4x320xf32>
    %185 = vector.broadcast %183 : vector<1x320xf32> to vector<4x320xf32>
    %186 = arith.mulf %184, %185 : vector<4x320xf32>
    %187 = arith.addf %180, %186 : vector<4x320xf32>
    %188 = vector.extract_strided_slice %141 {offsets = [6, 0, 0], sizes = [1, 4, 1], strides = [1, 1, 1]} : vector<25x4x1xf32> to vector<1x4x1xf32>
    %189 = vector.shape_cast %188 : vector<1x4x1xf32> to vector<4x1xf32>
    %c0_75 = arith.constant 0 : index
    %c107_76 = arith.constant 107 : index
    %190 = vector.load %arg14[%c0_75, %c107_76] : memref<32x512xf32, #tpu.memory_space<vmem>>, vector<1x320xf32>
    %191 = vector.broadcast %189 : vector<4x1xf32> to vector<4x320xf32>
    %192 = vector.broadcast %190 : vector<1x320xf32> to vector<4x320xf32>
    %193 = arith.mulf %191, %192 : vector<4x320xf32>
    %194 = arith.addf %187, %193 : vector<4x320xf32>
    %195 = vector.extract_strided_slice %141 {offsets = [7, 0, 0], sizes = [1, 4, 1], strides = [1, 1, 1]} : vector<25x4x1xf32> to vector<1x4x1xf32>
    %196 = vector.shape_cast %195 : vector<1x4x1xf32> to vector<4x1xf32>
    %c0_77 = arith.constant 0 : index
    %c108_78 = arith.constant 108 : index
    %197 = vector.load %arg14[%c0_77, %c108_78] : memref<32x512xf32, #tpu.memory_space<vmem>>, vector<1x320xf32>
    %198 = vector.broadcast %196 : vector<4x1xf32> to vector<4x320xf32>
    %199 = vector.broadcast %197 : vector<1x320xf32> to vector<4x320xf32>
    %200 = arith.mulf %198, %199 : vector<4x320xf32>
    %201 = arith.addf %194, %200 : vector<4x320xf32>
    %202 = vector.extract_strided_slice %141 {offsets = [8, 0, 0], sizes = [1, 4, 1], strides = [1, 1, 1]} : vector<25x4x1xf32> to vector<1x4x1xf32>
    %203 = vector.shape_cast %202 : vector<1x4x1xf32> to vector<4x1xf32>
    %c0_79 = arith.constant 0 : index
    %c109_80 = arith.constant 109 : index
    %204 = vector.load %arg14[%c0_79, %c109_80] : memref<32x512xf32, #tpu.memory_space<vmem>>, vector<1x320xf32>
    %205 = vector.broadcast %203 : vector<4x1xf32> to vector<4x320xf32>
    %206 = vector.broadcast %204 : vector<1x320xf32> to vector<4x320xf32>
    %207 = arith.mulf %205, %206 : vector<4x320xf32>
    %208 = arith.addf %201, %207 : vector<4x320xf32>
    %209 = vector.extract_strided_slice %141 {offsets = [9, 0, 0], sizes = [1, 4, 1], strides = [1, 1, 1]} : vector<25x4x1xf32> to vector<1x4x1xf32>
    %210 = vector.shape_cast %209 : vector<1x4x1xf32> to vector<4x1xf32>
    %c0_81 = arith.constant 0 : index
    %c110 = arith.constant 110 : index
    %211 = vector.load %arg14[%c0_81, %c110] : memref<32x512xf32, #tpu.memory_space<vmem>>, vector<1x320xf32>
    %212 = vector.broadcast %210 : vector<4x1xf32> to vector<4x320xf32>
    %213 = vector.broadcast %211 : vector<1x320xf32> to vector<4x320xf32>
    %214 = arith.mulf %212, %213 : vector<4x320xf32>
    %215 = arith.addf %208, %214 : vector<4x320xf32>
    %216 = vector.extract_strided_slice %141 {offsets = [10, 0, 0], sizes = [1, 4, 1], strides = [1, 1, 1]} : vector<25x4x1xf32> to vector<1x4x1xf32>
    %217 = vector.shape_cast %216 : vector<1x4x1xf32> to vector<4x1xf32>
    %c0_82 = arith.constant 0 : index
    %c126 = arith.constant 126 : index
    %218 = vector.load %arg14[%c0_82, %c126] : memref<32x512xf32, #tpu.memory_space<vmem>>, vector<1x320xf32>
    %219 = vector.broadcast %217 : vector<4x1xf32> to vector<4x320xf32>
    %220 = vector.broadcast %218 : vector<1x320xf32> to vector<4x320xf32>
    %221 = arith.mulf %219, %220 : vector<4x320xf32>
    %222 = arith.addf %215, %221 : vector<4x320xf32>
    %223 = vector.extract_strided_slice %141 {offsets = [11, 0, 0], sizes = [1, 4, 1], strides = [1, 1, 1]} : vector<25x4x1xf32> to vector<1x4x1xf32>
    %224 = vector.shape_cast %223 : vector<1x4x1xf32> to vector<4x1xf32>
    %c0_83 = arith.constant 0 : index
    %c127_84 = arith.constant 127 : index
    %225 = vector.load %arg14[%c0_83, %c127_84] : memref<32x512xf32, #tpu.memory_space<vmem>>, vector<1x320xf32>
    %226 = vector.broadcast %224 : vector<4x1xf32> to vector<4x320xf32>
    %227 = vector.broadcast %225 : vector<1x320xf32> to vector<4x320xf32>
    %228 = arith.mulf %226, %227 : vector<4x320xf32>
    %229 = arith.addf %222, %228 : vector<4x320xf32>
    %230 = vector.extract_strided_slice %141 {offsets = [12, 0, 0], sizes = [1, 4, 1], strides = [1, 1, 1]} : vector<25x4x1xf32> to vector<1x4x1xf32>
    %231 = vector.shape_cast %230 : vector<1x4x1xf32> to vector<4x1xf32>
    %c0_85 = arith.constant 0 : index
    %c128_86 = arith.constant 128 : index
    %232 = vector.load %arg14[%c0_85, %c128_86] : memref<32x512xf32, #tpu.memory_space<vmem>>, vector<1x320xf32>
    %233 = vector.broadcast %231 : vector<4x1xf32> to vector<4x320xf32>
    %234 = vector.broadcast %232 : vector<1x320xf32> to vector<4x320xf32>
    %235 = arith.mulf %233, %234 : vector<4x320xf32>
    %236 = arith.addf %229, %235 : vector<4x320xf32>
    %237 = vector.extract_strided_slice %141 {offsets = [13, 0, 0], sizes = [1, 4, 1], strides = [1, 1, 1]} : vector<25x4x1xf32> to vector<1x4x1xf32>
    %238 = vector.shape_cast %237 : vector<1x4x1xf32> to vector<4x1xf32>
    %c0_87 = arith.constant 0 : index
    %c129_88 = arith.constant 129 : index
    %239 = vector.load %arg14[%c0_87, %c129_88] : memref<32x512xf32, #tpu.memory_space<vmem>>, vector<1x320xf32>
    %240 = vector.broadcast %238 : vector<4x1xf32> to vector<4x320xf32>
    %241 = vector.broadcast %239 : vector<1x320xf32> to vector<4x320xf32>
    %242 = arith.mulf %240, %241 : vector<4x320xf32>
    %243 = arith.addf %236, %242 : vector<4x320xf32>
    %244 = vector.extract_strided_slice %141 {offsets = [14, 0, 0], sizes = [1, 4, 1], strides = [1, 1, 1]} : vector<25x4x1xf32> to vector<1x4x1xf32>
    %245 = vector.shape_cast %244 : vector<1x4x1xf32> to vector<4x1xf32>
    %c0_89 = arith.constant 0 : index
    %c130 = arith.constant 130 : index
    %246 = vector.load %arg14[%c0_89, %c130] : memref<32x512xf32, #tpu.memory_space<vmem>>, vector<1x320xf32>
    %247 = vector.broadcast %245 : vector<4x1xf32> to vector<4x320xf32>
    %248 = vector.broadcast %246 : vector<1x320xf32> to vector<4x320xf32>
    %249 = arith.mulf %247, %248 : vector<4x320xf32>
    %250 = arith.addf %243, %249 : vector<4x320xf32>
    %251 = vector.extract_strided_slice %141 {offsets = [15, 0, 0], sizes = [1, 4, 1], strides = [1, 1, 1]} : vector<25x4x1xf32> to vector<1x4x1xf32>
    %252 = vector.shape_cast %251 : vector<1x4x1xf32> to vector<4x1xf32>
    %c0_90 = arith.constant 0 : index
    %c146 = arith.constant 146 : index
    %253 = vector.load %arg14[%c0_90, %c146] : memref<32x512xf32, #tpu.memory_space<vmem>>, vector<1x320xf32>
    %254 = vector.broadcast %252 : vector<4x1xf32> to vector<4x320xf32>
    %255 = vector.broadcast %253 : vector<1x320xf32> to vector<4x320xf32>
    %256 = arith.mulf %254, %255 : vector<4x320xf32>
    %257 = arith.addf %250, %256 : vector<4x320xf32>
    %258 = vector.extract_strided_slice %141 {offsets = [16, 0, 0], sizes = [1, 4, 1], strides = [1, 1, 1]} : vector<25x4x1xf32> to vector<1x4x1xf32>
    %259 = vector.shape_cast %258 : vector<1x4x1xf32> to vector<4x1xf32>
    %c0_91 = arith.constant 0 : index
    %c147_92 = arith.constant 147 : index
    %260 = vector.load %arg14[%c0_91, %c147_92] : memref<32x512xf32, #tpu.memory_space<vmem>>, vector<1x320xf32>
    %261 = vector.broadcast %259 : vector<4x1xf32> to vector<4x320xf32>
    %262 = vector.broadcast %260 : vector<1x320xf32> to vector<4x320xf32>
    %263 = arith.mulf %261, %262 : vector<4x320xf32>
    %264 = arith.addf %257, %263 : vector<4x320xf32>
    %265 = vector.extract_strided_slice %141 {offsets = [17, 0, 0], sizes = [1, 4, 1], strides = [1, 1, 1]} : vector<25x4x1xf32> to vector<1x4x1xf32>
    %266 = vector.shape_cast %265 : vector<1x4x1xf32> to vector<4x1xf32>
    %c0_93 = arith.constant 0 : index
    %c148_94 = arith.constant 148 : index
    %267 = vector.load %arg14[%c0_93, %c148_94] : memref<32x512xf32, #tpu.memory_space<vmem>>, vector<1x320xf32>
    %268 = vector.broadcast %266 : vector<4x1xf32> to vector<4x320xf32>
    %269 = vector.broadcast %267 : vector<1x320xf32> to vector<4x320xf32>
    %270 = arith.mulf %268, %269 : vector<4x320xf32>
    %271 = arith.addf %264, %270 : vector<4x320xf32>
    %272 = vector.extract_strided_slice %141 {offsets = [18, 0, 0], sizes = [1, 4, 1], strides = [1, 1, 1]} : vector<25x4x1xf32> to vector<1x4x1xf32>
    %273 = vector.shape_cast %272 : vector<1x4x1xf32> to vector<4x1xf32>
    %c0_95 = arith.constant 0 : index
    %c149_96 = arith.constant 149 : index
    %274 = vector.load %arg14[%c0_95, %c149_96] : memref<32x512xf32, #tpu.memory_space<vmem>>, vector<1x320xf32>
    %275 = vector.broadcast %273 : vector<4x1xf32> to vector<4x320xf32>
    %276 = vector.broadcast %274 : vector<1x320xf32> to vector<4x320xf32>
    %277 = arith.mulf %275, %276 : vector<4x320xf32>
    %278 = arith.addf %271, %277 : vector<4x320xf32>
    %279 = vector.extract_strided_slice %141 {offsets = [19, 0, 0], sizes = [1, 4, 1], strides = [1, 1, 1]} : vector<25x4x1xf32> to vector<1x4x1xf32>
    %280 = vector.shape_cast %279 : vector<1x4x1xf32> to vector<4x1xf32>
    %c0_97 = arith.constant 0 : index
    %c150 = arith.constant 150 : index
    %281 = vector.load %arg14[%c0_97, %c150] : memref<32x512xf32, #tpu.memory_space<vmem>>, vector<1x320xf32>
    %282 = vector.broadcast %280 : vector<4x1xf32> to vector<4x320xf32>
    %283 = vector.broadcast %281 : vector<1x320xf32> to vector<4x320xf32>
    %284 = arith.mulf %282, %283 : vector<4x320xf32>
    %285 = arith.addf %278, %284 : vector<4x320xf32>
    %286 = vector.extract_strided_slice %141 {offsets = [20, 0, 0], sizes = [1, 4, 1], strides = [1, 1, 1]} : vector<25x4x1xf32> to vector<1x4x1xf32>
    %287 = vector.shape_cast %286 : vector<1x4x1xf32> to vector<4x1xf32>
    %c0_98 = arith.constant 0 : index
    %c166 = arith.constant 166 : index
    %288 = vector.load %arg14[%c0_98, %c166] : memref<32x512xf32, #tpu.memory_space<vmem>>, vector<1x320xf32>
    %289 = vector.broadcast %287 : vector<4x1xf32> to vector<4x320xf32>
    %290 = vector.broadcast %288 : vector<1x320xf32> to vector<4x320xf32>
    %291 = arith.mulf %289, %290 : vector<4x320xf32>
    %292 = arith.addf %285, %291 : vector<4x320xf32>
    %293 = vector.extract_strided_slice %141 {offsets = [21, 0, 0], sizes = [1, 4, 1], strides = [1, 1, 1]} : vector<25x4x1xf32> to vector<1x4x1xf32>
    %294 = vector.shape_cast %293 : vector<1x4x1xf32> to vector<4x1xf32>
    %c0_99 = arith.constant 0 : index
    %c167 = arith.constant 167 : index
    %295 = vector.load %arg14[%c0_99, %c167] : memref<32x512xf32, #tpu.memory_space<vmem>>, vector<1x320xf32>
    %296 = vector.broadcast %294 : vector<4x1xf32> to vector<4x320xf32>
    %297 = vector.broadcast %295 : vector<1x320xf32> to vector<4x320xf32>
    %298 = arith.mulf %296, %297 : vector<4x320xf32>
    %299 = arith.addf %292, %298 : vector<4x320xf32>
    %300 = vector.extract_strided_slice %141 {offsets = [22, 0, 0], sizes = [1, 4, 1], strides = [1, 1, 1]} : vector<25x4x1xf32> to vector<1x4x1xf32>
    %301 = vector.shape_cast %300 : vector<1x4x1xf32> to vector<4x1xf32>
    %c0_100 = arith.constant 0 : index
    %c168 = arith.constant 168 : index
    %302 = vector.load %arg14[%c0_100, %c168] : memref<32x512xf32, #tpu.memory_space<vmem>>, vector<1x320xf32>
    %303 = vector.broadcast %301 : vector<4x1xf32> to vector<4x320xf32>
    %304 = vector.broadcast %302 : vector<1x320xf32> to vector<4x320xf32>
    %305 = arith.mulf %303, %304 : vector<4x320xf32>
    %306 = arith.addf %299, %305 : vector<4x320xf32>
    %307 = vector.extract_strided_slice %141 {offsets = [23, 0, 0], sizes = [1, 4, 1], strides = [1, 1, 1]} : vector<25x4x1xf32> to vector<1x4x1xf32>
    %308 = vector.shape_cast %307 : vector<1x4x1xf32> to vector<4x1xf32>
    %c0_101 = arith.constant 0 : index
    %c169 = arith.constant 169 : index
    %309 = vector.load %arg14[%c0_101, %c169] : memref<32x512xf32, #tpu.memory_space<vmem>>, vector<1x320xf32>
    %310 = vector.broadcast %308 : vector<4x1xf32> to vector<4x320xf32>
    %311 = vector.broadcast %309 : vector<1x320xf32> to vector<4x320xf32>
    %312 = arith.mulf %310, %311 : vector<4x320xf32>
    %313 = arith.addf %306, %312 : vector<4x320xf32>
    %314 = vector.extract_strided_slice %141 {offsets = [24, 0, 0], sizes = [1, 4, 1], strides = [1, 1, 1]} : vector<25x4x1xf32> to vector<1x4x1xf32>
    %315 = vector.shape_cast %314 : vector<1x4x1xf32> to vector<4x1xf32>
    %c0_102 = arith.constant 0 : index
    %c170 = arith.constant 170 : index
    %316 = vector.load %arg14[%c0_102, %c170] : memref<32x512xf32, #tpu.memory_space<vmem>>, vector<1x320xf32>
    %317 = vector.broadcast %315 : vector<4x1xf32> to vector<4x320xf32>
    %318 = vector.broadcast %316 : vector<1x320xf32> to vector<4x320xf32>
    %319 = arith.mulf %317, %318 : vector<4x320xf32>
    %320 = arith.addf %313, %319 : vector<4x320xf32>
    %321 = vector.broadcast %142 : vector<4x1xf32> to vector<4x320xf32>
    %322 = arith.addf %320, %321 : vector<4x320xf32>
    %323 = arith.addf %140, %322 : vector<4x320xf32>
    %c0_103 = arith.constant 0 : index
    %c0_104 = arith.constant 0 : index
    %c0_105 = arith.constant 0 : index
    %324 = vector.load %arg13[%c0_103, %c0_104, %c0_105] : memref<1x4x320xf32, #tpu.memory_space<vmem>>, vector<1x4x320xf32>
    %325 = vector.shape_cast %324 : vector<1x4x320xf32> to vector<4x320xf32>
    %326 = vector.shape_cast %323 : vector<4x320xf32> to vector<1x4x320xf32>
    tpu.vector_store %arg13[%c0_103, %c0_104, %c0_105], %326 {strides = array<i32>} : memref<1x4x320xf32, #tpu.memory_space<vmem>>, vector<1x4x320xf32>,
    return
  }
  func.func @transform_0(%arg0: i32) -> (i32, i32, i32) {
    %c0_i32 = arith.constant 0 : i32
    %c0_i32_0 = arith.constant 0 : i32
    %c0_i32_1 = arith.constant 0 : i32
    return %arg0, %c0_i32, %c0_i32_0 : i32, i32, i32
  }
  func.func @transform_1(%arg0: i32) -> (i32, i32) {
    %c0_i32 = arith.constant 0 : i32
    %c0_i32_0 = arith.constant 0 : i32
    %c0_i32_1 = arith.constant 0 : i32
    return %c0_i32, %c0_i32_0 : i32, i32
  }
  func.func @transform_2(%arg0: i32) -> (i32, i32, i32) {
    %c0_i32 = arith.constant 0 : i32
    %c0_i32_0 = arith.constant 0 : i32
    %c0_i32_1 = arith.constant 0 : i32
    %c0_i32_2 = arith.constant 0 : i32
    return %c0_i32, %c0_i32_0, %c0_i32_1 : i32, i32, i32
  }
  func.func @transform_3(%arg0: i32) -> (i32, i32) {
    %c0_i32 = arith.constant 0 : i32
    %c0_i32_0 = arith.constant 0 : i32
    %c0_i32_1 = arith.constant 0 : i32
    return %c0_i32, %c0_i32_0 : i32, i32
  }
  func.func @transform_4(%arg0: i32) -> (i32, i32, i32, i32) {
    %c0_i32 = arith.constant 0 : i32
    %c0_i32_0 = arith.constant 0 : i32
    %c0_i32_1 = arith.constant 0 : i32
    %c0_i32_2 = arith.constant 0 : i32
    %c0_i32_3 = arith.constant 0 : i32
    return %c0_i32, %c0_i32_0, %c0_i32_1, %c0_i32_2 : i32, i32, i32, i32
  }
  func.func @transform_5(%arg0: i32) -> (i32, i32, i32) {
    %c0_i32 = arith.constant 0 : i32
    %c0_i32_0 = arith.constant 0 : i32
    %c0_i32_1 = arith.constant 0 : i32
    %c0_i32_2 = arith.constant 0 : i32
    return %c0_i32, %c0_i32_0, %c0_i32_1 : i32, i32, i32
  }
  func.func @transform_6(%arg0: i32) -> (i32, i32, i32, i32) {
    %c0_i32 = arith.constant 0 : i32
    %c0_i32_0 = arith.constant 0 : i32
    %c0_i32_1 = arith.constant 0 : i32
    %c0_i32_2 = arith.constant 0 : i32
    %c0_i32_3 = arith.constant 0 : i32
    return %c0_i32, %c0_i32_0, %c0_i32_1, %c0_i32_2 : i32, i32, i32, i32
  }
  func.func @transform_7(%arg0: i32) -> (i32, i32, i32) {
    %c0_i32 = arith.constant 0 : i32
    %c0_i32_0 = arith.constant 0 : i32
    %c0_i32_1 = arith.constant 0 : i32
    %c0_i32_2 = arith.constant 0 : i32
    return %c0_i32, %c0_i32_0, %c0_i32_1 : i32, i32, i32
  }
  func.func @transform_8(%arg0: i32) -> (i32, i32, i32) {
    %c0_i32 = arith.constant 0 : i32
    %c0_i32_0 = arith.constant 0 : i32
    %c0_i32_1 = arith.constant 0 : i32
    %c0_i32_2 = arith.constant 0 : i32
    return %c0_i32, %c0_i32_0, %c0_i32_1 : i32, i32, i32
  }
  func.func @transform_9(%arg0: i32) -> (i32, i32) {
    %c0_i32 = arith.constant 0 : i32
    %c0_i32_0 = arith.constant 0 : i32
    %c0_i32_1 = arith.constant 0 : i32
    return %c0_i32, %c0_i32_0 : i32, i32
  }
  func.func @transform_10(%arg0: i32) -> (i32, i32, i32) {
    %c0_i32 = arith.constant 0 : i32
    %c0_i32_0 = arith.constant 0 : i32
    %c0_i32_1 = arith.constant 0 : i32
    %c0_i32_2 = arith.constant 0 : i32
    return %c0_i32, %c0_i32_0, %c0_i32_1 : i32, i32, i32
  }
  func.func @transform_11(%arg0: i32) -> (i32, i32) {
    %c0_i32 = arith.constant 0 : i32
    %c0_i32_0 = arith.constant 0 : i32
    %c0_i32_1 = arith.constant 0 : i32
    return %c0_i32, %c0_i32_0 : i32, i32
  }
  func.func @transform_12(%arg0: i32) -> (i32, i32, i32) {
    %c0_i32 = arith.constant 0 : i32
    %c0_i32_0 = arith.constant 0 : i32
    %c0_i32_1 = arith.constant 0 : i32
    return %arg0, %c0_i32, %c0_i32_0 : i32, i32, i32
  }
}

</mosaic_0001>

<llo_original>
// kernel: wdsr_forward.1
$region0: #{wdsr_forward.1}
  #allocation0 [shape = 'u32[]', space=smem, size = 0x4, offset = 0x4, fixed_abs, tag = 'smem constant byte address 0x4 - core index']
  #allocation1 [shape = 'u32[72,128]{1,0:T(1,128)}', space=vmem, size = 0x9000, scoped, tag = 'internal scratch']
  #allocation2 [shape = 'f32[32,512]{1,0:T(8,128)}', space=vmem, size = 0x10000, scoped, tag = 'scratch operand']
  %s0 = inlined_call_operand.vmem [shape: f32[2,1,320], index: 0, kind: input, shape index: {}]
  %s1 = inlined_call_operand.vmem [shape: f32[1,320], index: 1, kind: input, shape index: {}]
  %s2 = inlined_call_operand.vmem [shape: f32[9,16,1], index: 2, kind: input, shape index: {}]
  %s3 = inlined_call_operand.vmem [shape: f32[16,1], index: 3, kind: input, shape index: {}]
  %s4 = inlined_call_operand.vmem [shape: bf16[2,9,32,16], index: 4, kind: input, shape index: {}]
  %s5 = inlined_call_operand.vmem [shape: f32[2,32,1], index: 5, kind: input, shape index: {}]
  %s6 = inlined_call_operand.vmem [shape: bf16[2,9,16,32], index: 6, kind: input, shape index: {}]
  %s7 = inlined_call_operand.vmem [shape: f32[2,16,1], index: 7, kind: input, shape index: {}]
  %s8 = inlined_call_operand.vmem [shape: bf16[9,4,16], index: 8, kind: input, shape index: {}]
  %s9 = inlined_call_operand.vmem [shape: f32[4,1], index: 9, kind: input, shape index: {}]
  %s10 = inlined_call_operand.vmem [shape: f32[25,4,1], index: 10, kind: input, shape index: {}]
  %s11 = inlined_call_operand.vmem [shape: f32[4,1], index: 11, kind: input, shape index: {}]
  %s12 = inlined_call_operand.vmem [shape: f32[2,4,320], index: 12, kind: output, shape index: {}]
  %s13 = sld [smem:[#allocation0]]
  $region88: #{wdsr_forward.1} parent=0
    _
  %s15 = ssub.s32 1, %s13
  %s16 = scalar_select 0, %s15, %s13
  loop: start=0, step=1, limit=4
  $region2: #{wdsr_forward.1} parent=0 // loop_pre_header
    _
  $region3: #{wdsr_forward.1} parent=0 // loop_header
    %s18 = sphi 0, %s22
    %p19 = scmp.ge.s32.totalorder %s18, 4
    %s28 = sphi 0, %s30
    %s31 = sphi 0, %s28
    %s32 = sphi 0, %s31
    %s48 = sphi 0, %s32
    %s52 = sphi 0, %s52
    %s54 = sphi 0, %s52
    %s55 = sphi 0, %s54
    %s69 = sphi 0, %s55
    %s73 = sphi 0, %s73
    %s75 = sphi 0, %s73
    %s76 = sphi 0, %s75
    %s90 = sphi 0, %s76
    %s94 = sphi 0, %s94
    %s96 = sphi 0, %s94
    %s97 = sphi 0, %s96
    %s111 = sphi 0, %s97
    %s115 = sphi 0, %s115
    %s117 = sphi 0, %s115
    %s118 = sphi 0, %s117
    %s132 = sphi 0, %s118
    %s136 = sphi 0, %s136
    %s138 = sphi 0, %s136
    %s139 = sphi 0, %s138
    %s153 = sphi 0, %s139
    %s157 = sphi 0, %s157
    %s159 = sphi 0, %s157
    %s160 = sphi 0, %s159
    %s174 = sphi 0, %s160
    %s178 = sphi 0, %s178
    %s180 = sphi 0, %s178
    %s181 = sphi 0, %s180
    %s195 = sphi 0, %s181
    %s199 = sphi 0, %s199
    %s201 = sphi 0, %s199
    %s202 = sphi 0, %s201
    %s216 = sphi 0, %s202
    %s220 = sphi 0, %s220
    %s222 = sphi 0, %s220
    %s223 = sphi 0, %s222
    %s237 = sphi 0, %s223
    %s241 = sphi 0, %s241
    %s243 = sphi 0, %s241
    %s244 = sphi 0, %s243
    %s258 = sphi 0, %s244
    %s262 = sphi 0, %s262
    %s264 = sphi 0, %s262
    %s265 = sphi 0, %s264
    %s279 = sphi 0, %s265
    %s285 = sphi 0, %s287
    %s288 = sphi 0, %s285
    %s289 = sphi 0, %s288
    %s305 = sphi 0, %s289
  $region4: #{wdsr_forward.1} parent=0 // loop_header_branch
    %21 = sbr.rel (%p19) target = $region8
  $region5: #{wdsr_forward.1} parent=0 // loop_body
    %s23 = ssub.s32 %s18, 1
    %s24 = ssub.s32 %s18, 2
    %s25 = sadd.s32 %s18, 1
    %s26 = ssub.s32 %s18, %s25
    %p27 = scmp.eq.s32.totalorder %s26, 0
    %s29 = sadd.s32 %s28, 1
    %s30 = scalar_select %p27, %s28, %s29
    %p33 = pneg %p27
    %p34 = scmp.eq.s32.totalorder %s18, 1
    %p35 = por %p33, %p34
    %p36 = scmp.ne.s32.totalorder %s28, %s31
    %p37 = scmp.eq.s32.totalorder %s18, 0
    %p38 = por %p36, %p37
    %p39 = scmp.ne.s32.totalorder %s28, %s31
    %p40 = scmp.eq.s32.totalorder %s23, 1
    %p41 = por %p39, %p40
    %p42 = scmp.ne.s32.totalorder %s31, %s32
    %p43 = scmp.eq.s32.totalorder %s23, 0
    %p44 = por %p42, %p43
    %p45 = scmp.ne.s32.totalorder %s31, %s32
    %p46 = scmp.eq.s32.totalorder %s24, 1
    %p47 = por %p45, %p46
    %p49 = scmp.ne.s32.totalorder %s32, %s48
    %p50 = scmp.eq.s32.totalorder %s24, 0
    %p51 = por %p49, %p50
    %s53 = sadd.s32 %s52, 1
    %p56 = scmp.eq.s32.totalorder %s18, 1
    %p57 = scmp.ne.s32.totalorder %s52, %s54
    %p58 = scmp.eq.s32.totalorder %s18, 0
    %p59 = por %p57, %p58
    %p60 = scmp.ne.s32.totalorder %s52, %s54
    %p61 = scmp.eq.s32.totalorder %s23, 1
    %p62 = por %p60, %p61
    %p63 = scmp.ne.s32.totalorder %s54, %s55
    %p64 = scmp.eq.s32.totalorder %s23, 0
    %p65 = por %p63, %p64
    %p66 = scmp.ne.s32.totalorder %s54, %s55
    %p67 = scmp.eq.s32.totalorder %s24, 1
    %p68 = por %p66, %p67
    %p70 = scmp.ne.s32.totalorder %s55, %s69
    %p71 = scmp.eq.s32.totalorder %s24, 0
    %p72 = por %p70, %p71
    %s74 = sadd.s32 %s73, 1
    %p77 = scmp.eq.s32.totalorder %s18, 1
    %p78 = scmp.ne.s32.totalorder %s73, %s75
    %p79 = scmp.eq.s32.totalorder %s18, 0
    %p80 = por %p78, %p79
    %p81 = scmp.ne.s32.totalorder %s73, %s75
    %p82 = scmp.eq.s32.totalorder %s23, 1
    %p83 = por %p81, %p82
    %p84 = scmp.ne.s32.totalorder %s75, %s76
    %p85 = scmp.eq.s32.totalorder %s23, 0
    %p86 = por %p84, %p85
    %p87 = scmp.ne.s32.totalorder %s75, %s76
    %p88 = scmp.eq.s32.totalorder %s24, 1
    %p89 = por %p87, %p88
    %p91 = scmp.ne.s32.totalorder %s76, %s90
    %p92 = scmp.eq.s32.totalorder %s24, 0
    %p93 = por %p91, %p92
    %s95 = sadd.s32 %s94, 1
    %p98 = scmp.eq.s32.totalorder %s18, 1
    %p99 = scmp.ne.s32.totalorder %s94, %s96
    %p100 = scmp.eq.s32.totalorder %s18, 0
    %p101 = por %p99, %p100
    %p102 = scmp.ne.s32.totalorder %s94, %s96
    %p103 = scmp.eq.s32.totalorder %s23, 1
    %p104 = por %p102, %p103
    %p105 = scmp.ne.s32.totalorder %s96, %s97
    %p106 = scmp.eq.s32.totalorder %s23, 0
    %p107 = por %p105, %p106
    %p108 = scmp.ne.s32.totalorder %s96, %s97
    %p109 = scmp.eq.s32.totalorder %s24, 1
    %p110 = por %p108, %p109
    %p112 = scmp.ne.s32.totalorder %s97, %s111
    %p113 = scmp.eq.s32.totalorder %s24, 0
    %p114 = por %p112, %p113
    %s116 = sadd.s32 %s115, 1
    %p119 = scmp.eq.s32.totalorder %s18, 1
    %p120 = scmp.ne.s32.totalorder %s115, %s117
    %p121 = scmp.eq.s32.totalorder %s18, 0
    %p122 = por %p120, %p121
    %p123 = scmp.ne.s32.totalorder %s115, %s117
    %p124 = scmp.eq.s32.totalorder %s23, 1
    %p125 = por %p123, %p124
    %p126 = scmp.ne.s32.totalorder %s117, %s118
    %p127 = scmp.eq.s32.totalorder %s23, 0
    %p128 = por %p126, %p127
    %p129 = scmp.ne.s32.totalorder %s117, %s118
    %p130 = scmp.eq.s32.totalorder %s24, 1
    %p131 = por %p129, %p130
    %p133 = scmp.ne.s32.totalorder %s118, %s132
    %p134 = scmp.eq.s32.totalorder %s24, 0
    %p135 = por %p133, %p134
    %s137 = sadd.s32 %s136, 1
    %p140 = scmp.eq.s32.totalorder %s18, 1
    %p141 = scmp.ne.s32.totalorder %s136, %s138
    %p142 = scmp.eq.s32.totalorder %s18, 0
    %p143 = por %p141, %p142
    %p144 = scmp.ne.s32.totalorder %s136, %s138
    %p145 = scmp.eq.s32.totalorder %s23, 1
    %p146 = por %p144, %p145
    %p147 = scmp.ne.s32.totalorder %s138, %s139
    %p148 = scmp.eq.s32.totalorder %s23, 0
    %p149 = por %p147, %p148
    %p150 = scmp.ne.s32.totalorder %s138, %s139
    %p151 = scmp.eq.s32.totalorder %s24, 1
    %p152 = por %p150, %p151
    %p154 = scmp.ne.s32.totalorder %s139, %s153
    %p155 = scmp.eq.s32.totalorder %s24, 0
    %p156 = por %p154, %p155
    %s158 = sadd.s32 %s157, 1
    %p161 = scmp.eq.s32.totalorder %s18, 1
    %p162 = scmp.ne.s32.totalorder %s157, %s159
    %p163 = scmp.eq.s32.totalorder %s18, 0
    %p164 = por %p162, %p163
    %p165 = scmp.ne.s32.totalorder %s157, %s159
    %p166 = scmp.eq.s32.totalorder %s23, 1
    %p167 = por %p165, %p166
    %p168 = scmp.ne.s32.totalorder %s159, %s160
    %p169 = scmp.eq.s32.totalorder %s23, 0
    %p170 = por %p168, %p169
    %p171 = scmp.ne.s32.totalorder %s159, %s160
    %p172 = scmp.eq.s32.totalorder %s24, 1
    %p173 = por %p171, %p172
    %p175 = scmp.ne.s32.totalorder %s160, %s174
    %p176 = scmp.eq.s32.totalorder %s24, 0
    %p177 = por %p175, %p176
    %s179 = sadd.s32 %s178, 1
    %p182 = scmp.eq.s32.totalorder %s18, 1
    %p183 = scmp.ne.s32.totalorder %s178, %s180
    %p184 = scmp.eq.s32.totalorder %s18, 0
    %p185 = por %p183, %p184
    %p186 = scmp.ne.s32.totalorder %s178, %s180
    %p187 = scmp.eq.s32.totalorder %s23, 1
    %p188 = por %p186, %p187
    %p189 = scmp.ne.s32.totalorder %s180, %s181
    %p190 = scmp.eq.s32.totalorder %s23, 0
    %p191 = por %p189, %p190
    %p192 = scmp.ne.s32.totalorder %s180, %s181
    %p193 = scmp.eq.s32.totalorder %s24, 1
    %p194 = por %p192, %p193
    %p196 = scmp.ne.s32.totalorder %s181, %s195
    %p197 = scmp.eq.s32.totalorder %s24, 0
    %p198 = por %p196, %p197
    %s200 = sadd.s32 %s199, 1
    %p203 = scmp.eq.s32.totalorder %s18, 1
    %p204 = scmp.ne.s32.totalorder %s199, %s201
    %p205 = scmp.eq.s32.totalorder %s18, 0
    %p206 = por %p204, %p205
    %p207 = scmp.ne.s32.totalorder %s199, %s201
    %p208 = scmp.eq.s32.totalorder %s23, 1
    %p209 = por %p207, %p208
    %p210 = scmp.ne.s32.totalorder %s201, %s202
    %p211 = scmp.eq.s32.totalorder %s23, 0
    %p212 = por %p210, %p211
    %p213 = scmp.ne.s32.totalorder %s201, %s202
    %p214 = scmp.eq.s32.totalorder %s24, 1
    %p215 = por %p213, %p214
    %p217 = scmp.ne.s32.totalorder %s202, %s216
    %p218 = scmp.eq.s32.totalorder %s24, 0
    %p219 = por %p217, %p218
    %s221 = sadd.s32 %s220, 1
    %p224 = scmp.eq.s32.totalorder %s18, 1
    %p225 = scmp.ne.s32.totalorder %s220, %s222
    %p226 = scmp.eq.s32.totalorder %s18, 0
    %p227 = por %p225, %p226
    %p228 = scmp.ne.s32.totalorder %s220, %s222
    %p229 = scmp.eq.s32.totalorder %s23, 1
    %p230 = por %p228, %p229
    %p231 = scmp.ne.s32.totalorder %s222, %s223
    %p232 = scmp.eq.s32.totalorder %s23, 0
    %p233 = por %p231, %p232
    %p234 = scmp.ne.s32.totalorder %s222, %s223
    %p235 = scmp.eq.s32.totalorder %s24, 1
    %p236 = por %p234, %p235
    %p238 = scmp.ne.s32.totalorder %s223, %s237
    %p239 = scmp.eq.s32.totalorder %s24, 0
    %p240 = por %p238, %p239
    %s242 = sadd.s32 %s241, 1
    %p245 = scmp.eq.s32.totalorder %s18, 1
    %p246 = scmp.ne.s32.totalorder %s241, %s243
    %p247 = scmp.eq.s32.totalorder %s18, 0
    %p248 = por %p246, %p247
    %p249 = scmp.ne.s32.totalorder %s241, %s243
    %p250 = scmp.eq.s32.totalorder %s23, 1
    %p251 = por %p249, %p250
    %p252 = scmp.ne.s32.totalorder %s243, %s244
    %p253 = scmp.eq.s32.totalorder %s23, 0
    %p254 = por %p252, %p253
    %p255 = scmp.ne.s32.totalorder %s243, %s244
    %p256 = scmp.eq.s32.totalorder %s24, 1
    %p257 = por %p255, %p256
    %p259 = scmp.ne.s32.totalorder %s244, %s258
    %p260 = scmp.eq.s32.totalorder %s24, 0
    %p261 = por %p259, %p260
    %s263 = sadd.s32 %s262, 1
    %p266 = scmp.eq.s32.totalorder %s18, 1
    %p267 = scmp.ne.s32.totalorder %s262, %s264
    %p268 = scmp.eq.s32.totalorder %s18, 0
    %p269 = por %p267, %p268
    %p270 = scmp.ne.s32.totalorder %s262, %s264
    %p271 = scmp.eq.s32.totalorder %s23, 1
    %p272 = por %p270, %p271
    %p273 = scmp.ne.s32.totalorder %s264, %s265
    %p274 = scmp.eq.s32.totalorder %s23, 0
    %p275 = por %p273, %p274
    %p276 = scmp.ne.s32.totalorder %s264, %s265
    %p277 = scmp.eq.s32.totalorder %s24, 1
    %p278 = por %p276, %p277
    %p280 = scmp.ne.s32.totalorder %s265, %s279
    %p281 = scmp.eq.s32.totalorder %s24, 0
    %p282 = por %p280, %p281
    %s283 = ssub.s32 %s18, %s25
    %p284 = scmp.eq.s32.totalorder %s283, 0
    %s286 = sadd.s32 %s285, 1
    %s287 = scalar_select %p284, %s285, %s286
    %p290 = pneg %p284
    %p291 = scmp.eq.s32.totalorder %s18, 1
    %p292 = por %p290, %p291
    %p293 = scmp.ne.s32.totalorder %s285, %s288
    %p294 = scmp.eq.s32.totalorder %s18, 0
    %p295 = por %p293, %p294
    %p296 = scmp.ne.s32.totalorder %s285, %s288
    %p297 = scmp.eq.s32.totalorder %s23, 1
    %p298 = por %p296, %p297
    %p299 = scmp.ne.s32.totalorder %s288, %s289
    %p300 = scmp.eq.s32.totalorder %s23, 0
    %p301 = por %p299, %p300
    %p302 = scmp.ne.s32.totalorder %s288, %s289
    %p303 = scmp.eq.s32.totalorder %s24, 1
    %p304 = por %p302, %p303
    %p306 = scmp.ne.s32.totalorder %s289, %s305
    %p307 = scmp.eq.s32.totalorder %s24, 0
    %p308 = por %p306, %p307
    %p309 = scmp.le.s32.totalorder 1, %s18
    %p310 = scmp.lt.s32.totalorder %s18, 3
    %p311 = pnand %p309, %p310
    %p312 = pneg %p311
    // Predicated region
    $region9: #{wdsr_forward.1} parent=5 // pred_check
      _
    $region10: #{wdsr_forward.1} parent=5 // pred_check_branch
      %314 = sbr.rel (%p311) target = $region12
    $region11: #{wdsr_forward.1} parent=5 // pred_region
      %s315 = ssub.s32 %s18, 1
      // Predicated region
      $region13: #{wdsr_forward.1} parent=11 // pred_check
        %p316 = pneg %p65
      $region14: #{wdsr_forward.1} parent=11 // pred_check_branch
        %318 = sbr.rel (%p316) target = $region16
      $region15: #{wdsr_forward.1} parent=11 // pred_region
        _
      $region16: #{wdsr_forward.1} parent=11 // pred_fallthru
        _
      // Predicated region
      $region17: #{wdsr_forward.1} parent=11 // pred_check
        %p319 = pneg %p86
      $region18: #{wdsr_forward.1} parent=11 // pred_check_branch
        %321 = sbr.rel (%p319) target = $region20
      $region19: #{wdsr_forward.1} parent=11 // pred_region
        _
      $region20: #{wdsr_forward.1} parent=11 // pred_fallthru
        _
      // Predicated region
      $region21: #{wdsr_forward.1} parent=11 // pred_check
        %p322 = pneg %p107
      $region22: #{wdsr_forward.1} parent=11 // pred_check_branch
        %324 = sbr.rel (%p322) target = $region24
      $region23: #{wdsr_forward.1} parent=11 // pred_region
        _
      $region24: #{wdsr_forward.1} parent=11 // pred_fallthru
        _
      // Predicated region
      $region25: #{wdsr_forward.1} parent=11 // pred_check
        %p325 = pneg %p128
      $region26: #{wdsr_forward.1} parent=11 // pred_check_branch
        %327 = sbr.rel (%p325) target = $region28
      $region27: #{wdsr_forward.1} parent=11 // pred_region
        _
      $region28: #{wdsr_forward.1} parent=11 // pred_fallthru
        _
      // Predicated region
      $region29: #{wdsr_forward.1} parent=11 // pred_check
        %p328 = pneg %p149
      $region30: #{wdsr_forward.1} parent=11 // pred_check_branch
        %330 = sbr.rel (%p328) target = $region32
      $region31: #{wdsr_forward.1} parent=11 // pred_region
        _
      $region32: #{wdsr_forward.1} parent=11 // pred_fallthru
        _
      // Predicated region
      $region33: #{wdsr_forward.1} parent=11 // pred_check
        %p331 = pneg %p170
      $region34: #{wdsr_forward.1} parent=11 // pred_check_branch
        %333 = sbr.rel (%p331) target = $region36
      $region35: #{wdsr_forward.1} parent=11 // pred_region
        _
      $region36: #{wdsr_forward.1} parent=11 // pred_fallthru
        _
      // Predicated region
      $region37: #{wdsr_forward.1} parent=11 // pred_check
        %p334 = pneg %p191
      $region38: #{wdsr_forward.1} parent=11 // pred_check_branch
        %336 = sbr.rel (%p334) target = $region40
      $region39: #{wdsr_forward.1} parent=11 // pred_region
        _
      $region40: #{wdsr_forward.1} parent=11 // pred_fallthru
        _
      // Predicated region
      $region41: #{wdsr_forward.1} parent=11 // pred_check
        %p337 = pneg %p212
      $region42: #{wdsr_forward.1} parent=11 // pred_check_branch
        %339 = sbr.rel (%p337) target = $region44
      $region43: #{wdsr_forward.1} parent=11 // pred_region
        _
      $region44: #{wdsr_forward.1} parent=11 // pred_fallthru
        _
      // Predicated region
      $region45: #{wdsr_forward.1} parent=11 // pred_check
        %p340 = pneg %p233
      $region46: #{wdsr_forward.1} parent=11 // pred_check_branch
        %342 = sbr.rel (%p340) target = $region48
      $region47: #{wdsr_forward.1} parent=11 // pred_region
        _
      $region48: #{wdsr_forward.1} parent=11 // pred_fallthru
        _
      // Predicated region
      $region49: #{wdsr_forward.1} parent=11 // pred_check
        %p343 = pneg %p254
      $region50: #{wdsr_forward.1} parent=11 // pred_check_branch
        %345 = sbr.rel (%p343) target = $region52
      $region51: #{wdsr_forward.1} parent=11 // pred_region
        _
      $region52: #{wdsr_forward.1} parent=11 // pred_fallthru
        _
      // Predicated region
      $region53: #{wdsr_forward.1} parent=11 // pred_check
        %p346 = pneg %p275
      $region54: #{wdsr_forward.1} parent=11 // pred_check_branch
        %348 = sbr.rel (%p346) target = $region56
      $region55: #{wdsr_forward.1} parent=11 // pred_region
        _
      $region56: #{wdsr_forward.1} parent=11 // pred_fallthru
        _
    $region12: #{wdsr_forward.1} parent=5 // pred_fallthru
      _
    %p349 = scmp.lt.s32.totalorder %s18, 2
    // Predicated region
    $region57: #{wdsr_forward.1} parent=5 // pred_check
      %p350 = pneg %p349
    $region58: #{wdsr_forward.1} parent=5 // pred_check_branch
      %352 = sbr.rel (%p350) target = $region60
    $region59: #{wdsr_forward.1} parent=5 // pred_region
      // Predicated region
      $region61: #{wdsr_forward.1} parent=59 // pred_check
        %p353 = pneg %p38
      $region62: #{wdsr_forward.1} parent=59 // pred_check_branch
        %355 = sbr.rel (%p353) target = $region64
      $region63: #{wdsr_forward.1} parent=59 // pred_region
        %p356 = scmp.lt.s32.totalorder %s18, 1
        %s357 = scalar_select %p356, %s18, 1
        %s358 = smul.addr %s357, 3
        %s359 = scalar_lea.vmem %s0, %s358
      $region64: #{wdsr_forward.1} parent=59 // pred_fallthru
        _
    $region60: #{wdsr_forward.1} parent=5 // pred_fallthru
      _
    %p360 = scmp.le.s32.totalorder 1, %s18
    %p361 = scmp.lt.s32.totalorder %s18, 3
    %p362 = pnand %p360, %p361
    %p363 = pneg %p362
    // Predicated region
    $region65: #{wdsr_forward.1} parent=5 // pred_check
      _
    $region66: #{wdsr_forward.1} parent=5 // pred_check_branch
      %365 = sbr.rel (%p362) target = $region68
    $region67: #{wdsr_forward.1} parent=5 // pred_region
      %s366 = ssub.s32 %s18, 1
      %p367 = scmp.lt.s32.totalorder %s23, 1
      %s368 = scalar_select %p367, %s23, 1
      %s369 = smul.addr %s368, 3
      %s370 = scalar_lea.vmem %s0, %s369
      %p371 = pneg %p44
      %p372 = pneg %p41
      %p373 = pneg %p65
      %p374 = pneg %p62
      %p375 = pneg %p86
      %p376 = pneg %p83
      %p377 = pneg %p107
      %p378 = pneg %p104
      %p379 = pneg %p128
      %p380 = pneg %p125
      %p381 = pneg %p149
      %p382 = pneg %p146
      %p383 = pneg %p170
      %p384 = pneg %p167
      %p385 = pneg %p191
      %p386 = pneg %p188
      %p387 = pneg %p212
      %p388 = pneg %p209
      %p389 = pneg %p233
      %p390 = pneg %p230
      %p391 = pneg %p254
      %p392 = pneg %p251
      %p393 = pneg %p275
      %p394 = pneg %p272
      %p395 = pneg %p301
      %p396 = pneg %p298
      %p397 = scmp.lt.s32.totalorder %s23, 1
      %s398 = scalar_select %p397, %s23, 1
      %s399 = smul.addr %s398, 3
      %s400 = smul.addr %s399, 4
      %s401 = scalar_lea.vmem %s12, %s400
      %p402 = scmp.lt.s32.totalorder %s23, 1
      %s403 = scalar_select %p402, %s23, 1
      %s404 = smul.addr %s403, 3
      %s405 = scalar_lea.vmem %s0, %s404
      %p406 = scmp.lt.s32.totalorder %s23, 1
      %s407 = scalar_select %p406, %s23, 1
      %s408 = smul.addr %s407, 3
      %s409 = smul.addr %s408, 4
      %s410 = scalar_lea.vmem %s12, %s409
      %v412 = vld [vmem:[%s1] sm:$0x7]
      %413 = vst [vmem:[#allocation2] sm:$0xff] 0.0
      %414 = vst [vmem:[#allocation2 + $0x20] sm:$0xff] 0.0
      %415 = vst [vmem:[#allocation2 + $0x40] sm:$0xff] 0.0
      %416 = vst [vmem:[#allocation2 + $0x60] sm:$0xff] 0.0
      %vm417 = vcmask 1048064
      %418 = vst.msk [vmem:[#allocation2 + $0x18] sm:$0xff] %vm417, 0.0
      %419 = vst.msk [vmem:[#allocation2 + $0x38] sm:$0xff] %vm417, 0.0
      %420 = vst.msk [vmem:[#allocation2 + $0x58] sm:$0xff] %vm417, 0.0
      %421 = vst.msk [vmem:[#allocation2 + $0x78] sm:$0xff] %vm417, 0.0
      %v422 = vld [vmem:[%s405] sm:$0x7]
      %v423 = vld [vmem:[%s2] sm:$0xff]
      %v424 = vld [vmem:[%s2 + $0x8] sm:$0xff]
      %v425 = vld [vmem:[%s2 + $0x10] sm:$0xff]
      %v426 = vld [vmem:[%s2 + $0x18] sm:$0xff]
      %v427 = vld [vmem:[%s2 + $0x20] sm:$0xff]
      %v428 = vld [vmem:[%s2 + $0x28] sm:$0xff]
      %v429 = vld [vmem:[%s2 + $0x30] sm:$0xff]
      %v430 = vld [vmem:[%s2 + $0x38] sm:$0xff]
      %v431 = vld [vmem:[%s2 + $0x40] sm:$0xff]
      %v432 = vld [vmem:[%s2 + $0x48] sm:$0xff]
      %v433 = vld [vmem:[%s2 + $0x50] sm:$0xff]
      %v434 = vld [vmem:[%s2 + $0x58] sm:$0xff]
      %v435 = vld [vmem:[%s2 + $0x60] sm:$0xff]
      %v436 = vld [vmem:[%s2 + $0x68] sm:$0xff]
      %v437 = vld [vmem:[%s2 + $0x70] sm:$0xff]
      %v438 = vld [vmem:[%s2 + $0x78] sm:$0xff]
      %v439 = vld [vmem:[%s2 + $0x80] sm:$0xff]
      %v440 = vld [vmem:[%s2 + $0x88] sm:$0xff]
      %v441 = vld [vmem:[%s3] sm:$0xff]
      %v442 = vld [vmem:[%s3 + $0x8] sm:$0xff]
      %v443 = vmul.f32 %v422, %v412
      %v444 = vlaneseq
      %vm445 = vcmp.ge.s32.totalorder %v444, 0
      %vm446 = vcmp.lt.s32.totalorder %v444, 320
      %vm447 = vmand %vm445, %vm446
      %s448 = scalar_lea.vmem [#allocation2], 8
      %449 = vst.msk [vmem:[%s448] ss:$8 sm:$0x7] %vm447, %v443
      %450 = vst.msk [vmem:[%s448] ss:$8 sm:$0x0] %vm447, %v443
      %v451 = vld [vmem:[#allocation2] ss:$8 sm:$0xf]
      %453 = vset.pattern.permute.xlu0 0
      %454 = vperm.xlu0 %453, %v423
      %v455 = vpop.permute.xlu0 %454
      %458 = vset.pattern.permute.xlu0 0
      %459 = vperm.xlu0 %458, %v424
      %v460 = vpop.permute.xlu0 %459
      %v463 = vperm.slane %v451, 0
      %v464 = vperm.slane %v451, 1
      %v465 = vperm.slane %v451, 2
      %v466 = vperm.slane %v451, 3
      %v471 = vmul.f32 %v455, %v463
      %v472 = vmul.f32 %v455, %v464
      %v473 = vmul.f32 %v455, %v465
      %v474 = vmul.f32 %v455, %v466
      %v475 = vmul.f32 %v460, %v463
      %v476 = vmul.f32 %v460, %v464
      %v477 = vmul.f32 %v460, %v465
      %v478 = vmul.f32 %v460, %v466
      %v479 = vadd.f32 %v471, 0.0
      %v480 = vadd.f32 %v472, 0.0
      %v481 = vadd.f32 %v473, 0.0
      %v482 = vadd.f32 %v474, 0.0
      %v483 = vadd.f32 %v475, 0.0
      %v484 = vadd.f32 %v476, 0.0
      %v485 = vadd.f32 %v477, 0.0
      %v486 = vadd.f32 %v478, 0.0
      %488 = vset.pattern.permute.xlu0 0
      %489 = vperm.xlu0 %488, %v425
      %v490 = vpop.permute.xlu0 %489
      %493 = vset.pattern.permute.xlu0 0
      %494 = vperm.xlu0 %493, %v426
      %v495 = vpop.permute.xlu0 %494
      %v497 = vmul.f32 %v490, %v463
      %v498 = vmul.f32 %v490, %v464
      %v499 = vmul.f32 %v490, %v465
      %v500 = vmul.f32 %v490, %v466
      %v501 = vmul.f32 %v495, %v463
      %v502 = vmul.f32 %v495, %v464
      %v503 = vmul.f32 %v495, %v465
      %v504 = vmul.f32 %v495, %v466
      %513 = vrot.lane.b32.xlu0 %v497, 127
      %v514 = vpop.permute.xlu0 %513
      %515 = vrot.lane.b32.xlu0 %v498, 127
      %v516 = vpop.permute.xlu0 %515
      %517 = vrot.lane.b32.xlu0 %v499, 127
      %v518 = vpop.permute.xlu0 %517
      %519 = vrot.lane.b32.xlu0 %v500, 127
      %v520 = vpop.permute.xlu0 %519
      %521 = vrot.lane.b32.xlu0 %v501, 127
      %v522 = vpop.permute.xlu0 %521
      %523 = vrot.lane.b32.xlu0 %v502, 127
      %v524 = vpop.permute.xlu0 %523
      %525 = vrot.lane.b32.xlu0 %v503, 127
      %v526 = vpop.permute.xlu0 %525
      %527 = vrot.lane.b32.xlu0 %v504, 127
      %v528 = vpop.permute.xlu0 %527
      %vm529 = vcmask 1039360
      %v530 = vsel %vm529, %v514, %v516
      %v531 = vsel %vm529, %v516, %v518
      %v532 = vsel %vm529, %v518, %v520
      %v533 = vsel %vm529, %v522, %v524
      %v534 = vsel %vm529, %v524, %v526
      %v535 = vsel %vm529, %v526, %v528
      %v544 = vadd.f32 %v479, %v530
      %v545 = vadd.f32 %v480, %v531
      %v546 = vadd.f32 %v481, %v532
      %v547 = vadd.f32 %v482, %v520
      %v548 = vadd.f32 %v483, %v533
      %v549 = vadd.f32 %v484, %v534
      %v550 = vadd.f32 %v485, %v535
      %v551 = vadd.f32 %v486, %v528
      %553 = vset.pattern.permute.xlu0 0
      %554 = vperm.xlu0 %553, %v427
      %v555 = vpop.permute.xlu0 %554
      %558 = vset.pattern.permute.xlu0 0
      %559 = vperm.xlu0 %558, %v428
      %v560 = vpop.permute.xlu0 %559
      %v562 = vmul.f32 %v555, %v463
      %v563 = vmul.f32 %v555, %v464
      %v564 = vmul.f32 %v555, %v465
      %v565 = vmul.f32 %v555, %v466
      %v566 = vmul.f32 %v560, %v463
      %v567 = vmul.f32 %v560, %v464
      %v568 = vmul.f32 %v560, %v465
      %v569 = vmul.f32 %v560, %v466
      %578 = vrot.lane.b32.xlu0 %v562, 126
      %v579 = vpop.permute.xlu0 %578
      %580 = vrot.lane.b32.xlu0 %v563, 126
      %v581 = vpop.permute.xlu0 %580
      %582 = vrot.lane.b32.xlu0 %v564, 126
      %v583 = vpop.permute.xlu0 %582
      %584 = vrot.lane.b32.xlu0 %v565, 126
      %v585 = vpop.permute.xlu0 %584
      %586 = vrot.lane.b32.xlu0 %v566, 126
      %v587 = vpop.permute.xlu0 %586
      %588 = vrot.lane.b32.xlu0 %v567, 126
      %v589 = vpop.permute.xlu0 %588
      %590 = vrot.lane.b32.xlu0 %v568, 126
      %v591 = vpop.permute.xlu0 %590
      %592 = vrot.lane.b32.xlu0 %v569, 126
      %v593 = vpop.permute.xlu0 %592
      %vm594 = vcmask 1031168
      %v595 = vsel %vm594, %v579, %v581
      %v596 = vsel %vm594, %v581, %v583
      %v597 = vsel %vm594, %v583, %v585
      %v598 = vsel %vm594, %v587, %v589
      %v599 = vsel %vm594, %v589, %v591
      %v600 = vsel %vm594, %v591, %v593
      %v609 = vadd.f32 %v544, %v595
      %v610 = vadd.f32 %v545, %v596
      %v611 = vadd.f32 %v546, %v597
      %v612 = vadd.f32 %v547, %v585
      %v613 = vadd.f32 %v548, %v598
      %v614 = vadd.f32 %v549, %v599
      %v615 = vadd.f32 %v550, %v600
      %v616 = vadd.f32 %v551, %v593
      %618 = vset.pattern.permute.xlu0 0
      %619 = vperm.xlu0 %618, %v429
      %v620 = vpop.permute.xlu0 %619
      %623 = vset.pattern.permute.xlu0 0
      %624 = vperm.xlu0 %623, %v430
      %v625 = vpop.permute.xlu0 %624
      %v627 = vmul.f32 %v620, %v463
      %v628 = vmul.f32 %v620, %v464
      %v629 = vmul.f32 %v620, %v465
      %v630 = vmul.f32 %v620, %v466
      %v631 = vmul.f32 %v625, %v463
      %v632 = vmul.f32 %v625, %v464
      %v633 = vmul.f32 %v625, %v465
      %v634 = vmul.f32 %v625, %v466
      %643 = vrot.lane.b32.xlu0 %v627, 108
      %v644 = vpop.permute.xlu0 %643
      %645 = vrot.lane.b32.xlu0 %v628, 108
      %v646 = vpop.permute.xlu0 %645
      %647 = vrot.lane.b32.xlu0 %v629, 108
      %v648 = vpop.permute.xlu0 %647
      %649 = vrot.lane.b32.xlu0 %v630, 108
      %v650 = vpop.permute.xlu0 %649
      %651 = vrot.lane.b32.xlu0 %v631, 108
      %v652 = vpop.permute.xlu0 %651
      %653 = vrot.lane.b32.xlu0 %v632, 108
      %v654 = vpop.permute.xlu0 %653
      %655 = vrot.lane.b32.xlu0 %v633, 108
      %v656 = vpop.permute.xlu0 %655
      %657 = vrot.lane.b32.xlu0 %v634, 108
      %v658 = vpop.permute.xlu0 %657
      %vm659 = vcmask 883712
      %v660 = vsel %vm659, %v644, %v646
      %v661 = vsel %vm659, %v646, %v648
      %v662 = vsel %vm659, %v648, %v650
      %v663 = vsel %vm659, %v652, %v654
      %v664 = vsel %vm659, %v654, %v656
      %v665 = vsel %vm659, %v656, %v658
      %v674 = vadd.f32 %v609, %v660
      %v675 = vadd.f32 %v610, %v661
      %v676 = vadd.f32 %v611, %v662
      %v677 = vadd.f32 %v612, %v650
      %v678 = vadd.f32 %v613, %v663
      %v679 = vadd.f32 %v614, %v664
      %v680 = vadd.f32 %v615, %v665
      %v681 = vadd.f32 %v616, %v658
      %v682 = vld [vmem:[%s448] ss:$8 sm:$0x7]
      %684 = vset.pattern.permute.xlu0 0
      %685 = vperm.xlu0 %684, %v431
      %v686 = vpop.permute.xlu0 %685
      %689 = vset.pattern.permute.xlu0 0
      %690 = vperm.xlu0 %689, %v432
      %v691 = vpop.permute.xlu0 %690
      %v694 = vperm.slane %v682, 0
      %v695 = vperm.slane %v682, 1
      %v696 = vperm.slane %v682, 2
      %v700 = vmul.f32 %v686, %v694
      %v701 = vmul.f32 %v686, %v695
      %v702 = vmul.f32 %v686, %v696
      %v703 = vmul.f32 %v691, %v694
      %v704 = vmul.f32 %v691, %v695
      %v705 = vmul.f32 %v691, %v696
      %712 = vrot.lane.b32.xlu0 %v700, 107
      %v713 = vpop.permute.xlu0 %712
      %714 = vrot.lane.b32.xlu0 %v701, 107
      %v715 = vpop.permute.xlu0 %714
      %716 = vrot.lane.b32.xlu0 %v702, 107
      %v717 = vpop.permute.xlu0 %716
      %718 = vrot.lane.b32.xlu0 %v703, 107
      %v719 = vpop.permute.xlu0 %718
      %720 = vrot.lane.b32.xlu0 %v704, 107
      %v721 = vpop.permute.xlu0 %720
      %722 = vrot.lane.b32.xlu0 %v705, 107
      %v723 = vpop.permute.xlu0 %722
      %vm724 = vcmask 875520
      %v725 = vsel %vm724, %v713, %v715
      %v726 = vsel %vm724, %v715, %v717
      %v727 = vsel %vm724, %v719, %v721
      %v728 = vsel %vm724, %v721, %v723
      %v737 = vadd.f32 %v674, %v713
      %v738 = vadd.f32 %v675, %v725
      %v739 = vadd.f32 %v676, %v726
      %v740 = vadd.f32 %v677, %v717
      %v741 = vadd.f32 %v678, %v719
      %v742 = vadd.f32 %v679, %v727
      %v743 = vadd.f32 %v680, %v728
      %v744 = vadd.f32 %v681, %v723
      %746 = vset.pattern.permute.xlu0 0
      %747 = vperm.xlu0 %746, %v433
      %v748 = vpop.permute.xlu0 %747
      %751 = vset.pattern.permute.xlu0 0
      %752 = vperm.xlu0 %751, %v434
      %v753 = vpop.permute.xlu0 %752
      %v755 = vmul.f32 %v748, %v694
      %v756 = vmul.f32 %v748, %v695
      %v757 = vmul.f32 %v748, %v696
      %v758 = vmul.f32 %v753, %v694
      %v759 = vmul.f32 %v753, %v695
      %v760 = vmul.f32 %v753, %v696
      %767 = vrot.lane.b32.xlu0 %v755, 106
      %v768 = vpop.permute.xlu0 %767
      %769 = vrot.lane.b32.xlu0 %v756, 106
      %v770 = vpop.permute.xlu0 %769
      %771 = vrot.lane.b32.xlu0 %v757, 106
      %v772 = vpop.permute.xlu0 %771
      %773 = vrot.lane.b32.xlu0 %v758, 106
      %v774 = vpop.permute.xlu0 %773
      %775 = vrot.lane.b32.xlu0 %v759, 106
      %v776 = vpop.permute.xlu0 %775
      %777 = vrot.lane.b32.xlu0 %v760, 106
      %v778 = vpop.permute.xlu0 %777
      %vm779 = vcmask 867328
      %v780 = vsel %vm779, %v768, %v770
      %v781 = vsel %vm779, %v770, %v772
      %v782 = vsel %vm779, %v774, %v776
      %v783 = vsel %vm779, %v776, %v778
      %v792 = vadd.f32 %v737, %v768
      %v793 = vadd.f32 %v738, %v780
      %v794 = vadd.f32 %v739, %v781
      %v795 = vadd.f32 %v740, %v772
      %v796 = vadd.f32 %v741, %v774
      %v797 = vadd.f32 %v742, %v782
      %v798 = vadd.f32 %v743, %v783
      %v799 = vadd.f32 %v744, %v778
      %801 = vset.pattern.permute.xlu0 0
      %802 = vperm.xlu0 %801, %v435
      %v803 = vpop.permute.xlu0 %802
      %806 = vset.pattern.permute.xlu0 0
      %807 = vperm.xlu0 %806, %v436
      %v808 = vpop.permute.xlu0 %807
      %v810 = vmul.f32 %v803, %v694
      %v811 = vmul.f32 %v803, %v695
      %v812 = vmul.f32 %v803, %v696
      %v813 = vmul.f32 %v808, %v694
      %v814 = vmul.f32 %v808, %v695
      %v815 = vmul.f32 %v808, %v696
      %822 = vrot.lane.b32.xlu0 %v810, 88
      %v823 = vpop.permute.xlu0 %822
      %824 = vrot.lane.b32.xlu0 %v811, 88
      %v825 = vpop.permute.xlu0 %824
      %826 = vrot.lane.b32.xlu0 %v812, 88
      %v827 = vpop.permute.xlu0 %826
      %828 = vrot.lane.b32.xlu0 %v813, 88
      %v829 = vpop.permute.xlu0 %828
      %830 = vrot.lane.b32.xlu0 %v814, 88
      %v831 = vpop.permute.xlu0 %830
      %832 = vrot.lane.b32.xlu0 %v815, 88
      %v833 = vpop.permute.xlu0 %832
      %vm834 = vcmask 719872
      %v835 = vsel %vm834, %v823, %v825
      %v836 = vsel %vm834, %v825, %v827
      %v837 = vsel %vm834, %v829, %v831
      %v838 = vsel %vm834, %v831, %v833
      %v847 = vadd.f32 %v792, %v823
      %v848 = vadd.f32 %v793, %v835
      %v849 = vadd.f32 %v794, %v836
      %v850 = vadd.f32 %v795, %v827
      %v851 = vadd.f32 %v796, %v829
      %v852 = vadd.f32 %v797, %v837
      %v853 = vadd.f32 %v798, %v838
      %v854 = vadd.f32 %v799, %v833
      %856 = vset.pattern.permute.xlu0 0
      %857 = vperm.xlu0 %856, %v437
      %v858 = vpop.permute.xlu0 %857
      %861 = vset.pattern.permute.xlu0 0
      %862 = vperm.xlu0 %861, %v438
      %v863 = vpop.permute.xlu0 %862
      %v865 = vmul.f32 %v858, %v694
      %v866 = vmul.f32 %v858, %v695
      %v867 = vmul.f32 %v858, %v696
      %v868 = vmul.f32 %v863, %v694
      %v869 = vmul.f32 %v863, %v695
      %v870 = vmul.f32 %v863, %v696
      %877 = vrot.lane.b32.xlu0 %v865, 87
      %v878 = vpop.permute.xlu0 %877
      %879 = vrot.lane.b32.xlu0 %v866, 87
      %v880 = vpop.permute.xlu0 %879
      %881 = vrot.lane.b32.xlu0 %v867, 87
      %v882 = vpop.permute.xlu0 %881
      %883 = vrot.lane.b32.xlu0 %v868, 87
      %v884 = vpop.permute.xlu0 %883
      %885 = vrot.lane.b32.xlu0 %v869, 87
      %v886 = vpop.permute.xlu0 %885
      %887 = vrot.lane.b32.xlu0 %v870, 87
      %v888 = vpop.permute.xlu0 %887
      %vm889 = vcmask 711680
      %v890 = vsel %vm889, %v878, %v880
      %v891 = vsel %vm889, %v880, %v882
      %v892 = vsel %vm889, %v884, %v886
      %v893 = vsel %vm889, %v886, %v888
      %v902 = vadd.f32 %v847, %v878
      %v903 = vadd.f32 %v848, %v890
      %v904 = vadd.f32 %v849, %v891
      %v905 = vadd.f32 %v850, %v882
      %v906 = vadd.f32 %v851, %v884
      %v907 = vadd.f32 %v852, %v892
      %v908 = vadd.f32 %v853, %v893
      %v909 = vadd.f32 %v854, %v888
      %911 = vset.pattern.permute.xlu0 0
      %912 = vperm.xlu0 %911, %v439
      %v913 = vpop.permute.xlu0 %912
      %916 = vset.pattern.permute.xlu0 0
      %917 = vperm.xlu0 %916, %v440
      %v918 = vpop.permute.xlu0 %917
      %v920 = vmul.f32 %v913, %v694
      %v921 = vmul.f32 %v913, %v695
      %v922 = vmul.f32 %v913, %v696
      %v923 = vmul.f32 %v918, %v694
      %v924 = vmul.f32 %v918, %v695
      %v925 = vmul.f32 %v918, %v696
      %932 = vrot.lane.b32.xlu0 %v920, 86
      %v933 = vpop.permute.xlu0 %932
      %934 = vrot.lane.b32.xlu0 %v921, 86
      %v935 = vpop.permute.xlu0 %934
      %936 = vrot.lane.b32.xlu0 %v922, 86
      %v937 = vpop.permute.xlu0 %936
      %938 = vrot.lane.b32.xlu0 %v923, 86
      %v939 = vpop.permute.xlu0 %938
      %940 = vrot.lane.b32.xlu0 %v924, 86
      %v941 = vpop.permute.xlu0 %940
      %942 = vrot.lane.b32.xlu0 %v925, 86
      %v943 = vpop.permute.xlu0 %942
      %vm944 = vcmask 703488
      %v945 = vsel %vm944, %v933, %v935
      %v946 = vsel %vm944, %v935, %v937
      %v947 = vsel %vm944, %v939, %v941
      %v948 = vsel %vm944, %v941, %v943
      %v957 = vadd.f32 %v902, %v933
      %v958 = vadd.f32 %v903, %v945
      %v959 = vadd.f32 %v904, %v946
      %v960 = vadd.f32 %v905, %v937
      %v961 = vadd.f32 %v906, %v939
      %v962 = vadd.f32 %v907, %v947
      %v963 = vadd.f32 %v908, %v948
      %v964 = vadd.f32 %v909, %v943
      %966 = vset.pattern.permute.xlu0 0
      %967 = vperm.xlu0 %966, %v441
      %v968 = vpop.permute.xlu0 %967
      %971 = vset.pattern.permute.xlu0 0
      %972 = vperm.xlu0 %971, %v442
      %v973 = vpop.permute.xlu0 %972
      %v975 = vadd.f32 %v957, %v968
      %v976 = vadd.f32 %v958, %v968
      %v977 = vadd.f32 %v959, %v968
      %v978 = vadd.f32 %v960, %v968
      %v979 = vadd.f32 %v961, %v973
      %v980 = vadd.f32 %v962, %v973
      %v981 = vadd.f32 %v963, %v973
      %v982 = vadd.f32 %v964, %v973
      %991 = vrot.lane.b32.xlu0 %v975, 21
      %v992 = vpop.permute.xlu0 %991
      %993 = vrot.lane.b32.xlu0 %v976, 21
      %v994 = vpop.permute.xlu0 %993
      %995 = vrot.lane.b32.xlu0 %v977, 21
      %v996 = vpop.permute.xlu0 %995
      %997 = vrot.lane.b32.xlu0 %v978, 21
      %v998 = vpop.permute.xlu0 %997
      %999 = vrot.lane.b32.xlu0 %v979, 21
      %v1000 = vpop.permute.xlu0 %999
      %1001 = vrot.lane.b32.xlu0 %v980, 21
      %v1002 = vpop.permute.xlu0 %1001
      %1003 = vrot.lane.b32.xlu0 %v981, 21
      %v1004 = vpop.permute.xlu0 %1003
      %1005 = vrot.lane.b32.xlu0 %v982, 21
      %v1006 = vpop.permute.xlu0 %1005
      %vm1007 = vcmask 171008
      %v1008 = vsel %vm1007, %v992, %v994
      %v1009 = vsel %vm1007, %v994, %v996
      %v1010 = vsel %vm1007, %v996, %v998
      %v1011 = vsel %vm1007, %v1000, %v1002
      %v1012 = vsel %vm1007, %v1002, %v1004
      %v1013 = vsel %vm1007, %v1004, %v1006
      loop: start=0, step=1, limit=2
      $region69: #{wdsr_forward.1} parent=67 // loop_pre_header
        _
      $region70: #{wdsr_forward.1} parent=67 // loop_header
        %s1021 = sphi 0, %s1025
        %p1022 = scmp.ge.s32.totalorder %s1021, 2
        %v1026 = vphi %v1008, %v2797
        %v1027 = vphi %v1009, %v2798
        %v1028 = vphi %v1010, %v2799
        %v1029 = vphi %v1011, %v2800
        %v1030 = vphi %v1012, %v2801
        %v1031 = vphi %v1013, %v2802
      $region71: #{wdsr_forward.1} parent=67 // loop_header_branch
        %1024 = sbr.rel (%p1022) target = $region75
      $region72: #{wdsr_forward.1} parent=67 // loop_body
        %s1032 = smul.u32 %s1021, 36
        %s1033 = smul.addr %s1032, 4
        %s1034 = scalar_lea.vmem %s4, %s1033
        %v1035 = vld [vmem:[%s1034] sm:$0xf]
        %v1036 = vld [vmem:[%s1034 + $0x4] sm:$0xf]
        %v1037 = vld [vmem:[%s1034 + $0x8] sm:$0xf]
        %v1038 = vld [vmem:[%s1034 + $0xc] sm:$0xf]
        %v1039 = vld [vmem:[%s1034 + $0x10] sm:$0xf]
        %v1040 = vld [vmem:[%s1034 + $0x14] sm:$0xf]
        %v1041 = vld [vmem:[%s1034 + $0x18] sm:$0xf]
        %v1042 = vld [vmem:[%s1034 + $0x1c] sm:$0xf]
        %v1043 = vld [vmem:[%s1034 + $0x20] sm:$0xf]
        %v1044 = vld [vmem:[%s1034 + $0x24] sm:$0xf]
        %v1045 = vld [vmem:[%s1034 + $0x28] sm:$0xf]
        %v1046 = vld [vmem:[%s1034 + $0x2c] sm:$0xf]
        %v1047 = vld [vmem:[%s1034 + $0x30] sm:$0xf]
        %v1048 = vld [vmem:[%s1034 + $0x34] sm:$0xf]
        %v1049 = vld [vmem:[%s1034 + $0x38] sm:$0xf]
        %v1050 = vld [vmem:[%s1034 + $0x3c] sm:$0xf]
        %v1051 = vld [vmem:[%s1034 + $0x40] sm:$0xf]
        %v1052 = vld [vmem:[%s1034 + $0x44] sm:$0xf]
        %v1053 = vld [vmem:[%s1034 + $0x48] sm:$0xf]
        %v1054 = vld [vmem:[%s1034 + $0x4c] sm:$0xf]
        %v1055 = vld [vmem:[%s1034 + $0x50] sm:$0xf]
        %v1056 = vld [vmem:[%s1034 + $0x54] sm:$0xf]
        %v1057 = vld [vmem:[%s1034 + $0x58] sm:$0xf]
        %v1058 = vld [vmem:[%s1034 + $0x5c] sm:$0xf]
        %v1059 = vld [vmem:[%s1034 + $0x60] sm:$0xf]
        %v1060 = vld [vmem:[%s1034 + $0x64] sm:$0xf]
        %v1061 = vld [vmem:[%s1034 + $0x68] sm:$0xf]
        %v1062 = vld [vmem:[%s1034 + $0x6c] sm:$0xf]
        %v1063 = vld [vmem:[%s1034 + $0x70] sm:$0xf]
        %v1064 = vld [vmem:[%s1034 + $0x74] sm:$0xf]
        %v1065 = vld [vmem:[%s1034 + $0x78] sm:$0xf]
        %v1066 = vld [vmem:[%s1034 + $0x7c] sm:$0xf]
        %v1067 = vld [vmem:[%s1034 + $0x80] sm:$0xf]
        %v1068 = vld [vmem:[%s1034 + $0x84] sm:$0xf]
        %v1069 = vld [vmem:[%s1034 + $0x88] sm:$0xf]
        %v1070 = vld [vmem:[%s1034 + $0x8c] sm:$0xf]
        %s1071 = smul.u32 %s1021, 32
        %s1072 = scalar_lea.vmem %s5, %s1071
        %v1073 = vld [vmem:[%s1072] sm:$0xff]
        %v1074 = vld [vmem:[%s1072 + $0x8] sm:$0xff]
        %v1075 = vld [vmem:[%s1072 + $0x10] sm:$0xff]
        %v1076 = vld [vmem:[%s1072 + $0x18] sm:$0xff]
        %v1078 = vperm.slane %v412, 0
        %v1079 = vperm.slane %v412, 1
        %v1080 = vperm.slane %v412, 2
        %v1084 = vmul.f32 %v1026, %v1078
        %v1085 = vmul.f32 %v1027, %v1079
        %v1086 = vmul.f32 %v1028, %v1080
        %v1087 = vmul.f32 %v1029, %v1078
        %v1088 = vmul.f32 %v1030, %v1079
        %v1089 = vmul.f32 %v1031, %v1080
        %1090 = vst [vmem:[#allocation2 + $0x8] sm:$0xff] %v1084
        %1091 = vst [vmem:[#allocation2 + $0x10] sm:$0xff] %v1085
        %vm1092 = vcmask 523264
        %1093 = vst.msk [vmem:[#allocation2 + $0x18] sm:$0xff] %vm1092, %v1086
        %1094 = vst [vmem:[#allocation2 + $0x28] sm:$0xff] %v1087
        %1095 = vst [vmem:[#allocation2 + $0x30] sm:$0xff] %v1088
        %1096 = vst.msk [vmem:[#allocation2 + $0x38] sm:$0xff] %vm1092, %v1089
        %v1097 = vld [vmem:[#allocation2] sm:$0xff]
        %v1098 = vld [vmem:[#allocation2 + $0x8] sm:$0xff]
        %v1099 = vld [vmem:[#allocation2 + $0x10] sm:$0xff]
        %v1100 = vld [vmem:[#allocation2 + $0x18] sm:$0xff]
        %v1101 = vld [vmem:[#allocation2 + $0x20] sm:$0xff]
        %v1102 = vld [vmem:[#allocation2 + $0x28] sm:$0xff]
        %v1103 = vld [vmem:[#allocation2 + $0x30] sm:$0xff]
        %v1104 = vld [vmem:[#allocation2 + $0x38] sm:$0xff]
        %v1105 = vpack.c.bf16 %v1101, %v1097
        %v1106 = vpack.c.bf16 %v1102, %v1098
        %v1107 = vpack.c.bf16 %v1103, %v1099
        %v1108 = vpack.c.bf16 %v1104, %v1100
        %v1113 = vunpack.c.l.b16 %v1039
        %v1114 = vunpack.c.l.b16 %v1040
        %v1115 = vunpack.c.l.b16 %v1041
        %v1116 = vunpack.c.l.b16 %v1042
        %v1117 = vpack.c.b16 %v1114, %v1113
        %v1118 = vpack.c.b16 %v1116, %v1115
        %1123 = vrot.lane.b32.xlu0 %v1105, 20
        %v1124 = vpop.permute.xlu0 %1123
        %1125 = vrot.lane.b32.xlu0 %v1106, 20
        %v1126 = vpop.permute.xlu0 %1125
        %1127 = vrot.lane.b32.xlu0 %v1107, 20
        %v1128 = vpop.permute.xlu0 %1127
        %1129 = vrot.lane.b32.xlu0 %v1108, 20
        %v1130 = vpop.permute.xlu0 %1129
        %vm1131 = vcmask 162816
        %v1132 = vsel %vm1131, %v1124, %v1126
        %v1133 = vsel %vm1131, %v1126, %v1128
        %v1134 = vsel %vm1131, %v1128, %v1130
        %vm1138 = vcmask 130048
        %v1140 = vsel %vm1138, %v1117, 0
        %v1143 = vsel %vm1138, %v1118, 0
        %1145 = vmatpush.bf16.msra.mxu0 0
        %1146 = vmatpush.bf16.msra.mxu0 0
        %1147 = vmatpush.bf16.msra.mxu0 0
        %1148 = vmatpush.bf16.msra.mxu0 0
        %1149 = vmatpush.bf16.msra.mxu0 0
        %1150 = vmatpush.bf16.msra.mxu0 0
        %1151 = vmatpush.bf16.msra.mxu0 0
        %1152 = vmatpush.bf16.msra.mxu0 %v1132
        %1153 = vmatmul.bf16.gmra.mxu0 %v1140
        %v1154 = vpop.f32.mrf.mxu0
        %v1155 = vadd.f32 0.0, %v1154
        %v1156 = vpop.f32.mrf.mxu0
        %v1157 = vadd.f32 0.0, %v1156
        %1158 = vmatmul.bf16.gmra.mxu0 %v1143
        %v1159 = vpop.f32.mrf.mxu0
        %v1160 = vadd.f32 0.0, %v1159
        %v1161 = vpop.f32.mrf.mxu0
        %v1162 = vadd.f32 0.0, %v1161
        %1163 = vdwg.mxu0
        %1164 = vmatpush.bf16.msra.mxu0 0
        %1165 = vmatpush.bf16.msra.mxu0 0
        %1166 = vmatpush.bf16.msra.mxu0 0
        %1167 = vmatpush.bf16.msra.mxu0 0
        %1168 = vmatpush.bf16.msra.mxu0 0
        %1169 = vmatpush.bf16.msra.mxu0 0
        %1170 = vmatpush.bf16.msra.mxu0 0
        %1171 = vmatpush.bf16.msra.mxu0 %v1133
        %1172 = vmatmul.bf16.gmra.mxu0 %v1140
        %v1173 = vpop.f32.mrf.mxu0
        %v1174 = vadd.f32 0.0, %v1173
        %v1175 = vpop.f32.mrf.mxu0
        %v1176 = vadd.f32 0.0, %v1175
        %1177 = vmatmul.bf16.gmra.mxu0 %v1143
        %v1178 = vpop.f32.mrf.mxu0
        %v1179 = vadd.f32 0.0, %v1178
        %v1180 = vpop.f32.mrf.mxu0
        %v1181 = vadd.f32 0.0, %v1180
        %1182 = vdwg.mxu0
        %1183 = vmatpush.bf16.msra.mxu0 0
        %1184 = vmatpush.bf16.msra.mxu0 0
        %1185 = vmatpush.bf16.msra.mxu0 0
        %1186 = vmatpush.bf16.msra.mxu0 0
        %1187 = vmatpush.bf16.msra.mxu0 0
        %1188 = vmatpush.bf16.msra.mxu0 0
        %1189 = vmatpush.bf16.msra.mxu0 0
        %1190 = vmatpush.bf16.msra.mxu0 %v1134
        %1191 = vmatmul.bf16.gmra.mxu0 %v1140
        %v1192 = vpop.f32.mrf.mxu0
        %v1193 = vadd.f32 0.0, %v1192
        %v1194 = vpop.f32.mrf.mxu0
        %v1195 = vadd.f32 0.0, %v1194
        %1196 = vmatmul.bf16.gmra.mxu0 %v1143
        %v1197 = vpop.f32.mrf.mxu0
        %v1198 = vadd.f32 0.0, %v1197
        %v1199 = vpop.f32.mrf.mxu0
        %v1200 = vadd.f32 0.0, %v1199
        %1201 = vdwg.mxu0
        %v1206 = vunpack.c.l.b16 %v1035
        %v1207 = vunpack.c.l.b16 %v1036
        %v1208 = vunpack.c.l.b16 %v1037
        %v1209 = vunpack.c.l.b16 %v1038
        %v1210 = vpack.c.b16 %v1207, %v1206
        %v1211 = vpack.c.b16 %v1209, %v1208
        %1212 = vrot.lane.b32.xlu0 %v1105, 21
        %v1213 = vpop.permute.xlu0 %1212
        %1214 = vrot.lane.b32.xlu0 %v1106, 21
        %v1215 = vpop.permute.xlu0 %1214
        %1216 = vrot.lane.b32.xlu0 %v1107, 21
        %v1217 = vpop.permute.xlu0 %1216
        %1218 = vrot.lane.b32.xlu0 %v1108, 21
        %v1219 = vpop.permute.xlu0 %1218
        %vm1220 = vcmask 171008
        %v1221 = vsel %vm1220, %v1213, %v1215
        %v1222 = vsel %vm1220, %v1215, %v1217
        %v1223 = vsel %vm1220, %v1217, %v1219
        %v1228 = vsel %vm1138, %v1210, 0
        %v1231 = vsel %vm1138, %v1211, 0
        %1233 = vmatpush.bf16.msra.mxu0 0
        %1234 = vmatpush.bf16.msra.mxu0 0
        %1235 = vmatpush.bf16.msra.mxu0 0
        %1236 = vmatpush.bf16.msra.mxu0 0
        %1237 = vmatpush.bf16.msra.mxu0 0
        %1238 = vmatpush.bf16.msra.mxu0 0
        %1239 = vmatpush.bf16.msra.mxu0 0
        %1240 = vmatpush.bf16.msra.mxu0 %v1221
        %1241 = vmatmul.bf16.gmra.mxu0 %v1228
        %v1242 = vpop.f32.mrf.mxu0
        %v1243 = vadd.f32 %v1155, %v1242
        %v1244 = vpop.f32.mrf.mxu0
        %v1245 = vadd.f32 %v1157, %v1244
        %1246 = vmatmul.bf16.gmra.mxu0 %v1231
        %v1247 = vpop.f32.mrf.mxu0
        %v1248 = vadd.f32 %v1160, %v1247
        %v1249 = vpop.f32.mrf.mxu0
        %v1250 = vadd.f32 %v1162, %v1249
        %1251 = vdwg.mxu0
        %1252 = vmatpush.bf16.msra.mxu0 0
        %1253 = vmatpush.bf16.msra.mxu0 0
        %1254 = vmatpush.bf16.msra.mxu0 0
        %1255 = vmatpush.bf16.msra.mxu0 0
        %1256 = vmatpush.bf16.msra.mxu0 0
        %1257 = vmatpush.bf16.msra.mxu0 0
        %1258 = vmatpush.bf16.msra.mxu0 0
        %1259 = vmatpush.bf16.msra.mxu0 %v1222
        %1260 = vmatmul.bf16.gmra.mxu0 %v1228
        %v1261 = vpop.f32.mrf.mxu0
        %v1262 = vadd.f32 %v1174, %v1261
        %v1263 = vpop.f32.mrf.mxu0
        %v1264 = vadd.f32 %v1176, %v1263
        %1265 = vmatmul.bf16.gmra.mxu0 %v1231
        %v1266 = vpop.f32.mrf.mxu0
        %v1267 = vadd.f32 %v1179, %v1266
        %v1268 = vpop.f32.mrf.mxu0
        %v1269 = vadd.f32 %v1181, %v1268
        %1270 = vdwg.mxu0
        %1271 = vmatpush.bf16.msra.mxu0 0
        %1272 = vmatpush.bf16.msra.mxu0 0
        %1273 = vmatpush.bf16.msra.mxu0 0
        %1274 = vmatpush.bf16.msra.mxu0 0
        %1275 = vmatpush.bf16.msra.mxu0 0
        %1276 = vmatpush.bf16.msra.mxu0 0
        %1277 = vmatpush.bf16.msra.mxu0 0
        %1278 = vmatpush.bf16.msra.mxu0 %v1223
        %1279 = vmatmul.bf16.gmra.mxu0 %v1228
        %v1280 = vpop.f32.mrf.mxu0
        %v1281 = vadd.f32 %v1193, %v1280
        %v1282 = vpop.f32.mrf.mxu0
        %v1283 = vadd.f32 %v1195, %v1282
        %1284 = vmatmul.bf16.gmra.mxu0 %v1231
        %v1285 = vpop.f32.mrf.mxu0
        %v1286 = vadd.f32 %v1198, %v1285
        %v1287 = vpop.f32.mrf.mxu0
        %v1288 = vadd.f32 %v1200, %v1287
        %1289 = vdwg.mxu0
        %v1294 = vunpack.c.l.b16 %v1043
        %v1295 = vunpack.c.l.b16 %v1044
        %v1296 = vunpack.c.l.b16 %v1045
        %v1297 = vunpack.c.l.b16 %v1046
        %v1298 = vpack.c.b16 %v1295, %v1294
        %v1299 = vpack.c.b16 %v1297, %v1296
        %1300 = vrot.lane.b32.xlu0 %v1105, 19
        %v1301 = vpop.permute.xlu0 %1300
        %1302 = vrot.lane.b32.xlu0 %v1106, 19
        %v1303 = vpop.permute.xlu0 %1302
        %1304 = vrot.lane.b32.xlu0 %v1107, 19
        %v1305 = vpop.permute.xlu0 %1304
        %1306 = vrot.lane.b32.xlu0 %v1108, 19
        %v1307 = vpop.permute.xlu0 %1306
        %vm1308 = vcmask 154624
        %v1309 = vsel %vm1308, %v1301, %v1303
        %v1310 = vsel %vm1308, %v1303, %v1305
        %v1311 = vsel %vm1308, %v1305, %v1307
        %v1316 = vsel %vm1138, %v1298, 0
        %v1319 = vsel %vm1138, %v1299, 0
        %1321 = vmatpush.bf16.msra.mxu0 0
        %1322 = vmatpush.bf16.msra.mxu0 0
        %1323 = vmatpush.bf16.msra.mxu0 0
        %1324 = vmatpush.bf16.msra.mxu0 0
        %1325 = vmatpush.bf16.msra.mxu0 0
        %1326 = vmatpush.bf16.msra.mxu0 0
        %1327 = vmatpush.bf16.msra.mxu0 0
        %1328 = vmatpush.bf16.msra.mxu0 %v1309
        %1329 = vmatmul.bf16.gmra.mxu0 %v1316
        %v1330 = vpop.f32.mrf.mxu0
        %v1331 = vadd.f32 0.0, %v1330
        %v1332 = vpop.f32.mrf.mxu0
        %v1333 = vadd.f32 0.0, %v1332
        %1334 = vmatmul.bf16.gmra.mxu0 %v1319
        %v1335 = vpop.f32.mrf.mxu0
        %v1336 = vadd.f32 0.0, %v1335
        %v1337 = vpop.f32.mrf.mxu0
        %v1338 = vadd.f32 0.0, %v1337
        %1339 = vdwg.mxu0
        %1340 = vmatpush.bf16.msra.mxu0 0
        %1341 = vmatpush.bf16.msra.mxu0 0
        %1342 = vmatpush.bf16.msra.mxu0 0
        %1343 = vmatpush.bf16.msra.mxu0 0
        %1344 = vmatpush.bf16.msra.mxu0 0
        %1345 = vmatpush.bf16.msra.mxu0 0
        %1346 = vmatpush.bf16.msra.mxu0 0
        %1347 = vmatpush.bf16.msra.mxu0 %v1310
        %1348 = vmatmul.bf16.gmra.mxu0 %v1316
        %v1349 = vpop.f32.mrf.mxu0
        %v1350 = vadd.f32 0.0, %v1349
        %v1351 = vpop.f32.mrf.mxu0
        %v1352 = vadd.f32 0.0, %v1351
        %1353 = vmatmul.bf16.gmra.mxu0 %v1319
        %v1354 = vpop.f32.mrf.mxu0
        %v1355 = vadd.f32 0.0, %v1354
        %v1356 = vpop.f32.mrf.mxu0
        %v1357 = vadd.f32 0.0, %v1356
        %1358 = vdwg.mxu0
        %1359 = vmatpush.bf16.msra.mxu0 0
        %1360 = vmatpush.bf16.msra.mxu0 0
        %1361 = vmatpush.bf16.msra.mxu0 0
        %1362 = vmatpush.bf16.msra.mxu0 0
        %1363 = vmatpush.bf16.msra.mxu0 0
        %1364 = vmatpush.bf16.msra.mxu0 0
        %1365 = vmatpush.bf16.msra.mxu0 0
        %1366 = vmatpush.bf16.msra.mxu0 %v1311
        %1367 = vmatmul.bf16.gmra.mxu0 %v1316
        %v1368 = vpop.f32.mrf.mxu0
        %v1369 = vadd.f32 0.0, %v1368
        %v1370 = vpop.f32.mrf.mxu0
        %v1371 = vadd.f32 0.0, %v1370
        %1372 = vmatmul.bf16.gmra.mxu0 %v1319
        %v1373 = vpop.f32.mrf.mxu0
        %v1374 = vadd.f32 0.0, %v1373
        %v1375 = vpop.f32.mrf.mxu0
        %v1376 = vadd.f32 0.0, %v1375
        %1377 = vdwg.mxu0
        %v1378 = vadd.f32 %v1243, %v1331
        %v1379 = vadd.f32 %v1262, %v1350
        %v1380 = vadd.f32 %v1281, %v1369
        %v1381 = vadd.f32 %v1245, %v1333
        %v1382 = vadd.f32 %v1264, %v1352
        %v1383 = vadd.f32 %v1283, %v1371
        %v1384 = vadd.f32 %v1248, %v1336
        %v1385 = vadd.f32 %v1267, %v1355
        %v1386 = vadd.f32 %v1286, %v1374
        %v1387 = vadd.f32 %v1250, %v1338
        %v1388 = vadd.f32 %v1269, %v1357
        %v1389 = vadd.f32 %v1288, %v1376
        %v1394 = vunpack.c.l.b16 %v1047
        %v1395 = vunpack.c.l.b16 %v1048
        %v1396 = vunpack.c.l.b16 %v1049
        %v1397 = vunpack.c.l.b16 %v1050
        %v1398 = vpack.c.b16 %v1395, %v1394
        %v1399 = vpack.c.b16 %v1397, %v1396
        %1400 = vrot.lane.b32.xlu0 %v1105, 1
        %v1401 = vpop.permute.xlu0 %1400
        %1402 = vrot.lane.b32.xlu0 %v1106, 1
        %v1403 = vpop.permute.xlu0 %1402
        %1404 = vrot.lane.b32.xlu0 %v1107, 1
        %v1405 = vpop.permute.xlu0 %1404
        %1406 = vrot.lane.b32.xlu0 %v1108, 1
        %v1407 = vpop.permute.xlu0 %1406
        %vm1408 = vcmask 7168
        %v1409 = vsel %vm1408, %v1401, %v1403
        %v1410 = vsel %vm1408, %v1403, %v1405
        %v1411 = vsel %vm1408, %v1405, %v1407
        %v1416 = vsel %vm1138, %v1398, 0
        %v1419 = vsel %vm1138, %v1399, 0
        %1421 = vmatpush.bf16.msra.mxu0 0
        %1422 = vmatpush.bf16.msra.mxu0 0
        %1423 = vmatpush.bf16.msra.mxu0 0
        %1424 = vmatpush.bf16.msra.mxu0 0
        %1425 = vmatpush.bf16.msra.mxu0 0
        %1426 = vmatpush.bf16.msra.mxu0 0
        %1427 = vmatpush.bf16.msra.mxu0 0
        %1428 = vmatpush.bf16.msra.mxu0 %v1409
        %1429 = vmatmul.bf16.gmra.mxu0 %v1416
        %v1430 = vpop.f32.mrf.mxu0
        %v1431 = vadd.f32 0.0, %v1430
        %v1432 = vpop.f32.mrf.mxu0
        %v1433 = vadd.f32 0.0, %v1432
        %1434 = vmatmul.bf16.gmra.mxu0 %v1419
        %v1435 = vpop.f32.mrf.mxu0
        %v1436 = vadd.f32 0.0, %v1435
        %v1437 = vpop.f32.mrf.mxu0
        %v1438 = vadd.f32 0.0, %v1437
        %1439 = vdwg.mxu0
        %1440 = vmatpush.bf16.msra.mxu0 0
        %1441 = vmatpush.bf16.msra.mxu0 0
        %1442 = vmatpush.bf16.msra.mxu0 0
        %1443 = vmatpush.bf16.msra.mxu0 0
        %1444 = vmatpush.bf16.msra.mxu0 0
        %1445 = vmatpush.bf16.msra.mxu0 0
        %1446 = vmatpush.bf16.msra.mxu0 0
        %1447 = vmatpush.bf16.msra.mxu0 %v1410
        %1448 = vmatmul.bf16.gmra.mxu0 %v1416
        %v1449 = vpop.f32.mrf.mxu0
        %v1450 = vadd.f32 0.0, %v1449
        %v1451 = vpop.f32.mrf.mxu0
        %v1452 = vadd.f32 0.0, %v1451
        %1453 = vmatmul.bf16.gmra.mxu0 %v1419
        %v1454 = vpop.f32.mrf.mxu0
        %v1455 = vadd.f32 0.0, %v1454
        %v1456 = vpop.f32.mrf.mxu0
        %v1457 = vadd.f32 0.0, %v1456
        %1458 = vdwg.mxu0
        %1459 = vmatpush.bf16.msra.mxu0 0
        %1460 = vmatpush.bf16.msra.mxu0 0
        %1461 = vmatpush.bf16.msra.mxu0 0
        %1462 = vmatpush.bf16.msra.mxu0 0
        %1463 = vmatpush.bf16.msra.mxu0 0
        %1464 = vmatpush.bf16.msra.mxu0 0
        %1465 = vmatpush.bf16.msra.mxu0 0
        %1466 = vmatpush.bf16.msra.mxu0 %v1411
        %1467 = vmatmul.bf16.gmra.mxu0 %v1416
        %v1468 = vpop.f32.mrf.mxu0
        %v1469 = vadd.f32 0.0, %v1468
        %v1470 = vpop.f32.mrf.mxu0
        %v1471 = vadd.f32 0.0, %v1470
        %1472 = vmatmul.bf16.gmra.mxu0 %v1419
        %v1473 = vpop.f32.mrf.mxu0
        %v1474 = vadd.f32 0.0, %v1473
        %v1475 = vpop.f32.mrf.mxu0
        %v1476 = vadd.f32 0.0, %v1475
        %1477 = vdwg.mxu0
        %v1478 = vadd.f32 %v1378, %v1431
        %v1479 = vadd.f32 %v1379, %v1450
        %v1480 = vadd.f32 %v1380, %v1469
        %v1481 = vadd.f32 %v1381, %v1433
        %v1482 = vadd.f32 %v1382, %v1452
        %v1483 = vadd.f32 %v1383, %v1471
        %v1484 = vadd.f32 %v1384, %v1436
        %v1485 = vadd.f32 %v1385, %v1455
        %v1486 = vadd.f32 %v1386, %v1474
        %v1487 = vadd.f32 %v1387, %v1438
        %v1488 = vadd.f32 %v1388, %v1457
        %v1489 = vadd.f32 %v1389, %v1476
        %v1494 = vunpack.c.l.b16 %v1051
        %v1495 = vunpack.c.l.b16 %v1052
        %v1496 = vunpack.c.l.b16 %v1053
        %v1497 = vunpack.c.l.b16 %v1054
        %v1498 = vpack.c.b16 %v1495, %v1494
        %v1499 = vpack.c.b16 %v1497, %v1496
        %v1501 = vsel %vm1138, %v1498, 0
        %v1504 = vsel %vm1138, %v1499, 0
        %1506 = vmatpush.bf16.msra.mxu0 0
        %1507 = vmatpush.bf16.msra.mxu0 0
        %1508 = vmatpush.bf16.msra.mxu0 0
        %1509 = vmatpush.bf16.msra.mxu0 0
        %1510 = vmatpush.bf16.msra.mxu0 0
        %1511 = vmatpush.bf16.msra.mxu0 0
        %1512 = vmatpush.bf16.msra.mxu0 0
        %1513 = vmatpush.bf16.msra.mxu0 %v1106
        %1514 = vmatmul.bf16.gmra.mxu0 %v1501
        %v1515 = vpop.f32.mrf.mxu0
        %v1516 = vadd.f32 0.0, %v1515
        %v1517 = vpop.f32.mrf.mxu0
        %v1518 = vadd.f32 0.0, %v1517
        %1519 = vmatmul.bf16.gmra.mxu0 %v1504
        %v1520 = vpop.f32.mrf.mxu0
        %v1521 = vadd.f32 0.0, %v1520
        %v1522 = vpop.f32.mrf.mxu0
        %v1523 = vadd.f32 0.0, %v1522
        %1524 = vdwg.mxu0
        %1525 = vmatpush.bf16.msra.mxu0 0
        %1526 = vmatpush.bf16.msra.mxu0 0
        %1527 = vmatpush.bf16.msra.mxu0 0
        %1528 = vmatpush.bf16.msra.mxu0 0
        %1529 = vmatpush.bf16.msra.mxu0 0
        %1530 = vmatpush.bf16.msra.mxu0 0
        %1531 = vmatpush.bf16.msra.mxu0 0
        %1532 = vmatpush.bf16.msra.mxu0 %v1107
        %1533 = vmatmul.bf16.gmra.mxu0 %v1501
        %v1534 = vpop.f32.mrf.mxu0
        %v1535 = vadd.f32 0.0, %v1534
        %v1536 = vpop.f32.mrf.mxu0
        %v1537 = vadd.f32 0.0, %v1536
        %1538 = vmatmul.bf16.gmra.mxu0 %v1504
        %v1539 = vpop.f32.mrf.mxu0
        %v1540 = vadd.f32 0.0, %v1539
        %v1541 = vpop.f32.mrf.mxu0
        %v1542 = vadd.f32 0.0, %v1541
        %1543 = vdwg.mxu0
        %1544 = vmatpush.bf16.msra.mxu0 0
        %1545 = vmatpush.bf16.msra.mxu0 0
        %1546 = vmatpush.bf16.msra.mxu0 0
        %1547 = vmatpush.bf16.msra.mxu0 0
        %1548 = vmatpush.bf16.msra.mxu0 0
        %1549 = vmatpush.bf16.msra.mxu0 0
        %1550 = vmatpush.bf16.msra.mxu0 0
        %1551 = vmatpush.bf16.msra.mxu0 %v1108
        %1552 = vmatmul.bf16.gmra.mxu0 %v1501
        %v1553 = vpop.f32.mrf.mxu0
        %v1554 = vadd.f32 0.0, %v1553
        %v1555 = vpop.f32.mrf.mxu0
        %v1556 = vadd.f32 0.0, %v1555
        %1557 = vmatmul.bf16.gmra.mxu0 %v1504
        %v1558 = vpop.f32.mrf.mxu0
        %v1559 = vadd.f32 0.0, %v1558
        %v1560 = vpop.f32.mrf.mxu0
        %v1561 = vadd.f32 0.0, %v1560
        %1562 = vdwg.mxu0
        %v1563 = vadd.f32 %v1478, %v1516
        %v1564 = vadd.f32 %v1479, %v1535
        %v1565 = vadd.f32 %v1480, %v1554
        %v1566 = vadd.f32 %v1481, %v1518
        %v1567 = vadd.f32 %v1482, %v1537
        %v1568 = vadd.f32 %v1483, %v1556
        %v1569 = vadd.f32 %v1484, %v1521
        %v1570 = vadd.f32 %v1485, %v1540
        %v1571 = vadd.f32 %v1486, %v1559
        %v1572 = vadd.f32 %v1487, %v1523
        %v1573 = vadd.f32 %v1488, %v1542
        %v1574 = vadd.f32 %v1489, %v1561
        %v1579 = vunpack.c.l.b16 %v1055
        %v1580 = vunpack.c.l.b16 %v1056
        %v1581 = vunpack.c.l.b16 %v1057
        %v1582 = vunpack.c.l.b16 %v1058
        %v1583 = vpack.c.b16 %v1580, %v1579
        %v1584 = vpack.c.b16 %v1582, %v1581
        %1585 = vrot.lane.b32.xlu0 %v1106, 127
        %v1586 = vpop.permute.xlu0 %1585
        %1587 = vrot.lane.b32.xlu0 %v1107, 127
        %v1588 = vpop.permute.xlu0 %1587
        %1589 = vrot.lane.b32.xlu0 %v1108, 127
        %v1590 = vpop.permute.xlu0 %1589
        %vm1591 = vcmask 1039360
        %v1592 = vsel %vm1591, %v1586, %v1588
        %v1593 = vsel %vm1591, %v1588, %v1590
        %v1598 = vsel %vm1138, %v1583, 0
        %v1601 = vsel %vm1138, %v1584, 0
        %1603 = vmatpush.bf16.msra.mxu0 0
        %1604 = vmatpush.bf16.msra.mxu0 0
        %1605 = vmatpush.bf16.msra.mxu0 0
        %1606 = vmatpush.bf16.msra.mxu0 0
        %1607 = vmatpush.bf16.msra.mxu0 0
        %1608 = vmatpush.bf16.msra.mxu0 0
        %1609 = vmatpush.bf16.msra.mxu0 0
        %1610 = vmatpush.bf16.msra.mxu0 %v1592
        %1611 = vmatmul.bf16.gmra.mxu0 %v1598
        %v1612 = vpop.f32.mrf.mxu0
        %v1613 = vadd.f32 0.0, %v1612
        %v1614 = vpop.f32.mrf.mxu0
        %v1615 = vadd.f32 0.0, %v1614
        %1616 = vmatmul.bf16.gmra.mxu0 %v1601
        %v1617 = vpop.f32.mrf.mxu0
        %v1618 = vadd.f32 0.0, %v1617
        %v1619 = vpop.f32.mrf.mxu0
        %v1620 = vadd.f32 0.0, %v1619
        %1621 = vdwg.mxu0
        %1622 = vmatpush.bf16.msra.mxu0 0
        %1623 = vmatpush.bf16.msra.mxu0 0
        %1624 = vmatpush.bf16.msra.mxu0 0
        %1625 = vmatpush.bf16.msra.mxu0 0
        %1626 = vmatpush.bf16.msra.mxu0 0
        %1627 = vmatpush.bf16.msra.mxu0 0
        %1628 = vmatpush.bf16.msra.mxu0 0
        %1629 = vmatpush.bf16.msra.mxu0 %v1593
        %1630 = vmatmul.bf16.gmra.mxu0 %v1598
        %v1631 = vpop.f32.mrf.mxu0
        %v1632 = vadd.f32 0.0, %v1631
        %v1633 = vpop.f32.mrf.mxu0
        %v1634 = vadd.f32 0.0, %v1633
        %1635 = vmatmul.bf16.gmra.mxu0 %v1601
        %v1636 = vpop.f32.mrf.mxu0
        %v1637 = vadd.f32 0.0, %v1636
        %v1638 = vpop.f32.mrf.mxu0
        %v1639 = vadd.f32 0.0, %v1638
        %1640 = vdwg.mxu0
        %1641 = vmatpush.bf16.msra.mxu0 0
        %1642 = vmatpush.bf16.msra.mxu0 0
        %1643 = vmatpush.bf16.msra.mxu0 0
        %1644 = vmatpush.bf16.msra.mxu0 0
        %1645 = vmatpush.bf16.msra.mxu0 0
        %1646 = vmatpush.bf16.msra.mxu0 0
        %1647 = vmatpush.bf16.msra.mxu0 0
        %1648 = vmatpush.bf16.msra.mxu0 %v1590
        %1649 = vmatmul.bf16.gmra.mxu0 %v1598
        %v1650 = vpop.f32.mrf.mxu0
        %v1651 = vadd.f32 0.0, %v1650
        %v1652 = vpop.f32.mrf.mxu0
        %v1653 = vadd.f32 0.0, %v1652
        %1654 = vmatmul.bf16.gmra.mxu0 %v1601
        %v1655 = vpop.f32.mrf.mxu0
        %v1656 = vadd.f32 0.0, %v1655
        %v1657 = vpop.f32.mrf.mxu0
        %v1658 = vadd.f32 0.0, %v1657
        %1659 = vdwg.mxu0
        %v1660 = vadd.f32 %v1563, %v1613
        %v1661 = vadd.f32 %v1564, %v1632
        %v1662 = vadd.f32 %v1565, %v1651
        %v1663 = vadd.f32 %v1566, %v1615
        %v1664 = vadd.f32 %v1567, %v1634
        %v1665 = vadd.f32 %v1568, %v1653
        %v1666 = vadd.f32 %v1569, %v1618
        %v1667 = vadd.f32 %v1570, %v1637
        %v1668 = vadd.f32 %v1571, %v1656
        %v1669 = vadd.f32 %v1572, %v1620
        %v1670 = vadd.f32 %v1573, %v1639
        %v1671 = vadd.f32 %v1574, %v1658
        %v1676 = vunpack.c.l.b16 %v1059
        %v1677 = vunpack.c.l.b16 %v1060
        %v1678 = vunpack.c.l.b16 %v1061
        %v1679 = vunpack.c.l.b16 %v1062
        %v1680 = vpack.c.b16 %v1677, %v1676
        %v1681 = vpack.c.b16 %v1679, %v1678
        %1682 = vrot.lane.b32.xlu0 %v1106, 109
        %v1683 = vpop.permute.xlu0 %1682
        %1684 = vrot.lane.b32.xlu0 %v1107, 109
        %v1685 = vpop.permute.xlu0 %1684
        %1686 = vrot.lane.b32.xlu0 %v1108, 109
        %v1687 = vpop.permute.xlu0 %1686
        %vm1688 = vcmask 891904
        %v1689 = vsel %vm1688, %v1683, %v1685
        %v1690 = vsel %vm1688, %v1685, %v1687
        %v1695 = vsel %vm1138, %v1680, 0
        %v1698 = vsel %vm1138, %v1681, 0
        %1700 = vmatpush.bf16.msra.mxu0 0
        %1701 = vmatpush.bf16.msra.mxu0 0
        %1702 = vmatpush.bf16.msra.mxu0 0
        %1703 = vmatpush.bf16.msra.mxu0 0
        %1704 = vmatpush.bf16.msra.mxu0 0
        %1705 = vmatpush.bf16.msra.mxu0 0
        %1706 = vmatpush.bf16.msra.mxu0 0
        %1707 = vmatpush.bf16.msra.mxu0 %v1689
        %1708 = vmatmul.bf16.gmra.mxu0 %v1695
        %v1709 = vpop.f32.mrf.mxu0
        %v1710 = vadd.f32 0.0, %v1709
        %v1711 = vpop.f32.mrf.mxu0
        %v1712 = vadd.f32 0.0, %v1711
        %1713 = vmatmul.bf16.gmra.mxu0 %v1698
        %v1714 = vpop.f32.mrf.mxu0
        %v1715 = vadd.f32 0.0, %v1714
        %v1716 = vpop.f32.mrf.mxu0
        %v1717 = vadd.f32 0.0, %v1716
        %1718 = vdwg.mxu0
        %1719 = vmatpush.bf16.msra.mxu0 0
        %1720 = vmatpush.bf16.msra.mxu0 0
        %1721 = vmatpush.bf16.msra.mxu0 0
        %1722 = vmatpush.bf16.msra.mxu0 0
        %1723 = vmatpush.bf16.msra.mxu0 0
        %1724 = vmatpush.bf16.msra.mxu0 0
        %1725 = vmatpush.bf16.msra.mxu0 0
        %1726 = vmatpush.bf16.msra.mxu0 %v1690
        %1727 = vmatmul.bf16.gmra.mxu0 %v1695
        %v1728 = vpop.f32.mrf.mxu0
        %v1729 = vadd.f32 0.0, %v1728
        %v1730 = vpop.f32.mrf.mxu0
        %v1731 = vadd.f32 0.0, %v1730
        %1732 = vmatmul.bf16.gmra.mxu0 %v1698
        %v1733 = vpop.f32.mrf.mxu0
        %v1734 = vadd.f32 0.0, %v1733
        %v1735 = vpop.f32.mrf.mxu0
        %v1736 = vadd.f32 0.0, %v1735
        %1737 = vdwg.mxu0
        %1738 = vmatpush.bf16.msra.mxu0 0
        %1739 = vmatpush.bf16.msra.mxu0 0
        %1740 = vmatpush.bf16.msra.mxu0 0
        %1741 = vmatpush.bf16.msra.mxu0 0
        %1742 = vmatpush.bf16.msra.mxu0 0
        %1743 = vmatpush.bf16.msra.mxu0 0
        %1744 = vmatpush.bf16.msra.mxu0 0
        %1745 = vmatpush.bf16.msra.mxu0 %v1687
        %1746 = vmatmul.bf16.gmra.mxu0 %v1695
        %v1747 = vpop.f32.mrf.mxu0
        %v1748 = vadd.f32 0.0, %v1747
        %v1749 = vpop.f32.mrf.mxu0
        %v1750 = vadd.f32 0.0, %v1749
        %1751 = vmatmul.bf16.gmra.mxu0 %v1698
        %v1752 = vpop.f32.mrf.mxu0
        %v1753 = vadd.f32 0.0, %v1752
        %v1754 = vpop.f32.mrf.mxu0
        %v1755 = vadd.f32 0.0, %v1754
        %1756 = vdwg.mxu0
        %v1757 = vadd.f32 %v1660, %v1710
        %v1758 = vadd.f32 %v1661, %v1729
        %v1759 = vadd.f32 %v1662, %v1748
        %v1760 = vadd.f32 %v1663, %v1712
        %v1761 = vadd.f32 %v1664, %v1731
        %v1762 = vadd.f32 %v1665, %v1750
        %v1763 = vadd.f32 %v1666, %v1715
        %v1764 = vadd.f32 %v1667, %v1734
        %v1765 = vadd.f32 %v1668, %v1753
        %v1766 = vadd.f32 %v1669, %v1717
        %v1767 = vadd.f32 %v1670, %v1736
        %v1768 = vadd.f32 %v1671, %v1755
        %v1773 = vunpack.c.l.b16 %v1063
        %v1774 = vunpack.c.l.b16 %v1064
        %v1775 = vunpack.c.l.b16 %v1065
        %v1776 = vunpack.c.l.b16 %v1066
        %v1777 = vpack.c.b16 %v1774, %v1773
        %v1778 = vpack.c.b16 %v1776, %v1775
        %1779 = vrot.lane.b32.xlu0 %v1106, 108
        %v1780 = vpop.permute.xlu0 %1779
        %1781 = vrot.lane.b32.xlu0 %v1107, 108
        %v1782 = vpop.permute.xlu0 %1781
        %1783 = vrot.lane.b32.xlu0 %v1108, 108
        %v1784 = vpop.permute.xlu0 %1783
        %vm1785 = vcmask 883712
        %v1786 = vsel %vm1785, %v1780, %v1782
        %v1787 = vsel %vm1785, %v1782, %v1784
        %v1792 = vsel %vm1138, %v1777, 0
        %v1795 = vsel %vm1138, %v1778, 0
        %1797 = vmatpush.bf16.msra.mxu0 0
        %1798 = vmatpush.bf16.msra.mxu0 0
        %1799 = vmatpush.bf16.msra.mxu0 0
        %1800 = vmatpush.bf16.msra.mxu0 0
        %1801 = vmatpush.bf16.msra.mxu0 0
        %1802 = vmatpush.bf16.msra.mxu0 0
        %1803 = vmatpush.bf16.msra.mxu0 0
        %1804 = vmatpush.bf16.msra.mxu0 %v1786
        %1805 = vmatmul.bf16.gmra.mxu0 %v1792
        %v1806 = vpop.f32.mrf.mxu0
        %v1807 = vadd.f32 0.0, %v1806
        %v1808 = vpop.f32.mrf.mxu0
        %v1809 = vadd.f32 0.0, %v1808
        %1810 = vmatmul.bf16.gmra.mxu0 %v1795
        %v1811 = vpop.f32.mrf.mxu0
        %v1812 = vadd.f32 0.0, %v1811
        %v1813 = vpop.f32.mrf.mxu0
        %v1814 = vadd.f32 0.0, %v1813
        %1815 = vdwg.mxu0
        %1816 = vmatpush.bf16.msra.mxu0 0
        %1817 = vmatpush.bf16.msra.mxu0 0
        %1818 = vmatpush.bf16.msra.mxu0 0
        %1819 = vmatpush.bf16.msra.mxu0 0
        %1820 = vmatpush.bf16.msra.mxu0 0
        %1821 = vmatpush.bf16.msra.mxu0 0
        %1822 = vmatpush.bf16.msra.mxu0 0
        %1823 = vmatpush.bf16.msra.mxu0 %v1787
        %1824 = vmatmul.bf16.gmra.mxu0 %v1792
        %v1825 = vpop.f32.mrf.mxu0
        %v1826 = vadd.f32 0.0, %v1825
        %v1827 = vpop.f32.mrf.mxu0
        %v1828 = vadd.f32 0.0, %v1827
        %1829 = vmatmul.bf16.gmra.mxu0 %v1795
        %v1830 = vpop.f32.mrf.mxu0
        %v1831 = vadd.f32 0.0, %v1830
        %v1832 = vpop.f32.mrf.mxu0
        %v1833 = vadd.f32 0.0, %v1832
        %1834 = vdwg.mxu0
        %1835 = vmatpush.bf16.msra.mxu0 0
        %1836 = vmatpush.bf16.msra.mxu0 0
        %1837 = vmatpush.bf16.msra.mxu0 0
        %1838 = vmatpush.bf16.msra.mxu0 0
        %1839 = vmatpush.bf16.msra.mxu0 0
        %1840 = vmatpush.bf16.msra.mxu0 0
        %1841 = vmatpush.bf16.msra.mxu0 0
        %1842 = vmatpush.bf16.msra.mxu0 %v1784
        %1843 = vmatmul.bf16.gmra.mxu0 %v1792
        %v1844 = vpop.f32.mrf.mxu0
        %v1845 = vadd.f32 0.0, %v1844
        %v1846 = vpop.f32.mrf.mxu0
        %v1847 = vadd.f32 0.0, %v1846
        %1848 = vmatmul.bf16.gmra.mxu0 %v1795
        %v1849 = vpop.f32.mrf.mxu0
        %v1850 = vadd.f32 0.0, %v1849
        %v1851 = vpop.f32.mrf.mxu0
        %v1852 = vadd.f32 0.0, %v1851
        %1853 = vdwg.mxu0
        %v1854 = vadd.f32 %v1757, %v1807
        %v1855 = vadd.f32 %v1758, %v1826
        %v1856 = vadd.f32 %v1759, %v1845
        %v1857 = vadd.f32 %v1760, %v1809
        %v1858 = vadd.f32 %v1761, %v1828
        %v1859 = vadd.f32 %v1762, %v1847
        %v1860 = vadd.f32 %v1763, %v1812
        %v1861 = vadd.f32 %v1764, %v1831
        %v1862 = vadd.f32 %v1765, %v1850
        %v1863 = vadd.f32 %v1766, %v1814
        %v1864 = vadd.f32 %v1767, %v1833
        %v1865 = vadd.f32 %v1768, %v1852
        %v1870 = vunpack.c.l.b16 %v1067
        %v1871 = vunpack.c.l.b16 %v1068
        %v1872 = vunpack.c.l.b16 %v1069
        %v1873 = vunpack.c.l.b16 %v1070
        %v1874 = vpack.c.b16 %v1871, %v1870
        %v1875 = vpack.c.b16 %v1873, %v1872
        %1876 = vrot.lane.b32.xlu0 %v1106, 107
        %v1877 = vpop.permute.xlu0 %1876
        %1878 = vrot.lane.b32.xlu0 %v1107, 107
        %v1879 = vpop.permute.xlu0 %1878
        %1880 = vrot.lane.b32.xlu0 %v1108, 107
        %v1881 = vpop.permute.xlu0 %1880
        %vm1882 = vcmask 875520
        %v1883 = vsel %vm1882, %v1877, %v1879
        %v1884 = vsel %vm1882, %v1879, %v1881
        %v1889 = vsel %vm1138, %v1874, 0
        %v1892 = vsel %vm1138, %v1875, 0
        %1894 = vmatpush.bf16.msra.mxu0 0
        %1895 = vmatpush.bf16.msra.mxu0 0
        %1896 = vmatpush.bf16.msra.mxu0 0
        %1897 = vmatpush.bf16.msra.mxu0 0
        %1898 = vmatpush.bf16.msra.mxu0 0
        %1899 = vmatpush.bf16.msra.mxu0 0
        %1900 = vmatpush.bf16.msra.mxu0 0
        %1901 = vmatpush.bf16.msra.mxu0 %v1883
        %1902 = vmatmul.bf16.gmra.mxu0 %v1889
        %v1903 = vpop.f32.mrf.mxu0
        %v1904 = vadd.f32 0.0, %v1903
        %v1905 = vpop.f32.mrf.mxu0
        %v1906 = vadd.f32 0.0, %v1905
        %1907 = vmatmul.bf16.gmra.mxu0 %v1892
        %v1908 = vpop.f32.mrf.mxu0
        %v1909 = vadd.f32 0.0, %v1908
        %v1910 = vpop.f32.mrf.mxu0
        %v1911 = vadd.f32 0.0, %v1910
        %1912 = vdwg.mxu0
        %1913 = vmatpush.bf16.msra.mxu0 0
        %1914 = vmatpush.bf16.msra.mxu0 0
        %1915 = vmatpush.bf16.msra.mxu0 0
        %1916 = vmatpush.bf16.msra.mxu0 0
        %1917 = vmatpush.bf16.msra.mxu0 0
        %1918 = vmatpush.bf16.msra.mxu0 0
        %1919 = vmatpush.bf16.msra.mxu0 0
        %1920 = vmatpush.bf16.msra.mxu0 %v1884
        %1921 = vmatmul.bf16.gmra.mxu0 %v1889
        %v1922 = vpop.f32.mrf.mxu0
        %v1923 = vadd.f32 0.0, %v1922
        %v1924 = vpop.f32.mrf.mxu0
        %v1925 = vadd.f32 0.0, %v1924
        %1926 = vmatmul.bf16.gmra.mxu0 %v1892
        %v1927 = vpop.f32.mrf.mxu0
        %v1928 = vadd.f32 0.0, %v1927
        %v1929 = vpop.f32.mrf.mxu0
        %v1930 = vadd.f32 0.0, %v1929
        %1931 = vdwg.mxu0
        %1932 = vmatpush.bf16.msra.mxu0 0
        %1933 = vmatpush.bf16.msra.mxu0 0
        %1934 = vmatpush.bf16.msra.mxu0 0
        %1935 = vmatpush.bf16.msra.mxu0 0
        %1936 = vmatpush.bf16.msra.mxu0 0
        %1937 = vmatpush.bf16.msra.mxu0 0
        %1938 = vmatpush.bf16.msra.mxu0 0
        %1939 = vmatpush.bf16.msra.mxu0 %v1881
        %1940 = vmatmul.bf16.gmra.mxu0 %v1889
        %v1941 = vpop.f32.mrf.mxu0
        %v1942 = vadd.f32 0.0, %v1941
        %v1943 = vpop.f32.mrf.mxu0
        %v1944 = vadd.f32 0.0, %v1943
        %1945 = vmatmul.bf16.gmra.mxu0 %v1892
        %v1946 = vpop.f32.mrf.mxu0
        %v1947 = vadd.f32 0.0, %v1946
        %v1948 = vpop.f32.mrf.mxu0
        %v1949 = vadd.f32 0.0, %v1948
        %1950 = vdwg.mxu0
        %v1951 = vadd.f32 %v1854, %v1904
        %v1952 = vadd.f32 %v1855, %v1923
        %v1953 = vadd.f32 %v1856, %v1942
        %v1954 = vadd.f32 %v1857, %v1906
        %v1955 = vadd.f32 %v1858, %v1925
        %v1956 = vadd.f32 %v1859, %v1944
        %v1957 = vadd.f32 %v1860, %v1909
        %v1958 = vadd.f32 %v1861, %v1928
        %v1959 = vadd.f32 %v1862, %v1947
        %v1960 = vadd.f32 %v1863, %v1911
        %v1961 = vadd.f32 %v1864, %v1930
        %v1962 = vadd.f32 %v1865, %v1949
        %1964 = vset.pattern.permute.xlu0 0
        %1965 = vperm.xlu0 %1964, %v1073
        %v1966 = vpop.permute.xlu0 %1965
        %1969 = vset.pattern.permute.xlu0 0
        %1970 = vperm.xlu0 %1969, %v1074
        %v1971 = vpop.permute.xlu0 %1970
        %1974 = vset.pattern.permute.xlu0 0
        %1975 = vperm.xlu0 %1974, %v1075
        %v1976 = vpop.permute.xlu0 %1975
        %1979 = vset.pattern.permute.xlu0 0
        %1980 = vperm.xlu0 %1979, %v1076
        %v1981 = vpop.permute.xlu0 %1980
        %v1983 = vadd.f32 %v1951, %v1966
        %v1984 = vadd.f32 %v1952, %v1966
        %v1985 = vadd.f32 %v1953, %v1966
        %v1986 = vadd.f32 %v1954, %v1971
        %v1987 = vadd.f32 %v1955, %v1971
        %v1988 = vadd.f32 %v1956, %v1971
        %v1989 = vadd.f32 %v1957, %v1976
        %v1990 = vadd.f32 %v1958, %v1976
        %v1991 = vadd.f32 %v1959, %v1976
        %v1992 = vadd.f32 %v1960, %v1981
        %v1993 = vadd.f32 %v1961, %v1981
        %v1994 = vadd.f32 %v1962, %v1981
        %v1995 = vmax.f32 %v1983, 0.0
        %v1996 = vmax.f32 %v1984, 0.0
        %v1997 = vmax.f32 %v1985, 0.0
        %v1998 = vmax.f32 %v1986, 0.0
        %v1999 = vmax.f32 %v1987, 0.0
        %v2000 = vmax.f32 %v1988, 0.0
        %v2001 = vmax.f32 %v1989, 0.0
        %v2002 = vmax.f32 %v1990, 0.0
        %v2003 = vmax.f32 %v1991, 0.0
        %v2004 = vmax.f32 %v1992, 0.0
        %v2005 = vmax.f32 %v1993, 0.0
        %v2006 = vmax.f32 %v1994, 0.0
        %s2007 = smul.u32 %s1021, 18
        %s2008 = smul.addr %s2007, 4
        %s2009 = scalar_lea.vmem %s6, %s2008
        %v2010 = vld [vmem:[%s2009] sm:$0xf]
        %v2011 = vld [vmem:[%s2009 + $0x4] sm:$0xf]
        %v2012 = vld [vmem:[%s2009 + $0x8] sm:$0xf]
        %v2013 = vld [vmem:[%s2009 + $0xc] sm:$0xf]
        %v2014 = vld [vmem:[%s2009 + $0x10] sm:$0xf]
        %v2015 = vld [vmem:[%s2009 + $0x14] sm:$0xf]
        %v2016 = vld [vmem:[%s2009 + $0x18] sm:$0xf]
        %v2017 = vld [vmem:[%s2009 + $0x1c] sm:$0xf]
        %v2018 = vld [vmem:[%s2009 + $0x20] sm:$0xf]
        %v2019 = vld [vmem:[%s2009 + $0x24] sm:$0xf]
        %v2020 = vld [vmem:[%s2009 + $0x28] sm:$0xf]
        %v2021 = vld [vmem:[%s2009 + $0x2c] sm:$0xf]
        %v2022 = vld [vmem:[%s2009 + $0x30] sm:$0xf]
        %v2023 = vld [vmem:[%s2009 + $0x34] sm:$0xf]
        %v2024 = vld [vmem:[%s2009 + $0x38] sm:$0xf]
        %v2025 = vld [vmem:[%s2009 + $0x3c] sm:$0xf]
        %v2026 = vld [vmem:[%s2009 + $0x40] sm:$0xf]
        %v2027 = vld [vmem:[%s2009 + $0x44] sm:$0xf]
        %s2028 = smul.u32 %s1021, 16
        %s2029 = scalar_lea.vmem %s7, %s2028
        %v2030 = vld [vmem:[%s2029] sm:$0xff]
        %v2031 = vld [vmem:[%s2029 + $0x8] sm:$0xff]
        %v2032 = vmul.f32 %v1995, %v1078
        %v2033 = vmul.f32 %v1996, %v1079
        %v2034 = vmul.f32 %v1997, %v1080
        %v2035 = vmul.f32 %v1998, %v1078
        %v2036 = vmul.f32 %v1999, %v1079
        %v2037 = vmul.f32 %v2000, %v1080
        %v2038 = vmul.f32 %v2001, %v1078
        %v2039 = vmul.f32 %v2002, %v1079
        %v2040 = vmul.f32 %v2003, %v1080
        %v2041 = vmul.f32 %v2004, %v1078
        %v2042 = vmul.f32 %v2005, %v1079
        %v2043 = vmul.f32 %v2006, %v1080
        %2044 = vst [vmem:[#allocation2 + $0x8] sm:$0xff] %v2032
        %2045 = vst [vmem:[#allocation2 + $0x10] sm:$0xff] %v2033
        %2046 = vst.msk [vmem:[#allocation2 + $0x18] sm:$0xff] %vm1092, %v2034
        %2047 = vst [vmem:[#allocation2 + $0x28] sm:$0xff] %v2035
        %2048 = vst [vmem:[#allocation2 + $0x30] sm:$0xff] %v2036
        %2049 = vst.msk [vmem:[#allocation2 + $0x38] sm:$0xff] %vm1092, %v2037
        %2050 = vst [vmem:[#allocation2 + $0x48] sm:$0xff] %v2038
        %2051 = vst [vmem:[#allocation2 + $0x50] sm:$0xff] %v2039
        %2052 = vst.msk [vmem:[#allocation2 + $0x58] sm:$0xff] %vm1092, %v2040
        %2053 = vst [vmem:[#allocation2 + $0x68] sm:$0xff] %v2041
        %2054 = vst [vmem:[#allocation2 + $0x70] sm:$0xff] %v2042
        %2055 = vst.msk [vmem:[#allocation2 + $0x78] sm:$0xff] %vm1092, %v2043
        %v2056 = vld [vmem:[#allocation2] sm:$0xff]
        %v2057 = vld [vmem:[#allocation2 + $0x8] sm:$0xff]
        %v2058 = vld [vmem:[#allocation2 + $0x10] sm:$0xff]
        %v2059 = vld [vmem:[#allocation2 + $0x18] sm:$0xff]
        %v2060 = vld [vmem:[#allocation2 + $0x20] sm:$0xff]
        %v2061 = vld [vmem:[#allocation2 + $0x28] sm:$0xff]
        %v2062 = vld [vmem:[#allocation2 + $0x30] sm:$0xff]
        %v2063 = vld [vmem:[#allocation2 + $0x38] sm:$0xff]
        %v2064 = vld [vmem:[#allocation2 + $0x40] sm:$0xff]
        %v2065 = vld [vmem:[#allocation2 + $0x48] sm:$0xff]
        %v2066 = vld [vmem:[#allocation2 + $0x50] sm:$0xff]
        %v2067 = vld [vmem:[#allocation2 + $0x58] sm:$0xff]
        %v2068 = vld [vmem:[#allocation2 + $0x60] sm:$0xff]
        %v2069 = vld [vmem:[#allocation2 + $0x68] sm:$0xff]
        %v2070 = vld [vmem:[#allocation2 + $0x70] sm:$0xff]
        %v2071 = vld [vmem:[#allocation2 + $0x78] sm:$0xff]
        %v2072 = vpack.c.bf16 %v2060, %v2056
        %v2073 = vpack.c.bf16 %v2061, %v2057
        %v2074 = vpack.c.bf16 %v2062, %v2058
        %v2075 = vpack.c.bf16 %v2063, %v2059
        %v2076 = vpack.c.bf16 %v2068, %v2064
        %v2077 = vpack.c.bf16 %v2069, %v2065
        %v2078 = vpack.c.bf16 %v2070, %v2066
        %v2079 = vpack.c.bf16 %v2071, %v2067
        %v2082 = vunpack.c.l.b16 %v2012
        %v2083 = vunpack.c.l.b16 %v2013
        %v2084 = vpack.c.b16 %v2083, %v2082
        %2093 = vrot.lane.b32.xlu0 %v2072, 20
        %v2094 = vpop.permute.xlu0 %2093
        %2095 = vrot.lane.b32.xlu0 %v2073, 20
        %v2096 = vpop.permute.xlu0 %2095
        %2097 = vrot.lane.b32.xlu0 %v2074, 20
        %v2098 = vpop.permute.xlu0 %2097
        %2099 = vrot.lane.b32.xlu0 %v2075, 20
        %v2100 = vpop.permute.xlu0 %2099
        %2101 = vrot.lane.b32.xlu0 %v2076, 20
        %v2102 = vpop.permute.xlu0 %2101
        %2103 = vrot.lane.b32.xlu0 %v2077, 20
        %v2104 = vpop.permute.xlu0 %2103
        %2105 = vrot.lane.b32.xlu0 %v2078, 20
        %v2106 = vpop.permute.xlu0 %2105
        %2107 = vrot.lane.b32.xlu0 %v2079, 20
        %v2108 = vpop.permute.xlu0 %2107
        %v2109 = vsel %vm1131, %v2094, %v2096
        %v2110 = vsel %vm1131, %v2096, %v2098
        %v2111 = vsel %vm1131, %v2098, %v2100
        %v2112 = vsel %vm1131, %v2102, %v2104
        %v2113 = vsel %vm1131, %v2104, %v2106
        %v2114 = vsel %vm1131, %v2106, %v2108
        %vm2121 = vcmask 261120
        %v2123 = vsel %vm2121, %v2084, 0
        %2125 = vmatpush.bf16.msra.mxu0 0
        %2126 = vmatpush.bf16.msra.mxu0 0
        %2127 = vmatpush.bf16.msra.mxu0 0
        %2128 = vmatpush.bf16.msra.mxu0 0
        %2129 = vmatpush.bf16.msra.mxu0 0
        %2130 = vmatpush.bf16.msra.mxu0 0
        %2131 = vmatpush.bf16.msra.mxu0 %v2112
        %2132 = vmatpush.bf16.msra.mxu0 %v2109
        %2133 = vmatmul.bf16.gmra.mxu0 %v2123
        %v2134 = vpop.f32.mrf.mxu0
        %v2135 = vadd.f32 0.0, %v2134
        %v2136 = vpop.f32.mrf.mxu0
        %v2137 = vadd.f32 0.0, %v2136
        %2138 = vdwg.mxu0
        %2139 = vmatpush.bf16.msra.mxu0 0
        %2140 = vmatpush.bf16.msra.mxu0 0
        %2141 = vmatpush.bf16.msra.mxu0 0
        %2142 = vmatpush.bf16.msra.mxu0 0
        %2143 = vmatpush.bf16.msra.mxu0 0
        %2144 = vmatpush.bf16.msra.mxu0 0
        %2145 = vmatpush.bf16.msra.mxu0 %v2113
        %2146 = vmatpush.bf16.msra.mxu0 %v2110
        %2147 = vmatmul.bf16.gmra.mxu0 %v2123
        %v2148 = vpop.f32.mrf.mxu0
        %v2149 = vadd.f32 0.0, %v2148
        %v2150 = vpop.f32.mrf.mxu0
        %v2151 = vadd.f32 0.0, %v2150
        %2152 = vdwg.mxu0
        %2153 = vmatpush.bf16.msra.mxu0 0
        %2154 = vmatpush.bf16.msra.mxu0 0
        %2155 = vmatpush.bf16.msra.mxu0 0
        %2156 = vmatpush.bf16.msra.mxu0 0
        %2157 = vmatpush.bf16.msra.mxu0 0
        %2158 = vmatpush.bf16.msra.mxu0 0
        %2159 = vmatpush.bf16.msra.mxu0 %v2114
        %2160 = vmatpush.bf16.msra.mxu0 %v2111
        %2161 = vmatmul.bf16.gmra.mxu0 %v2123
        %v2162 = vpop.f32.mrf.mxu0
        %v2163 = vadd.f32 0.0, %v2162
        %v2164 = vpop.f32.mrf.mxu0
        %v2165 = vadd.f32 0.0, %v2164
        %2166 = vdwg.mxu0
        %v2169 = vunpack.c.l.b16 %v2010
        %v2170 = vunpack.c.l.b16 %v2011
        %v2171 = vpack.c.b16 %v2170, %v2169
        %2172 = vrot.lane.b32.xlu0 %v2072, 21
        %v2173 = vpop.permute.xlu0 %2172
        %2174 = vrot.lane.b32.xlu0 %v2073, 21
        %v2175 = vpop.permute.xlu0 %2174
        %2176 = vrot.lane.b32.xlu0 %v2074, 21
        %v2177 = vpop.permute.xlu0 %2176
        %2178 = vrot.lane.b32.xlu0 %v2075, 21
        %v2179 = vpop.permute.xlu0 %2178
        %2180 = vrot.lane.b32.xlu0 %v2076, 21
        %v2181 = vpop.permute.xlu0 %2180
        %2182 = vrot.lane.b32.xlu0 %v2077, 21
        %v2183 = vpop.permute.xlu0 %2182
        %2184 = vrot.lane.b32.xlu0 %v2078, 21
        %v2185 = vpop.permute.xlu0 %2184
        %2186 = vrot.lane.b32.xlu0 %v2079, 21
        %v2187 = vpop.permute.xlu0 %2186
        %v2188 = vsel %vm1220, %v2173, %v2175
        %v2189 = vsel %vm1220, %v2175, %v2177
        %v2190 = vsel %vm1220, %v2177, %v2179
        %v2191 = vsel %vm1220, %v2181, %v2183
        %v2192 = vsel %vm1220, %v2183, %v2185
        %v2193 = vsel %vm1220, %v2185, %v2187
        %v2201 = vsel %vm2121, %v2171, 0
        %2203 = vmatpush.bf16.msra.mxu0 0
        %2204 = vmatpush.bf16.msra.mxu0 0
        %2205 = vmatpush.bf16.msra.mxu0 0
        %2206 = vmatpush.bf16.msra.mxu0 0
        %2207 = vmatpush.bf16.msra.mxu0 0
        %2208 = vmatpush.bf16.msra.mxu0 0
        %2209 = vmatpush.bf16.msra.mxu0 %v2191
        %2210 = vmatpush.bf16.msra.mxu0 %v2188
        %2211 = vmatmul.bf16.gmra.mxu0 %v2201
        %v2212 = vpop.f32.mrf.mxu0
        %v2213 = vadd.f32 %v2135, %v2212
        %v2214 = vpop.f32.mrf.mxu0
        %v2215 = vadd.f32 %v2137, %v2214
        %2216 = vdwg.mxu0
        %2217 = vmatpush.bf16.msra.mxu0 0
        %2218 = vmatpush.bf16.msra.mxu0 0
        %2219 = vmatpush.bf16.msra.mxu0 0
        %2220 = vmatpush.bf16.msra.mxu0 0
        %2221 = vmatpush.bf16.msra.mxu0 0
        %2222 = vmatpush.bf16.msra.mxu0 0
        %2223 = vmatpush.bf16.msra.mxu0 %v2192
        %2224 = vmatpush.bf16.msra.mxu0 %v2189
        %2225 = vmatmul.bf16.gmra.mxu0 %v2201
        %v2226 = vpop.f32.mrf.mxu0
        %v2227 = vadd.f32 %v2149, %v2226
        %v2228 = vpop.f32.mrf.mxu0
        %v2229 = vadd.f32 %v2151, %v2228
        %2230 = vdwg.mxu0
        %2231 = vmatpush.bf16.msra.mxu0 0
        %2232 = vmatpush.bf16.msra.mxu0 0
        %2233 = vmatpush.bf16.msra.mxu0 0
        %2234 = vmatpush.bf16.msra.mxu0 0
        %2235 = vmatpush.bf16.msra.mxu0 0
        %2236 = vmatpush.bf16.msra.mxu0 0
        %2237 = vmatpush.bf16.msra.mxu0 %v2193
        %2238 = vmatpush.bf16.msra.mxu0 %v2190
        %2239 = vmatmul.bf16.gmra.mxu0 %v2201
        %v2240 = vpop.f32.mrf.mxu0
        %v2241 = vadd.f32 %v2163, %v2240
        %v2242 = vpop.f32.mrf.mxu0
        %v2243 = vadd.f32 %v2165, %v2242
        %2244 = vdwg.mxu0
        %v2247 = vunpack.c.l.b16 %v2014
        %v2248 = vunpack.c.l.b16 %v2015
        %v2249 = vpack.c.b16 %v2248, %v2247
        %2250 = vrot.lane.b32.xlu0 %v2072, 19
        %v2251 = vpop.permute.xlu0 %2250
        %2252 = vrot.lane.b32.xlu0 %v2073, 19
        %v2253 = vpop.permute.xlu0 %2252
        %2254 = vrot.lane.b32.xlu0 %v2074, 19
        %v2255 = vpop.permute.xlu0 %2254
        %2256 = vrot.lane.b32.xlu0 %v2075, 19
        %v2257 = vpop.permute.xlu0 %2256
        %2258 = vrot.lane.b32.xlu0 %v2076, 19
        %v2259 = vpop.permute.xlu0 %2258
        %2260 = vrot.lane.b32.xlu0 %v2077, 19
        %v2261 = vpop.permute.xlu0 %2260
        %2262 = vrot.lane.b32.xlu0 %v2078, 19
        %v2263 = vpop.permute.xlu0 %2262
        %2264 = vrot.lane.b32.xlu0 %v2079, 19
        %v2265 = vpop.permute.xlu0 %2264
        %v2266 = vsel %vm1308, %v2251, %v2253
        %v2267 = vsel %vm1308, %v2253, %v2255
        %v2268 = vsel %vm1308, %v2255, %v2257
        %v2269 = vsel %vm1308, %v2259, %v2261
        %v2270 = vsel %vm1308, %v2261, %v2263
        %v2271 = vsel %vm1308, %v2263, %v2265
        %v2279 = vsel %vm2121, %v2249, 0
        %2281 = vmatpush.bf16.msra.mxu0 0
        %2282 = vmatpush.bf16.msra.mxu0 0
        %2283 = vmatpush.bf16.msra.mxu0 0
        %2284 = vmatpush.bf16.msra.mxu0 0
        %2285 = vmatpush.bf16.msra.mxu0 0
        %2286 = vmatpush.bf16.msra.mxu0 0
        %2287 = vmatpush.bf16.msra.mxu0 %v2269
        %2288 = vmatpush.bf16.msra.mxu0 %v2266
        %2289 = vmatmul.bf16.gmra.mxu0 %v2279
        %v2290 = vpop.f32.mrf.mxu0
        %v2291 = vadd.f32 0.0, %v2290
        %v2292 = vpop.f32.mrf.mxu0
        %v2293 = vadd.f32 0.0, %v2292
        %2294 = vdwg.mxu0
        %2295 = vmatpush.bf16.msra.mxu0 0
        %2296 = vmatpush.bf16.msra.mxu0 0
        %2297 = vmatpush.bf16.msra.mxu0 0
        %2298 = vmatpush.bf16.msra.mxu0 0
        %2299 = vmatpush.bf16.msra.mxu0 0
        %2300 = vmatpush.bf16.msra.mxu0 0
        %2301 = vmatpush.bf16.msra.mxu0 %v2270
        %2302 = vmatpush.bf16.msra.mxu0 %v2267
        %2303 = vmatmul.bf16.gmra.mxu0 %v2279
        %v2304 = vpop.f32.mrf.mxu0
        %v2305 = vadd.f32 0.0, %v2304
        %v2306 = vpop.f32.mrf.mxu0
        %v2307 = vadd.f32 0.0, %v2306
        %2308 = vdwg.mxu0
        %2309 = vmatpush.bf16.msra.mxu0 0
        %2310 = vmatpush.bf16.msra.mxu0 0
        %2311 = vmatpush.bf16.msra.mxu0 0
        %2312 = vmatpush.bf16.msra.mxu0 0
        %2313 = vmatpush.bf16.msra.mxu0 0
        %2314 = vmatpush.bf16.msra.mxu0 0
        %2315 = vmatpush.bf16.msra.mxu0 %v2271
        %2316 = vmatpush.bf16.msra.mxu0 %v2268
        %2317 = vmatmul.bf16.gmra.mxu0 %v2279
        %v2318 = vpop.f32.mrf.mxu0
        %v2319 = vadd.f32 0.0, %v2318
        %v2320 = vpop.f32.mrf.mxu0
        %v2321 = vadd.f32 0.0, %v2320
        %2322 = vdwg.mxu0
        %v2323 = vadd.f32 %v2213, %v2291
        %v2324 = vadd.f32 %v2227, %v2305
        %v2325 = vadd.f32 %v2241, %v2319
        %v2326 = vadd.f32 %v2215, %v2293
        %v2327 = vadd.f32 %v2229, %v2307
        %v2328 = vadd.f32 %v2243, %v2321
        %v2331 = vunpack.c.l.b16 %v2016
        %v2332 = vunpack.c.l.b16 %v2017
        %v2333 = vpack.c.b16 %v2332, %v2331
        %2334 = vrot.lane.b32.xlu0 %v2072, 1
        %v2335 = vpop.permute.xlu0 %2334
        %2336 = vrot.lane.b32.xlu0 %v2073, 1
        %v2337 = vpop.permute.xlu0 %2336
        %2338 = vrot.lane.b32.xlu0 %v2074, 1
        %v2339 = vpop.permute.xlu0 %2338
        %2340 = vrot.lane.b32.xlu0 %v2075, 1
        %v2341 = vpop.permute.xlu0 %2340
        %2342 = vrot.lane.b32.xlu0 %v2076, 1
        %v2343 = vpop.permute.xlu0 %2342
        %2344 = vrot.lane.b32.xlu0 %v2077, 1
        %v2345 = vpop.permute.xlu0 %2344
        %2346 = vrot.lane.b32.xlu0 %v2078, 1
        %v2347 = vpop.permute.xlu0 %2346
        %2348 = vrot.lane.b32.xlu0 %v2079, 1
        %v2349 = vpop.permute.xlu0 %2348
        %v2350 = vsel %vm1408, %v2335, %v2337
        %v2351 = vsel %vm1408, %v2337, %v2339
        %v2352 = vsel %vm1408, %v2339, %v2341
        %v2353 = vsel %vm1408, %v2343, %v2345
        %v2354 = vsel %vm1408, %v2345, %v2347
        %v2355 = vsel %vm1408, %v2347, %v2349
        %v2363 = vsel %vm2121, %v2333, 0
        %2365 = vmatpush.bf16.msra.mxu0 0
        %2366 = vmatpush.bf16.msra.mxu0 0
        %2367 = vmatpush.bf16.msra.mxu0 0
        %2368 = vmatpush.bf16.msra.mxu0 0
        %2369 = vmatpush.bf16.msra.mxu0 0
        %2370 = vmatpush.bf16.msra.mxu0 0
        %2371 = vmatpush.bf16.msra.mxu0 %v2353
        %2372 = vmatpush.bf16.msra.mxu0 %v2350
        %2373 = vmatmul.bf16.gmra.mxu0 %v2363
        %v2374 = vpop.f32.mrf.mxu0
        %v2375 = vadd.f32 0.0, %v2374
        %v2376 = vpop.f32.mrf.mxu0
        %v2377 = vadd.f32 0.0, %v2376
        %2378 = vdwg.mxu0
        %2379 = vmatpush.bf16.msra.mxu0 0
        %2380 = vmatpush.bf16.msra.mxu0 0
        %2381 = vmatpush.bf16.msra.mxu0 0
        %2382 = vmatpush.bf16.msra.mxu0 0
        %2383 = vmatpush.bf16.msra.mxu0 0
        %2384 = vmatpush.bf16.msra.mxu0 0
        %2385 = vmatpush.bf16.msra.mxu0 %v2354
        %2386 = vmatpush.bf16.msra.mxu0 %v2351
        %2387 = vmatmul.bf16.gmra.mxu0 %v2363
        %v2388 = vpop.f32.mrf.mxu0
        %v2389 = vadd.f32 0.0, %v2388
        %v2390 = vpop.f32.mrf.mxu0
        %v2391 = vadd.f32 0.0, %v2390
        %2392 = vdwg.mxu0
        %2393 = vmatpush.bf16.msra.mxu0 0
        %2394 = vmatpush.bf16.msra.mxu0 0
        %2395 = vmatpush.bf16.msra.mxu0 0
        %2396 = vmatpush.bf16.msra.mxu0 0
        %2397 = vmatpush.bf16.msra.mxu0 0
        %2398 = vmatpush.bf16.msra.mxu0 0
        %2399 = vmatpush.bf16.msra.mxu0 %v2355
        %2400 = vmatpush.bf16.msra.mxu0 %v2352
        %2401 = vmatmul.bf16.gmra.mxu0 %v2363
        %v2402 = vpop.f32.mrf.mxu0
        %v2403 = vadd.f32 0.0, %v2402
        %v2404 = vpop.f32.mrf.mxu0
        %v2405 = vadd.f32 0.0, %v2404
        %2406 = vdwg.mxu0
        %v2407 = vadd.f32 %v2323, %v2375
        %v2408 = vadd.f32 %v2324, %v2389
        %v2409 = vadd.f32 %v2325, %v2403
        %v2410 = vadd.f32 %v2326, %v2377
        %v2411 = vadd.f32 %v2327, %v2391
        %v2412 = vadd.f32 %v2328, %v2405
        %v2415 = vunpack.c.l.b16 %v2018
        %v2416 = vunpack.c.l.b16 %v2019
        %v2417 = vpack.c.b16 %v2416, %v2415
        %v2419 = vsel %vm2121, %v2417, 0
        %2421 = vmatpush.bf16.msra.mxu0 0
        %2422 = vmatpush.bf16.msra.mxu0 0
        %2423 = vmatpush.bf16.msra.mxu0 0
        %2424 = vmatpush.bf16.msra.mxu0 0
        %2425 = vmatpush.bf16.msra.mxu0 0
        %2426 = vmatpush.bf16.msra.mxu0 0
        %2427 = vmatpush.bf16.msra.mxu0 %v2077
        %2428 = vmatpush.bf16.msra.mxu0 %v2073
        %2429 = vmatmul.bf16.gmra.mxu0 %v2419
        %v2430 = vpop.f32.mrf.mxu0
        %v2431 = vadd.f32 0.0, %v2430
        %v2432 = vpop.f32.mrf.mxu0
        %v2433 = vadd.f32 0.0, %v2432
        %2434 = vdwg.mxu0
        %2435 = vmatpush.bf16.msra.mxu0 0
        %2436 = vmatpush.bf16.msra.mxu0 0
        %2437 = vmatpush.bf16.msra.mxu0 0
        %2438 = vmatpush.bf16.msra.mxu0 0
        %2439 = vmatpush.bf16.msra.mxu0 0
        %2440 = vmatpush.bf16.msra.mxu0 0
        %2441 = vmatpush.bf16.msra.mxu0 %v2078
        %2442 = vmatpush.bf16.msra.mxu0 %v2074
        %2443 = vmatmul.bf16.gmra.mxu0 %v2419
        %v2444 = vpop.f32.mrf.mxu0
        %v2445 = vadd.f32 0.0, %v2444
        %v2446 = vpop.f32.mrf.mxu0
        %v2447 = vadd.f32 0.0, %v2446
        %2448 = vdwg.mxu0
        %2449 = vmatpush.bf16.msra.mxu0 0
        %2450 = vmatpush.bf16.msra.mxu0 0
        %2451 = vmatpush.bf16.msra.mxu0 0
        %2452 = vmatpush.bf16.msra.mxu0 0
        %2453 = vmatpush.bf16.msra.mxu0 0
        %2454 = vmatpush.bf16.msra.mxu0 0
        %2455 = vmatpush.bf16.msra.mxu0 %v2079
        %2456 = vmatpush.bf16.msra.mxu0 %v2075
        %2457 = vmatmul.bf16.gmra.mxu0 %v2419
        %v2458 = vpop.f32.mrf.mxu0
        %v2459 = vadd.f32 0.0, %v2458
        %v2460 = vpop.f32.mrf.mxu0
        %v2461 = vadd.f32 0.0, %v2460
        %2462 = vdwg.mxu0
        %v2463 = vadd.f32 %v2407, %v2431
        %v2464 = vadd.f32 %v2408, %v2445
        %v2465 = vadd.f32 %v2409, %v2459
        %v2466 = vadd.f32 %v2410, %v2433
        %v2467 = vadd.f32 %v2411, %v2447
        %v2468 = vadd.f32 %v2412, %v2461
        %v2471 = vunpack.c.l.b16 %v2020
        %v2472 = vunpack.c.l.b16 %v2021
        %v2473 = vpack.c.b16 %v2472, %v2471
        %2474 = vrot.lane.b32.xlu0 %v2073, 127
        %v2475 = vpop.permute.xlu0 %2474
        %2476 = vrot.lane.b32.xlu0 %v2074, 127
        %v2477 = vpop.permute.xlu0 %2476
        %2478 = vrot.lane.b32.xlu0 %v2075, 127
        %v2479 = vpop.permute.xlu0 %2478
        %2480 = vrot.lane.b32.xlu0 %v2077, 127
        %v2481 = vpop.permute.xlu0 %2480
        %2482 = vrot.lane.b32.xlu0 %v2078, 127
        %v2483 = vpop.permute.xlu0 %2482
        %2484 = vrot.lane.b32.xlu0 %v2079, 127
        %v2485 = vpop.permute.xlu0 %2484
        %v2486 = vsel %vm1591, %v2475, %v2477
        %v2487 = vsel %vm1591, %v2477, %v2479
        %v2488 = vsel %vm1591, %v2481, %v2483
        %v2489 = vsel %vm1591, %v2483, %v2485
        %v2497 = vsel %vm2121, %v2473, 0
        %2499 = vmatpush.bf16.msra.mxu0 0
        %2500 = vmatpush.bf16.msra.mxu0 0
        %2501 = vmatpush.bf16.msra.mxu0 0
        %2502 = vmatpush.bf16.msra.mxu0 0
        %2503 = vmatpush.bf16.msra.mxu0 0
        %2504 = vmatpush.bf16.msra.mxu0 0
        %2505 = vmatpush.bf16.msra.mxu0 %v2488
        %2506 = vmatpush.bf16.msra.mxu0 %v2486
        %2507 = vmatmul.bf16.gmra.mxu0 %v2497
        %v2508 = vpop.f32.mrf.mxu0
        %v2509 = vadd.f32 0.0, %v2508
        %v2510 = vpop.f32.mrf.mxu0
        %v2511 = vadd.f32 0.0, %v2510
        %2512 = vdwg.mxu0
        %2513 = vmatpush.bf16.msra.mxu0 0
        %2514 = vmatpush.bf16.msra.mxu0 0
        %2515 = vmatpush.bf16.msra.mxu0 0
        %2516 = vmatpush.bf16.msra.mxu0 0
        %2517 = vmatpush.bf16.msra.mxu0 0
        %2518 = vmatpush.bf16.msra.mxu0 0
        %2519 = vmatpush.bf16.msra.mxu0 %v2489
        %2520 = vmatpush.bf16.msra.mxu0 %v2487
        %2521 = vmatmul.bf16.gmra.mxu0 %v2497
        %v2522 = vpop.f32.mrf.mxu0
        %v2523 = vadd.f32 0.0, %v2522
        %v2524 = vpop.f32.mrf.mxu0
        %v2525 = vadd.f32 0.0, %v2524
        %2526 = vdwg.mxu0
        %2527 = vmatpush.bf16.msra.mxu0 0
        %2528 = vmatpush.bf16.msra.mxu0 0
        %2529 = vmatpush.bf16.msra.mxu0 0
        %2530 = vmatpush.bf16.msra.mxu0 0
        %2531 = vmatpush.bf16.msra.mxu0 0
        %2532 = vmatpush.bf16.msra.mxu0 0
        %2533 = vmatpush.bf16.msra.mxu0 %v2485
        %2534 = vmatpush.bf16.msra.mxu0 %v2479
        %2535 = vmatmul.bf16.gmra.mxu0 %v2497
        %v2536 = vpop.f32.mrf.mxu0
        %v2537 = vadd.f32 0.0, %v2536
        %v2538 = vpop.f32.mrf.mxu0
        %v2539 = vadd.f32 0.0, %v2538
        %2540 = vdwg.mxu0
        %v2541 = vadd.f32 %v2463, %v2509
        %v2542 = vadd.f32 %v2464, %v2523
        %v2543 = vadd.f32 %v2465, %v2537
        %v2544 = vadd.f32 %v2466, %v2511
        %v2545 = vadd.f32 %v2467, %v2525
        %v2546 = vadd.f32 %v2468, %v2539
        %v2549 = vunpack.c.l.b16 %v2022
        %v2550 = vunpack.c.l.b16 %v2023
        %v2551 = vpack.c.b16 %v2550, %v2549
        %2552 = vrot.lane.b32.xlu0 %v2073, 109
        %v2553 = vpop.permute.xlu0 %2552
        %2554 = vrot.lane.b32.xlu0 %v2074, 109
        %v2555 = vpop.permute.xlu0 %2554
        %2556 = vrot.lane.b32.xlu0 %v2075, 109
        %v2557 = vpop.permute.xlu0 %2556
        %2558 = vrot.lane.b32.xlu0 %v2077, 109
        %v2559 = vpop.permute.xlu0 %2558
        %2560 = vrot.lane.b32.xlu0 %v2078, 109
        %v2561 = vpop.permute.xlu0 %2560
        %2562 = vrot.lane.b32.xlu0 %v2079, 109
        %v2563 = vpop.permute.xlu0 %2562
        %v2564 = vsel %vm1688, %v2553, %v2555
        %v2565 = vsel %vm1688, %v2555, %v2557
        %v2566 = vsel %vm1688, %v2559, %v2561
        %v2567 = vsel %vm1688, %v2561, %v2563
        %v2575 = vsel %vm2121, %v2551, 0
        %2577 = vmatpush.bf16.msra.mxu0 0
        %2578 = vmatpush.bf16.msra.mxu0 0
        %2579 = vmatpush.bf16.msra.mxu0 0
        %2580 = vmatpush.bf16.msra.mxu0 0
        %2581 = vmatpush.bf16.msra.mxu0 0
        %2582 = vmatpush.bf16.msra.mxu0 0
        %2583 = vmatpush.bf16.msra.mxu0 %v2566
        %2584 = vmatpush.bf16.msra.mxu0 %v2564
        %2585 = vmatmul.bf16.gmra.mxu0 %v2575
        %v2586 = vpop.f32.mrf.mxu0
        %v2587 = vadd.f32 0.0, %v2586
        %v2588 = vpop.f32.mrf.mxu0
        %v2589 = vadd.f32 0.0, %v2588
        %2590 = vdwg.mxu0
        %2591 = vmatpush.bf16.msra.mxu0 0
        %2592 = vmatpush.bf16.msra.mxu0 0
        %2593 = vmatpush.bf16.msra.mxu0 0
        %2594 = vmatpush.bf16.msra.mxu0 0
        %2595 = vmatpush.bf16.msra.mxu0 0
        %2596 = vmatpush.bf16.msra.mxu0 0
        %2597 = vmatpush.bf16.msra.mxu0 %v2567
        %2598 = vmatpush.bf16.msra.mxu0 %v2565
        %2599 = vmatmul.bf16.gmra.mxu0 %v2575
        %v2600 = vpop.f32.mrf.mxu0
        %v2601 = vadd.f32 0.0, %v2600
        %v2602 = vpop.f32.mrf.mxu0
        %v2603 = vadd.f32 0.0, %v2602
        %2604 = vdwg.mxu0
        %2605 = vmatpush.bf16.msra.mxu0 0
        %2606 = vmatpush.bf16.msra.mxu0 0
        %2607 = vmatpush.bf16.msra.mxu0 0
        %2608 = vmatpush.bf16.msra.mxu0 0
        %2609 = vmatpush.bf16.msra.mxu0 0
        %2610 = vmatpush.bf16.msra.mxu0 0
        %2611 = vmatpush.bf16.msra.mxu0 %v2563
        %2612 = vmatpush.bf16.msra.mxu0 %v2557
        %2613 = vmatmul.bf16.gmra.mxu0 %v2575
        %v2614 = vpop.f32.mrf.mxu0
        %v2615 = vadd.f32 0.0, %v2614
        %v2616 = vpop.f32.mrf.mxu0
        %v2617 = vadd.f32 0.0, %v2616
        %2618 = vdwg.mxu0
        %v2619 = vadd.f32 %v2541, %v2587
        %v2620 = vadd.f32 %v2542, %v2601
        %v2621 = vadd.f32 %v2543, %v2615
        %v2622 = vadd.f32 %v2544, %v2589
        %v2623 = vadd.f32 %v2545, %v2603
        %v2624 = vadd.f32 %v2546, %v2617
        %v2627 = vunpack.c.l.b16 %v2024
        %v2628 = vunpack.c.l.b16 %v2025
        %v2629 = vpack.c.b16 %v2628, %v2627
        %2630 = vrot.lane.b32.xlu0 %v2073, 108
        %v2631 = vpop.permute.xlu0 %2630
        %2632 = vrot.lane.b32.xlu0 %v2074, 108
        %v2633 = vpop.permute.xlu0 %2632
        %2634 = vrot.lane.b32.xlu0 %v2075, 108
        %v2635 = vpop.permute.xlu0 %2634
        %2636 = vrot.lane.b32.xlu0 %v2077, 108
        %v2637 = vpop.permute.xlu0 %2636
        %2638 = vrot.lane.b32.xlu0 %v2078, 108
        %v2639 = vpop.permute.xlu0 %2638
        %2640 = vrot.lane.b32.xlu0 %v2079, 108
        %v2641 = vpop.permute.xlu0 %2640
        %v2642 = vsel %vm1785, %v2631, %v2633
        %v2643 = vsel %vm1785, %v2633, %v2635
        %v2644 = vsel %vm1785, %v2637, %v2639
        %v2645 = vsel %vm1785, %v2639, %v2641
        %v2653 = vsel %vm2121, %v2629, 0
        %2655 = vmatpush.bf16.msra.mxu0 0
        %2656 = vmatpush.bf16.msra.mxu0 0
        %2657 = vmatpush.bf16.msra.mxu0 0
        %2658 = vmatpush.bf16.msra.mxu0 0
        %2659 = vmatpush.bf16.msra.mxu0 0
        %2660 = vmatpush.bf16.msra.mxu0 0
        %2661 = vmatpush.bf16.msra.mxu0 %v2644
        %2662 = vmatpush.bf16.msra.mxu0 %v2642
        %2663 = vmatmul.bf16.gmra.mxu0 %v2653
        %v2664 = vpop.f32.mrf.mxu0
        %v2665 = vadd.f32 0.0, %v2664
        %v2666 = vpop.f32.mrf.mxu0
        %v2667 = vadd.f32 0.0, %v2666
        %2668 = vdwg.mxu0
        %2669 = vmatpush.bf16.msra.mxu0 0
        %2670 = vmatpush.bf16.msra.mxu0 0
        %2671 = vmatpush.bf16.msra.mxu0 0
        %2672 = vmatpush.bf16.msra.mxu0 0
        %2673 = vmatpush.bf16.msra.mxu0 0
        %2674 = vmatpush.bf16.msra.mxu0 0
        %2675 = vmatpush.bf16.msra.mxu0 %v2645
        %2676 = vmatpush.bf16.msra.mxu0 %v2643
        %2677 = vmatmul.bf16.gmra.mxu0 %v2653
        %v2678 = vpop.f32.mrf.mxu0
        %v2679 = vadd.f32 0.0, %v2678
        %v2680 = vpop.f32.mrf.mxu0
        %v2681 = vadd.f32 0.0, %v2680
        %2682 = vdwg.mxu0
        %2683 = vmatpush.bf16.msra.mxu0 0
        %2684 = vmatpush.bf16.msra.mxu0 0
        %2685 = vmatpush.bf16.msra.mxu0 0
        %2686 = vmatpush.bf16.msra.mxu0 0
        %2687 = vmatpush.bf16.msra.mxu0 0
        %2688 = vmatpush.bf16.msra.mxu0 0
        %2689 = vmatpush.bf16.msra.mxu0 %v2641
        %2690 = vmatpush.bf16.msra.mxu0 %v2635
        %2691 = vmatmul.bf16.gmra.mxu0 %v2653
        %v2692 = vpop.f32.mrf.mxu0
        %v2693 = vadd.f32 0.0, %v2692
        %v2694 = vpop.f32.mrf.mxu0
        %v2695 = vadd.f32 0.0, %v2694
        %2696 = vdwg.mxu0
        %v2697 = vadd.f32 %v2619, %v2665
        %v2698 = vadd.f32 %v2620, %v2679
        %v2699 = vadd.f32 %v2621, %v2693
        %v2700 = vadd.f32 %v2622, %v2667
        %v2701 = vadd.f32 %v2623, %v2681
        %v2702 = vadd.f32 %v2624, %v2695
        %v2705 = vunpack.c.l.b16 %v2026
        %v2706 = vunpack.c.l.b16 %v2027
        %v2707 = vpack.c.b16 %v2706, %v2705
        %2708 = vrot.lane.b32.xlu0 %v2073, 107
        %v2709 = vpop.permute.xlu0 %2708
        %2710 = vrot.lane.b32.xlu0 %v2074, 107
        %v2711 = vpop.permute.xlu0 %2710
        %2712 = vrot.lane.b32.xlu0 %v2075, 107
        %v2713 = vpop.permute.xlu0 %2712
        %2714 = vrot.lane.b32.xlu0 %v2077, 107
        %v2715 = vpop.permute.xlu0 %2714
        %2716 = vrot.lane.b32.xlu0 %v2078, 107
        %v2717 = vpop.permute.xlu0 %2716
        %2718 = vrot.lane.b32.xlu0 %v2079, 107
        %v2719 = vpop.permute.xlu0 %2718
        %v2720 = vsel %vm1882, %v2709, %v2711
        %v2721 = vsel %vm1882, %v2711, %v2713
        %v2722 = vsel %vm1882, %v2715, %v2717
        %v2723 = vsel %vm1882, %v2717, %v2719
        %v2731 = vsel %vm2121, %v2707, 0
        %2733 = vmatpush.bf16.msra.mxu0 0
        %2734 = vmatpush.bf16.msra.mxu0 0
        %2735 = vmatpush.bf16.msra.mxu0 0
        %2736 = vmatpush.bf16.msra.mxu0 0
        %2737 = vmatpush.bf16.msra.mxu0 0
        %2738 = vmatpush.bf16.msra.mxu0 0
        %2739 = vmatpush.bf16.msra.mxu0 %v2722
        %2740 = vmatpush.bf16.msra.mxu0 %v2720
        %2741 = vmatmul.bf16.gmra.mxu0 %v2731
        %v2742 = vpop.f32.mrf.mxu0
        %v2743 = vadd.f32 0.0, %v2742
        %v2744 = vpop.f32.mrf.mxu0
        %v2745 = vadd.f32 0.0, %v2744
        %2746 = vdwg.mxu0
        %2747 = vmatpush.bf16.msra.mxu0 0
        %2748 = vmatpush.bf16.msra.mxu0 0
        %2749 = vmatpush.bf16.msra.mxu0 0
        %2750 = vmatpush.bf16.msra.mxu0 0
        %2751 = vmatpush.bf16.msra.mxu0 0
        %2752 = vmatpush.bf16.msra.mxu0 0
        %2753 = vmatpush.bf16.msra.mxu0 %v2723
        %2754 = vmatpush.bf16.msra.mxu0 %v2721
        %2755 = vmatmul.bf16.gmra.mxu0 %v2731
        %v2756 = vpop.f32.mrf.mxu0
        %v2757 = vadd.f32 0.0, %v2756
        %v2758 = vpop.f32.mrf.mxu0
        %v2759 = vadd.f32 0.0, %v2758
        %2760 = vdwg.mxu0
        %2761 = vmatpush.bf16.msra.mxu0 0
        %2762 = vmatpush.bf16.msra.mxu0 0
        %2763 = vmatpush.bf16.msra.mxu0 0
        %2764 = vmatpush.bf16.msra.mxu0 0
        %2765 = vmatpush.bf16.msra.mxu0 0
        %2766 = vmatpush.bf16.msra.mxu0 0
        %2767 = vmatpush.bf16.msra.mxu0 %v2719
        %2768 = vmatpush.bf16.msra.mxu0 %v2713
        %2769 = vmatmul.bf16.gmra.mxu0 %v2731
        %v2770 = vpop.f32.mrf.mxu0
        %v2771 = vadd.f32 0.0, %v2770
        %v2772 = vpop.f32.mrf.mxu0
        %v2773 = vadd.f32 0.0, %v2772
        %2774 = vdwg.mxu0
        %v2775 = vadd.f32 %v2697, %v2743
        %v2776 = vadd.f32 %v2698, %v2757
        %v2777 = vadd.f32 %v2699, %v2771
        %v2778 = vadd.f32 %v2700, %v2745
        %v2779 = vadd.f32 %v2701, %v2759
        %v2780 = vadd.f32 %v2702, %v2773
        %2782 = vset.pattern.permute.xlu0 0
        %2783 = vperm.xlu0 %2782, %v2030
        %v2784 = vpop.permute.xlu0 %2783
        %2787 = vset.pattern.permute.xlu0 0
        %2788 = vperm.xlu0 %2787, %v2031
        %v2789 = vpop.permute.xlu0 %2788
        %v2791 = vadd.f32 %v2775, %v2784
        %v2792 = vadd.f32 %v2776, %v2784
        %v2793 = vadd.f32 %v2777, %v2784
        %v2794 = vadd.f32 %v2778, %v2789
        %v2795 = vadd.f32 %v2779, %v2789
        %v2796 = vadd.f32 %v2780, %v2789
        %v2797 = vadd.f32 %v2791, %v1026
        %v2798 = vadd.f32 %v2792, %v1027
        %v2799 = vadd.f32 %v2793, %v1028
        %v2800 = vadd.f32 %v2794, %v1029
        %v2801 = vadd.f32 %v2795, %v1030
        %v2802 = vadd.f32 %v2796, %v1031
      $region73: #{wdsr_forward.1} parent=67 // loop_footer
        %s1025 = sadd.s32 1, %s1021
      $region74: #{wdsr_forward.1} parent=67 // loop_footer_branch
        %1020 = sbr.rel target = $region70
      $region75: #{wdsr_forward.1} parent=67 // loop_exit
        _
      %v2803 = vld [vmem:[%s8] sm:$0x3]
      %v2804 = vld [vmem:[%s8 + $0x2] sm:$0x3]
      %v2805 = vld [vmem:[%s8 + $0x4] sm:$0x3]
      %v2806 = vld [vmem:[%s8 + $0x6] sm:$0x3]
      %v2807 = vld [vmem:[%s8 + $0x8] sm:$0x3]
      %v2808 = vld [vmem:[%s8 + $0xa] sm:$0x3]
      %v2809 = vld [vmem:[%s8 + $0xc] sm:$0x3]
      %v2810 = vld [vmem:[%s8 + $0xe] sm:$0x3]
      %v2811 = vld [vmem:[%s8 + $0x10] sm:$0x3]
      %v2812 = vld [vmem:[%s9] sm:$0xf]
      %v2814 = vperm.slane %v412, 0
      %v2815 = vperm.slane %v412, 1
      %v2816 = vperm.slane %v412, 2
      %v2820 = vmul.f32 %v1026, %v2814
      %v2821 = vmul.f32 %v1027, %v2815
      %v2822 = vmul.f32 %v1028, %v2816
      %v2823 = vmul.f32 %v1029, %v2814
      %v2824 = vmul.f32 %v1030, %v2815
      %v2825 = vmul.f32 %v1031, %v2816
      %2826 = vst [vmem:[#allocation2 + $0x8] sm:$0xff] %v2820
      %2827 = vst [vmem:[#allocation2 + $0x10] sm:$0xff] %v2821
      %vm2828 = vcmask 523264
      %2829 = vst.msk [vmem:[#allocation2 + $0x18] sm:$0xff] %vm2828, %v2822
      %2830 = vst [vmem:[#allocation2 + $0x28] sm:$0xff] %v2823
      %2831 = vst [vmem:[#allocation2 + $0x30] sm:$0xff] %v2824
      %2832 = vst.msk [vmem:[#allocation2 + $0x38] sm:$0xff] %vm2828, %v2825
      %v2833 = vld [vmem:[#allocation2] sm:$0xff]
      %v2834 = vld [vmem:[#allocation2 + $0x8] sm:$0xff]
      %v2835 = vld [vmem:[#allocation2 + $0x10] sm:$0xff]
      %v2836 = vld [vmem:[#allocation2 + $0x18] sm:$0xff]
      %v2837 = vld [vmem:[#allocation2 + $0x20] sm:$0xff]
      %v2838 = vld [vmem:[#allocation2 + $0x28] sm:$0xff]
      %v2839 = vld [vmem:[#allocation2 + $0x30] sm:$0xff]
      %v2840 = vld [vmem:[#allocation2 + $0x38] sm:$0xff]
      %v2841 = vpack.c.bf16 %v2837, %v2833
      %v2842 = vpack.c.bf16 %v2838, %v2834
      %v2843 = vpack.c.bf16 %v2839, %v2835
      %v2844 = vpack.c.bf16 %v2840, %v2836
      %2849 = vrot.lane.b32.xlu0 %v2841, 20
      %v2850 = vpop.permute.xlu0 %2849
      %2851 = vrot.lane.b32.xlu0 %v2842, 20
      %v2852 = vpop.permute.xlu0 %2851
      %2853 = vrot.lane.b32.xlu0 %v2843, 20
      %v2854 = vpop.permute.xlu0 %2853
      %2855 = vrot.lane.b32.xlu0 %v2844, 20
      %v2856 = vpop.permute.xlu0 %2855
      %vm2857 = vcmask 162816
      %v2858 = vsel %vm2857, %v2850, %v2852
      %v2859 = vsel %vm2857, %v2852, %v2854
      %v2860 = vsel %vm2857, %v2854, %v2856
      %vm2864 = vcmask 130048
      %v2866 = vsel %vm2864, %v2804, 0
      %2868 = vmatpush.bf16.msra.mxu0 0
      %2869 = vmatpush.bf16.msra.mxu0 0
      %2870 = vmatpush.bf16.msra.mxu0 0
      %2871 = vmatpush.bf16.msra.mxu0 0
      %2872 = vmatpush.bf16.msra.mxu0 0
      %2873 = vmatpush.bf16.msra.mxu0 0
      %2874 = vmatpush.bf16.msra.mxu0 0
      %2875 = vmatpush.bf16.msra.mxu0 %v2858
      %2876 = vmatmul.bf16.gmra.mxu0 %v2866
      %v2877 = vpop.f32.mrf.mxu0
      %v2878 = vadd.f32 0.0, %v2877
      %v2879 = vpop.f32.mrf.mxu0
      %2880 = vdwg.mxu0
      %2881 = vmatpush.bf16.msra.mxu0 0
      %2882 = vmatpush.bf16.msra.mxu0 0
      %2883 = vmatpush.bf16.msra.mxu0 0
      %2884 = vmatpush.bf16.msra.mxu0 0
      %2885 = vmatpush.bf16.msra.mxu0 0
      %2886 = vmatpush.bf16.msra.mxu0 0
      %2887 = vmatpush.bf16.msra.mxu0 0
      %2888 = vmatpush.bf16.msra.mxu0 %v2859
      %2889 = vmatmul.bf16.gmra.mxu0 %v2866
      %v2890 = vpop.f32.mrf.mxu0
      %v2891 = vadd.f32 0.0, %v2890
      %v2892 = vpop.f32.mrf.mxu0
      %2893 = vdwg.mxu0
      %2894 = vmatpush.bf16.msra.mxu0 0
      %2895 = vmatpush.bf16.msra.mxu0 0
      %2896 = vmatpush.bf16.msra.mxu0 0
      %2897 = vmatpush.bf16.msra.mxu0 0
      %2898 = vmatpush.bf16.msra.mxu0 0
      %2899 = vmatpush.bf16.msra.mxu0 0
      %2900 = vmatpush.bf16.msra.mxu0 0
      %2901 = vmatpush.bf16.msra.mxu0 %v2860
      %2902 = vmatmul.bf16.gmra.mxu0 %v2866
      %v2903 = vpop.f32.mrf.mxu0
      %v2904 = vadd.f32 0.0, %v2903
      %v2905 = vpop.f32.mrf.mxu0
      %2906 = vdwg.mxu0
      %2907 = vrot.lane.b32.xlu0 %v2841, 21
      %v2908 = vpop.permute.xlu0 %2907
      %2909 = vrot.lane.b32.xlu0 %v2842, 21
      %v2910 = vpop.permute.xlu0 %2909
      %2911 = vrot.lane.b32.xlu0 %v2843, 21
      %v2912 = vpop.permute.xlu0 %2911
      %2913 = vrot.lane.b32.xlu0 %v2844, 21
      %v2914 = vpop.permute.xlu0 %2913
      %vm2915 = vcmask 171008
      %v2916 = vsel %vm2915, %v2908, %v2910
      %v2917 = vsel %vm2915, %v2910, %v2912
      %v2918 = vsel %vm2915, %v2912, %v2914
      %v2923 = vsel %vm2864, %v2803, 0
      %2925 = vmatpush.bf16.msra.mxu0 0
      %2926 = vmatpush.bf16.msra.mxu0 0
      %2927 = vmatpush.bf16.msra.mxu0 0
      %2928 = vmatpush.bf16.msra.mxu0 0
      %2929 = vmatpush.bf16.msra.mxu0 0
      %2930 = vmatpush.bf16.msra.mxu0 0
      %2931 = vmatpush.bf16.msra.mxu0 0
      %2932 = vmatpush.bf16.msra.mxu0 %v2916
      %2933 = vmatmul.bf16.gmra.mxu0 %v2923
      %v2934 = vpop.f32.mrf.mxu0
      %v2935 = vadd.f32 %v2878, %v2934
      %v2936 = vpop.f32.mrf.mxu0
      %2937 = vdwg.mxu0
      %2938 = vmatpush.bf16.msra.mxu0 0
      %2939 = vmatpush.bf16.msra.mxu0 0
      %2940 = vmatpush.bf16.msra.mxu0 0
      %2941 = vmatpush.bf16.msra.mxu0 0
      %2942 = vmatpush.bf16.msra.mxu0 0
      %2943 = vmatpush.bf16.msra.mxu0 0
      %2944 = vmatpush.bf16.msra.mxu0 0
      %2945 = vmatpush.bf16.msra.mxu0 %v2917
      %2946 = vmatmul.bf16.gmra.mxu0 %v2923
      %v2947 = vpop.f32.mrf.mxu0
      %v2948 = vadd.f32 %v2891, %v2947
      %v2949 = vpop.f32.mrf.mxu0
      %2950 = vdwg.mxu0
      %2951 = vmatpush.bf16.msra.mxu0 0
      %2952 = vmatpush.bf16.msra.mxu0 0
      %2953 = vmatpush.bf16.msra.mxu0 0
      %2954 = vmatpush.bf16.msra.mxu0 0
      %2955 = vmatpush.bf16.msra.mxu0 0
      %2956 = vmatpush.bf16.msra.mxu0 0
      %2957 = vmatpush.bf16.msra.mxu0 0
      %2958 = vmatpush.bf16.msra.mxu0 %v2918
      %2959 = vmatmul.bf16.gmra.mxu0 %v2923
      %v2960 = vpop.f32.mrf.mxu0
      %v2961 = vadd.f32 %v2904, %v2960
      %v2962 = vpop.f32.mrf.mxu0
      %2963 = vdwg.mxu0
      %2964 = vrot.lane.b32.xlu0 %v2841, 19
      %v2965 = vpop.permute.xlu0 %2964
      %2966 = vrot.lane.b32.xlu0 %v2842, 19
      %v2967 = vpop.permute.xlu0 %2966
      %2968 = vrot.lane.b32.xlu0 %v2843, 19
      %v2969 = vpop.permute.xlu0 %2968
      %2970 = vrot.lane.b32.xlu0 %v2844, 19
      %v2971 = vpop.permute.xlu0 %2970
      %vm2972 = vcmask 154624
      %v2973 = vsel %vm2972, %v2965, %v2967
      %v2974 = vsel %vm2972, %v2967, %v2969
      %v2975 = vsel %vm2972, %v2969, %v2971
      %v2980 = vsel %vm2864, %v2805, 0
      %2982 = vmatpush.bf16.msra.mxu0 0
      %2983 = vmatpush.bf16.msra.mxu0 0
      %2984 = vmatpush.bf16.msra.mxu0 0
      %2985 = vmatpush.bf16.msra.mxu0 0
      %2986 = vmatpush.bf16.msra.mxu0 0
      %2987 = vmatpush.bf16.msra.mxu0 0
      %2988 = vmatpush.bf16.msra.mxu0 0
      %2989 = vmatpush.bf16.msra.mxu0 %v2973
      %2990 = vmatmul.bf16.gmra.mxu0 %v2980
      %v2991 = vpop.f32.mrf.mxu0
      %v2992 = vadd.f32 0.0, %v2991
      %v2993 = vpop.f32.mrf.mxu0
      %2994 = vdwg.mxu0
      %2995 = vmatpush.bf16.msra.mxu0 0
      %2996 = vmatpush.bf16.msra.mxu0 0
      %2997 = vmatpush.bf16.msra.mxu0 0
      %2998 = vmatpush.bf16.msra.mxu0 0
      %2999 = vmatpush.bf16.msra.mxu0 0
      %3000 = vmatpush.bf16.msra.mxu0 0
      %3001 = vmatpush.bf16.msra.mxu0 0
      %3002 = vmatpush.bf16.msra.mxu0 %v2974
      %3003 = vmatmul.bf16.gmra.mxu0 %v2980
      %v3004 = vpop.f32.mrf.mxu0
      %v3005 = vadd.f32 0.0, %v3004
      %v3006 = vpop.f32.mrf.mxu0
      %3007 = vdwg.mxu0
      %3008 = vmatpush.bf16.msra.mxu0 0
      %3009 = vmatpush.bf16.msra.mxu0 0
      %3010 = vmatpush.bf16.msra.mxu0 0
      %3011 = vmatpush.bf16.msra.mxu0 0
      %3012 = vmatpush.bf16.msra.mxu0 0
      %3013 = vmatpush.bf16.msra.mxu0 0
      %3014 = vmatpush.bf16.msra.mxu0 0
      %3015 = vmatpush.bf16.msra.mxu0 %v2975
      %3016 = vmatmul.bf16.gmra.mxu0 %v2980
      %v3017 = vpop.f32.mrf.mxu0
      %v3018 = vadd.f32 0.0, %v3017
      %v3019 = vpop.f32.mrf.mxu0
      %3020 = vdwg.mxu0
      %v3021 = vadd.f32 %v2935, %v2992
      %v3022 = vadd.f32 %v2948, %v3005
      %v3023 = vadd.f32 %v2961, %v3018
      %3024 = vrot.lane.b32.xlu0 %v2841, 1
      %v3025 = vpop.permute.xlu0 %3024
      %3026 = vrot.lane.b32.xlu0 %v2842, 1
      %v3027 = vpop.permute.xlu0 %3026
      %3028 = vrot.lane.b32.xlu0 %v2843, 1
      %v3029 = vpop.permute.xlu0 %3028
      %3030 = vrot.lane.b32.xlu0 %v2844, 1
      %v3031 = vpop.permute.xlu0 %3030
      %vm3032 = vcmask 7168
      %v3033 = vsel %vm3032, %v3025, %v3027
      %v3034 = vsel %vm3032, %v3027, %v3029
      %v3035 = vsel %vm3032, %v3029, %v3031
      %v3040 = vsel %vm2864, %v2806, 0
      %3042 = vmatpush.bf16.msra.mxu0 0
      %3043 = vmatpush.bf16.msra.mxu0 0
      %3044 = vmatpush.bf16.msra.mxu0 0
      %3045 = vmatpush.bf16.msra.mxu0 0
      %3046 = vmatpush.bf16.msra.mxu0 0
      %3047 = vmatpush.bf16.msra.mxu0 0
      %3048 = vmatpush.bf16.msra.mxu0 0
      %3049 = vmatpush.bf16.msra.mxu0 %v3033
      %3050 = vmatmul.bf16.gmra.mxu0 %v3040
      %v3051 = vpop.f32.mrf.mxu0
      %v3052 = vadd.f32 0.0, %v3051
      %v3053 = vpop.f32.mrf.mxu0
      %3054 = vdwg.mxu0
      %3055 = vmatpush.bf16.msra.mxu0 0
      %3056 = vmatpush.bf16.msra.mxu0 0
      %3057 = vmatpush.bf16.msra.mxu0 0
      %3058 = vmatpush.bf16.msra.mxu0 0
      %3059 = vmatpush.bf16.msra.mxu0 0
      %3060 = vmatpush.bf16.msra.mxu0 0
      %3061 = vmatpush.bf16.msra.mxu0 0
      %3062 = vmatpush.bf16.msra.mxu0 %v3034
      %3063 = vmatmul.bf16.gmra.mxu0 %v3040
      %v3064 = vpop.f32.mrf.mxu0
      %v3065 = vadd.f32 0.0, %v3064
      %v3066 = vpop.f32.mrf.mxu0
      %3067 = vdwg.mxu0
      %3068 = vmatpush.bf16.msra.mxu0 0
      %3069 = vmatpush.bf16.msra.mxu0 0
      %3070 = vmatpush.bf16.msra.mxu0 0
      %3071 = vmatpush.bf16.msra.mxu0 0
      %3072 = vmatpush.bf16.msra.mxu0 0
      %3073 = vmatpush.bf16.msra.mxu0 0
      %3074 = vmatpush.bf16.msra.mxu0 0
      %3075 = vmatpush.bf16.msra.mxu0 %v3035
      %3076 = vmatmul.bf16.gmra.mxu0 %v3040
      %v3077 = vpop.f32.mrf.mxu0
      %v3078 = vadd.f32 0.0, %v3077
      %v3079 = vpop.f32.mrf.mxu0
      %3080 = vdwg.mxu0
      %v3081 = vadd.f32 %v3021, %v3052
      %v3082 = vadd.f32 %v3022, %v3065
      %v3083 = vadd.f32 %v3023, %v3078
      %v3085 = vsel %vm2864, %v2807, 0
      %3087 = vmatpush.bf16.msra.mxu0 0
      %3088 = vmatpush.bf16.msra.mxu0 0
      %3089 = vmatpush.bf16.msra.mxu0 0
      %3090 = vmatpush.bf16.msra.mxu0 0
      %3091 = vmatpush.bf16.msra.mxu0 0
      %3092 = vmatpush.bf16.msra.mxu0 0
      %3093 = vmatpush.bf16.msra.mxu0 0
      %3094 = vmatpush.bf16.msra.mxu0 %v2842
      %3095 = vmatmul.bf16.gmra.mxu0 %v3085
      %v3096 = vpop.f32.mrf.mxu0
      %v3097 = vadd.f32 0.0, %v3096
      %v3098 = vpop.f32.mrf.mxu0
      %3099 = vdwg.mxu0
      %3100 = vmatpush.bf16.msra.mxu0 0
      %3101 = vmatpush.bf16.msra.mxu0 0
      %3102 = vmatpush.bf16.msra.mxu0 0
      %3103 = vmatpush.bf16.msra.mxu0 0
      %3104 = vmatpush.bf16.msra.mxu0 0
      %3105 = vmatpush.bf16.msra.mxu0 0
      %3106 = vmatpush.bf16.msra.mxu0 0
      %3107 = vmatpush.bf16.msra.mxu0 %v2843
      %3108 = vmatmul.bf16.gmra.mxu0 %v3085
      %v3109 = vpop.f32.mrf.mxu0
      %v3110 = vadd.f32 0.0, %v3109
      %v3111 = vpop.f32.mrf.mxu0
      %3112 = vdwg.mxu0
      %3113 = vmatpush.bf16.msra.mxu0 0
      %3114 = vmatpush.bf16.msra.mxu0 0
      %3115 = vmatpush.bf16.msra.mxu0 0
      %3116 = vmatpush.bf16.msra.mxu0 0
      %3117 = vmatpush.bf16.msra.mxu0 0
      %3118 = vmatpush.bf16.msra.mxu0 0
      %3119 = vmatpush.bf16.msra.mxu0 0
      %3120 = vmatpush.bf16.msra.mxu0 %v2844
      %3121 = vmatmul.bf16.gmra.mxu0 %v3085
      %v3122 = vpop.f32.mrf.mxu0
      %v3123 = vadd.f32 0.0, %v3122
      %v3124 = vpop.f32.mrf.mxu0
      %3125 = vdwg.mxu0
      %v3126 = vadd.f32 %v3081, %v3097
      %v3127 = vadd.f32 %v3082, %v3110
      %v3128 = vadd.f32 %v3083, %v3123
      %3129 = vrot.lane.b32.xlu0 %v2842, 127
      %v3130 = vpop.permute.xlu0 %3129
      %3131 = vrot.lane.b32.xlu0 %v2843, 127
      %v3132 = vpop.permute.xlu0 %3131
      %3133 = vrot.lane.b32.xlu0 %v2844, 127
      %v3134 = vpop.permute.xlu0 %3133
      %vm3135 = vcmask 1039360
      %v3136 = vsel %vm3135, %v3130, %v3132
      %v3137 = vsel %vm3135, %v3132, %v3134
      %v3142 = vsel %vm2864, %v2808, 0
      %3144 = vmatpush.bf16.msra.mxu0 0
      %3145 = vmatpush.bf16.msra.mxu0 0
      %3146 = vmatpush.bf16.msra.mxu0 0
      %3147 = vmatpush.bf16.msra.mxu0 0
      %3148 = vmatpush.bf16.msra.mxu0 0
      %3149 = vmatpush.bf16.msra.mxu0 0
      %3150 = vmatpush.bf16.msra.mxu0 0
      %3151 = vmatpush.bf16.msra.mxu0 %v3136
      %3152 = vmatmul.bf16.gmra.mxu0 %v3142
      %v3153 = vpop.f32.mrf.mxu0
      %v3154 = vadd.f32 0.0, %v3153
      %v3155 = vpop.f32.mrf.mxu0
      %3156 = vdwg.mxu0
      %3157 = vmatpush.bf16.msra.mxu0 0
      %3158 = vmatpush.bf16.msra.mxu0 0
      %3159 = vmatpush.bf16.msra.mxu0 0
      %3160 = vmatpush.bf16.msra.mxu0 0
      %3161 = vmatpush.bf16.msra.mxu0 0
      %3162 = vmatpush.bf16.msra.mxu0 0
      %3163 = vmatpush.bf16.msra.mxu0 0
      %3164 = vmatpush.bf16.msra.mxu0 %v3137
      %3165 = vmatmul.bf16.gmra.mxu0 %v3142
      %v3166 = vpop.f32.mrf.mxu0
      %v3167 = vadd.f32 0.0, %v3166
      %v3168 = vpop.f32.mrf.mxu0
      %3169 = vdwg.mxu0
      %3170 = vmatpush.bf16.msra.mxu0 0
      %3171 = vmatpush.bf16.msra.mxu0 0
      %3172 = vmatpush.bf16.msra.mxu0 0
      %3173 = vmatpush.bf16.msra.mxu0 0
      %3174 = vmatpush.bf16.msra.mxu0 0
      %3175 = vmatpush.bf16.msra.mxu0 0
      %3176 = vmatpush.bf16.msra.mxu0 0
      %3177 = vmatpush.bf16.msra.mxu0 %v3134
      %3178 = vmatmul.bf16.gmra.mxu0 %v3142
      %v3179 = vpop.f32.mrf.mxu0
      %v3180 = vadd.f32 0.0, %v3179
      %v3181 = vpop.f32.mrf.mxu0
      %3182 = vdwg.mxu0
      %v3183 = vadd.f32 %v3126, %v3154
      %v3184 = vadd.f32 %v3127, %v3167
      %v3185 = vadd.f32 %v3128, %v3180
      %3186 = vrot.lane.b32.xlu0 %v2842, 109
      %v3187 = vpop.permute.xlu0 %3186
      %3188 = vrot.lane.b32.xlu0 %v2843, 109
      %v3189 = vpop.permute.xlu0 %3188
      %3190 = vrot.lane.b32.xlu0 %v2844, 109
      %v3191 = vpop.permute.xlu0 %3190
      %vm3192 = vcmask 891904
      %v3193 = vsel %vm3192, %v3187, %v3189
      %v3194 = vsel %vm3192, %v3189, %v3191
      %v3199 = vsel %vm2864, %v2809, 0
      %3201 = vmatpush.bf16.msra.mxu0 0
      %3202 = vmatpush.bf16.msra.mxu0 0
      %3203 = vmatpush.bf16.msra.mxu0 0
      %3204 = vmatpush.bf16.msra.mxu0 0
      %3205 = vmatpush.bf16.msra.mxu0 0
      %3206 = vmatpush.bf16.msra.mxu0 0
      %3207 = vmatpush.bf16.msra.mxu0 0
      %3208 = vmatpush.bf16.msra.mxu0 %v3193
      %3209 = vmatmul.bf16.gmra.mxu0 %v3199
      %v3210 = vpop.f32.mrf.mxu0
      %v3211 = vadd.f32 0.0, %v3210
      %v3212 = vpop.f32.mrf.mxu0
      %3213 = vdwg.mxu0
      %3214 = vmatpush.bf16.msra.mxu0 0
      %3215 = vmatpush.bf16.msra.mxu0 0
      %3216 = vmatpush.bf16.msra.mxu0 0
      %3217 = vmatpush.bf16.msra.mxu0 0
      %3218 = vmatpush.bf16.msra.mxu0 0
      %3219 = vmatpush.bf16.msra.mxu0 0
      %3220 = vmatpush.bf16.msra.mxu0 0
      %3221 = vmatpush.bf16.msra.mxu0 %v3194
      %3222 = vmatmul.bf16.gmra.mxu0 %v3199
      %v3223 = vpop.f32.mrf.mxu0
      %v3224 = vadd.f32 0.0, %v3223
      %v3225 = vpop.f32.mrf.mxu0
      %3226 = vdwg.mxu0
      %3227 = vmatpush.bf16.msra.mxu0 0
      %3228 = vmatpush.bf16.msra.mxu0 0
      %3229 = vmatpush.bf16.msra.mxu0 0
      %3230 = vmatpush.bf16.msra.mxu0 0
      %3231 = vmatpush.bf16.msra.mxu0 0
      %3232 = vmatpush.bf16.msra.mxu0 0
      %3233 = vmatpush.bf16.msra.mxu0 0
      %3234 = vmatpush.bf16.msra.mxu0 %v3191
      %3235 = vmatmul.bf16.gmra.mxu0 %v3199
      %v3236 = vpop.f32.mrf.mxu0
      %v3237 = vadd.f32 0.0, %v3236
      %v3238 = vpop.f32.mrf.mxu0
      %3239 = vdwg.mxu0
      %v3240 = vadd.f32 %v3183, %v3211
      %v3241 = vadd.f32 %v3184, %v3224
      %v3242 = vadd.f32 %v3185, %v3237
      %3243 = vrot.lane.b32.xlu0 %v2842, 108
      %v3244 = vpop.permute.xlu0 %3243
      %3245 = vrot.lane.b32.xlu0 %v2843, 108
      %v3246 = vpop.permute.xlu0 %3245
      %3247 = vrot.lane.b32.xlu0 %v2844, 108
      %v3248 = vpop.permute.xlu0 %3247
      %vm3249 = vcmask 883712
      %v3250 = vsel %vm3249, %v3244, %v3246
      %v3251 = vsel %vm3249, %v3246, %v3248
      %v3256 = vsel %vm2864, %v2810, 0
      %3258 = vmatpush.bf16.msra.mxu0 0
      %3259 = vmatpush.bf16.msra.mxu0 0
      %3260 = vmatpush.bf16.msra.mxu0 0
      %3261 = vmatpush.bf16.msra.mxu0 0
      %3262 = vmatpush.bf16.msra.mxu0 0
      %3263 = vmatpush.bf16.msra.mxu0 0
      %3264 = vmatpush.bf16.msra.mxu0 0
      %3265 = vmatpush.bf16.msra.mxu0 %v3250
      %3266 = vmatmul.bf16.gmra.mxu0 %v3256
      %v3267 = vpop.f32.mrf.mxu0
      %v3268 = vadd.f32 0.0, %v3267
      %v3269 = vpop.f32.mrf.mxu0
      %3270 = vdwg.mxu0
      %3271 = vmatpush.bf16.msra.mxu0 0
      %3272 = vmatpush.bf16.msra.mxu0 0
      %3273 = vmatpush.bf16.msra.mxu0 0
      %3274 = vmatpush.bf16.msra.mxu0 0
      %3275 = vmatpush.bf16.msra.mxu0 0
      %3276 = vmatpush.bf16.msra.mxu0 0
      %3277 = vmatpush.bf16.msra.mxu0 0
      %3278 = vmatpush.bf16.msra.mxu0 %v3251
      %3279 = vmatmul.bf16.gmra.mxu0 %v3256
      %v3280 = vpop.f32.mrf.mxu0
      %v3281 = vadd.f32 0.0, %v3280
      %v3282 = vpop.f32.mrf.mxu0
      %3283 = vdwg.mxu0
      %3284 = vmatpush.bf16.msra.mxu0 0
      %3285 = vmatpush.bf16.msra.mxu0 0
      %3286 = vmatpush.bf16.msra.mxu0 0
      %3287 = vmatpush.bf16.msra.mxu0 0
      %3288 = vmatpush.bf16.msra.mxu0 0
      %3289 = vmatpush.bf16.msra.mxu0 0
      %3290 = vmatpush.bf16.msra.mxu0 0
      %3291 = vmatpush.bf16.msra.mxu0 %v3248
      %3292 = vmatmul.bf16.gmra.mxu0 %v3256
      %v3293 = vpop.f32.mrf.mxu0
      %v3294 = vadd.f32 0.0, %v3293
      %v3295 = vpop.f32.mrf.mxu0
      %3296 = vdwg.mxu0
      %v3297 = vadd.f32 %v3240, %v3268
      %v3298 = vadd.f32 %v3241, %v3281
      %v3299 = vadd.f32 %v3242, %v3294
      %3300 = vrot.lane.b32.xlu0 %v2842, 107
      %v3301 = vpop.permute.xlu0 %3300
      %3302 = vrot.lane.b32.xlu0 %v2843, 107
      %v3303 = vpop.permute.xlu0 %3302
      %3304 = vrot.lane.b32.xlu0 %v2844, 107
      %v3305 = vpop.permute.xlu0 %3304
      %vm3306 = vcmask 875520
      %v3307 = vsel %vm3306, %v3301, %v3303
      %v3308 = vsel %vm3306, %v3303, %v3305
      %v3313 = vsel %vm2864, %v2811, 0
      %3315 = vmatpush.bf16.msra.mxu0 0
      %3316 = vmatpush.bf16.msra.mxu0 0
      %3317 = vmatpush.bf16.msra.mxu0 0
      %3318 = vmatpush.bf16.msra.mxu0 0
      %3319 = vmatpush.bf16.msra.mxu0 0
      %3320 = vmatpush.bf16.msra.mxu0 0
      %3321 = vmatpush.bf16.msra.mxu0 0
      %3322 = vmatpush.bf16.msra.mxu0 %v3307
      %3323 = vmatmul.bf16.gmra.mxu0 %v3313
      %v3324 = vpop.f32.mrf.mxu0
      %v3325 = vadd.f32 0.0, %v3324
      %v3326 = vpop.f32.mrf.mxu0
      %3327 = vdwg.mxu0
      %3328 = vmatpush.bf16.msra.mxu0 0
      %3329 = vmatpush.bf16.msra.mxu0 0
      %3330 = vmatpush.bf16.msra.mxu0 0
      %3331 = vmatpush.bf16.msra.mxu0 0
      %3332 = vmatpush.bf16.msra.mxu0 0
      %3333 = vmatpush.bf16.msra.mxu0 0
      %3334 = vmatpush.bf16.msra.mxu0 0
      %3335 = vmatpush.bf16.msra.mxu0 %v3308
      %3336 = vmatmul.bf16.gmra.mxu0 %v3313
      %v3337 = vpop.f32.mrf.mxu0
      %v3338 = vadd.f32 0.0, %v3337
      %v3339 = vpop.f32.mrf.mxu0
      %3340 = vdwg.mxu0
      %3341 = vmatpush.bf16.msra.mxu0 0
      %3342 = vmatpush.bf16.msra.mxu0 0
      %3343 = vmatpush.bf16.msra.mxu0 0
      %3344 = vmatpush.bf16.msra.mxu0 0
      %3345 = vmatpush.bf16.msra.mxu0 0
      %3346 = vmatpush.bf16.msra.mxu0 0
      %3347 = vmatpush.bf16.msra.mxu0 0
      %3348 = vmatpush.bf16.msra.mxu0 %v3305
      %3349 = vmatmul.bf16.gmra.mxu0 %v3313
      %v3350 = vpop.f32.mrf.mxu0
      %v3351 = vadd.f32 0.0, %v3350
      %v3352 = vpop.f32.mrf.mxu0
      %3353 = vdwg.mxu0
      %v3354 = vadd.f32 %v3297, %v3325
      %v3355 = vadd.f32 %v3298, %v3338
      %v3356 = vadd.f32 %v3299, %v3351
      %3358 = vset.pattern.permute.xlu0 0
      %3359 = vperm.xlu0 %3358, %v2812
      %v3360 = vpop.permute.xlu0 %3359
      %v3362 = vadd.f32 %v3354, %v3360
      %v3363 = vadd.f32 %v3355, %v3360
      %v3364 = vadd.f32 %v3356, %v3360
      %v3365 = vld [vmem:[%s10] sm:$0xf]
      %v3366 = vld [vmem:[%s10 + $0x4] sm:$0xf]
      %v3367 = vld [vmem:[%s10 + $0x8] sm:$0xf]
      %v3368 = vld [vmem:[%s10 + $0xc] sm:$0xf]
      %v3369 = vld [vmem:[%s10 + $0x10] sm:$0xf]
      %v3370 = vld [vmem:[%s10 + $0x14] sm:$0xf]
      %v3371 = vld [vmem:[%s10 + $0x18] sm:$0xf]
      %v3372 = vld [vmem:[%s10 + $0x1c] sm:$0xf]
      %v3373 = vld [vmem:[%s10 + $0x20] sm:$0xf]
      %v3374 = vld [vmem:[%s10 + $0x24] sm:$0xf]
      %v3375 = vld [vmem:[%s10 + $0x28] sm:$0xf]
      %v3376 = vld [vmem:[%s10 + $0x2c] sm:$0xf]
      %v3377 = vld [vmem:[%s10 + $0x30] sm:$0xf]
      %v3378 = vld [vmem:[%s10 + $0x34] sm:$0xf]
      %v3379 = vld [vmem:[%s10 + $0x38] sm:$0xf]
      %v3380 = vld [vmem:[%s10 + $0x3c] sm:$0xf]
      %v3381 = vld [vmem:[%s10 + $0x40] sm:$0xf]
      %v3382 = vld [vmem:[%s10 + $0x44] sm:$0xf]
      %v3383 = vld [vmem:[%s10 + $0x48] sm:$0xf]
      %v3384 = vld [vmem:[%s10 + $0x4c] sm:$0xf]
      %v3385 = vld [vmem:[%s10 + $0x50] sm:$0xf]
      %v3386 = vld [vmem:[%s10 + $0x54] sm:$0xf]
      %v3387 = vld [vmem:[%s10 + $0x58] sm:$0xf]
      %v3388 = vld [vmem:[%s10 + $0x5c] sm:$0xf]
      %v3389 = vld [vmem:[%s10 + $0x60] sm:$0xf]
      %v3390 = vld [vmem:[%s11] sm:$0xf]
      %3391 = vst.msk [vmem:[%s448] ss:$8 sm:$0x7] %vm447, %v443
      %3392 = vst.msk [vmem:[%s448] ss:$8 sm:$0x0] %vm447, %v443
      %v3393 = vld [vmem:[#allocation2] ss:$8 sm:$0xf]
      %3395 = vset.pattern.permute.xlu0 0
      %3396 = vperm.xlu0 %3395, %v3365
      %v3397 = vpop.permute.xlu0 %3396
      %v3400 = vperm.slane %v3393, 0
      %v3401 = vperm.slane %v3393, 1
      %v3402 = vperm.slane %v3393, 2
      %v3403 = vperm.slane %v3393, 3
      %v3408 = vmul.f32 %v3397, %v3400
      %v3409 = vmul.f32 %v3397, %v3401
      %v3410 = vmul.f32 %v3397, %v3402
      %v3411 = vmul.f32 %v3397, %v3403
      %v3412 = vadd.f32 %v3408, 0.0
      %v3413 = vadd.f32 %v3409, 0.0
      %v3414 = vadd.f32 %v3410, 0.0
      %v3415 = vadd.f32 %v3411, 0.0
      %3417 = vset.pattern.permute.xlu0 0
      %3418 = vperm.xlu0 %3417, %v3366
      %v3419 = vpop.permute.xlu0 %3418
      %v3421 = vmul.f32 %v3419, %v3400
      %v3422 = vmul.f32 %v3419, %v3401
      %v3423 = vmul.f32 %v3419, %v3402
      %v3424 = vmul.f32 %v3419, %v3403
      %3429 = vrot.lane.b32.xlu0 %v3421, 127
      %v3430 = vpop.permute.xlu0 %3429
      %3431 = vrot.lane.b32.xlu0 %v3422, 127
      %v3432 = vpop.permute.xlu0 %3431
      %3433 = vrot.lane.b32.xlu0 %v3423, 127
      %v3434 = vpop.permute.xlu0 %3433
      %3435 = vrot.lane.b32.xlu0 %v3424, 127
      %v3436 = vpop.permute.xlu0 %3435
      %v3437 = vsel %vm529, %v3430, %v3432
      %v3438 = vsel %vm529, %v3432, %v3434
      %v3439 = vsel %vm529, %v3434, %v3436
      %v3444 = vadd.f32 %v3412, %v3437
      %v3445 = vadd.f32 %v3413, %v3438
      %v3446 = vadd.f32 %v3414, %v3439
      %v3447 = vadd.f32 %v3415, %v3436
      %3449 = vset.pattern.permute.xlu0 0
      %3450 = vperm.xlu0 %3449, %v3367
      %v3451 = vpop.permute.xlu0 %3450
      %v3453 = vmul.f32 %v3451, %v3400
      %v3454 = vmul.f32 %v3451, %v3401
      %v3455 = vmul.f32 %v3451, %v3402
      %v3456 = vmul.f32 %v3451, %v3403
      %3461 = vrot.lane.b32.xlu0 %v3453, 126
      %v3462 = vpop.permute.xlu0 %3461
      %3463 = vrot.lane.b32.xlu0 %v3454, 126
      %v3464 = vpop.permute.xlu0 %3463
      %3465 = vrot.lane.b32.xlu0 %v3455, 126
      %v3466 = vpop.permute.xlu0 %3465
      %3467 = vrot.lane.b32.xlu0 %v3456, 126
      %v3468 = vpop.permute.xlu0 %3467
      %v3469 = vsel %vm594, %v3462, %v3464
      %v3470 = vsel %vm594, %v3464, %v3466
      %v3471 = vsel %vm594, %v3466, %v3468
      %v3476 = vadd.f32 %v3444, %v3469
      %v3477 = vadd.f32 %v3445, %v3470
      %v3478 = vadd.f32 %v3446, %v3471
      %v3479 = vadd.f32 %v3447, %v3468
      %3481 = vset.pattern.permute.xlu0 0
      %3482 = vperm.xlu0 %3481, %v3368
      %v3483 = vpop.permute.xlu0 %3482
      %v3485 = vmul.f32 %v3483, %v3400
      %v3486 = vmul.f32 %v3483, %v3401
      %v3487 = vmul.f32 %v3483, %v3402
      %v3488 = vmul.f32 %v3483, %v3403
      %3493 = vrot.lane.b32.xlu0 %v3485, 125
      %v3494 = vpop.permute.xlu0 %3493
      %3495 = vrot.lane.b32.xlu0 %v3486, 125
      %v3496 = vpop.permute.xlu0 %3495
      %3497 = vrot.lane.b32.xlu0 %v3487, 125
      %v3498 = vpop.permute.xlu0 %3497
      %3499 = vrot.lane.b32.xlu0 %v3488, 125
      %v3500 = vpop.permute.xlu0 %3499
      %vm3501 = vcmask 1022976
      %v3502 = vsel %vm3501, %v3494, %v3496
      %v3503 = vsel %vm3501, %v3496, %v3498
      %v3504 = vsel %vm3501, %v3498, %v3500
      %v3509 = vadd.f32 %v3476, %v3502
      %v3510 = vadd.f32 %v3477, %v3503
      %v3511 = vadd.f32 %v3478, %v3504
      %v3512 = vadd.f32 %v3479, %v3500
      %3514 = vset.pattern.permute.xlu0 0
      %3515 = vperm.xlu0 %3514, %v3369
      %v3516 = vpop.permute.xlu0 %3515
      %v3518 = vmul.f32 %v3516, %v3400
      %v3519 = vmul.f32 %v3516, %v3401
      %v3520 = vmul.f32 %v3516, %v3402
      %v3521 = vmul.f32 %v3516, %v3403
      %3526 = vrot.lane.b32.xlu0 %v3518, 124
      %v3527 = vpop.permute.xlu0 %3526
      %3528 = vrot.lane.b32.xlu0 %v3519, 124
      %v3529 = vpop.permute.xlu0 %3528
      %3530 = vrot.lane.b32.xlu0 %v3520, 124
      %v3531 = vpop.permute.xlu0 %3530
      %3532 = vrot.lane.b32.xlu0 %v3521, 124
      %v3533 = vpop.permute.xlu0 %3532
      %vm3534 = vcmask 1014784
      %v3535 = vsel %vm3534, %v3527, %v3529
      %v3536 = vsel %vm3534, %v3529, %v3531
      %v3537 = vsel %vm3534, %v3531, %v3533
      %v3542 = vadd.f32 %v3509, %v3535
      %v3543 = vadd.f32 %v3510, %v3536
      %v3544 = vadd.f32 %v3511, %v3537
      %v3545 = vadd.f32 %v3512, %v3533
      %3547 = vset.pattern.permute.xlu0 0
      %3548 = vperm.xlu0 %3547, %v3370
      %v3549 = vpop.permute.xlu0 %3548
      %v3551 = vmul.f32 %v3549, %v3400
      %v3552 = vmul.f32 %v3549, %v3401
      %v3553 = vmul.f32 %v3549, %v3402
      %v3554 = vmul.f32 %v3549, %v3403
      %3559 = vrot.lane.b32.xlu0 %v3551, 108
      %v3560 = vpop.permute.xlu0 %3559
      %3561 = vrot.lane.b32.xlu0 %v3552, 108
      %v3562 = vpop.permute.xlu0 %3561
      %3563 = vrot.lane.b32.xlu0 %v3553, 108
      %v3564 = vpop.permute.xlu0 %3563
      %3565 = vrot.lane.b32.xlu0 %v3554, 108
      %v3566 = vpop.permute.xlu0 %3565
      %v3567 = vsel %vm659, %v3560, %v3562
      %v3568 = vsel %vm659, %v3562, %v3564
      %v3569 = vsel %vm659, %v3564, %v3566
      %v3574 = vadd.f32 %v3542, %v3567
      %v3575 = vadd.f32 %v3543, %v3568
      %v3576 = vadd.f32 %v3544, %v3569
      %v3577 = vadd.f32 %v3545, %v3566
      %3579 = vset.pattern.permute.xlu0 0
      %3580 = vperm.xlu0 %3579, %v3371
      %v3581 = vpop.permute.xlu0 %3580
      %v3583 = vmul.f32 %v3581, %v3400
      %v3584 = vmul.f32 %v3581, %v3401
      %v3585 = vmul.f32 %v3581, %v3402
      %v3586 = vmul.f32 %v3581, %v3403
      %3591 = vrot.lane.b32.xlu0 %v3583, 107
      %v3592 = vpop.permute.xlu0 %3591
      %3593 = vrot.lane.b32.xlu0 %v3584, 107
      %v3594 = vpop.permute.xlu0 %3593
      %3595 = vrot.lane.b32.xlu0 %v3585, 107
      %v3596 = vpop.permute.xlu0 %3595
      %3597 = vrot.lane.b32.xlu0 %v3586, 107
      %v3598 = vpop.permute.xlu0 %3597
      %v3599 = vsel %vm724, %v3592, %v3594
      %v3600 = vsel %vm724, %v3594, %v3596
      %v3601 = vsel %vm724, %v3596, %v3598
      %v3606 = vadd.f32 %v3574, %v3599
      %v3607 = vadd.f32 %v3575, %v3600
      %v3608 = vadd.f32 %v3576, %v3601
      %v3609 = vadd.f32 %v3577, %v3598
      %3611 = vset.pattern.permute.xlu0 0
      %3612 = vperm.xlu0 %3611, %v3372
      %v3613 = vpop.permute.xlu0 %3612
      %v3615 = vmul.f32 %v3613, %v3400
      %v3616 = vmul.f32 %v3613, %v3401
      %v3617 = vmul.f32 %v3613, %v3402
      %v3618 = vmul.f32 %v3613, %v3403
      %3623 = vrot.lane.b32.xlu0 %v3615, 106
      %v3624 = vpop.permute.xlu0 %3623
      %3625 = vrot.lane.b32.xlu0 %v3616, 106
      %v3626 = vpop.permute.xlu0 %3625
      %3627 = vrot.lane.b32.xlu0 %v3617, 106
      %v3628 = vpop.permute.xlu0 %3627
      %3629 = vrot.lane.b32.xlu0 %v3618, 106
      %v3630 = vpop.permute.xlu0 %3629
      %v3631 = vsel %vm779, %v3624, %v3626
      %v3632 = vsel %vm779, %v3626, %v3628
      %v3633 = vsel %vm779, %v3628, %v3630
      %v3638 = vadd.f32 %v3606, %v3631
      %v3639 = vadd.f32 %v3607, %v3632
      %v3640 = vadd.f32 %v3608, %v3633
      %v3641 = vadd.f32 %v3609, %v3630
      %3643 = vset.pattern.permute.xlu0 0
      %3644 = vperm.xlu0 %3643, %v3373
      %v3645 = vpop.permute.xlu0 %3644
      %v3647 = vmul.f32 %v3645, %v3400
      %v3648 = vmul.f32 %v3645, %v3401
      %v3649 = vmul.f32 %v3645, %v3402
      %v3650 = vmul.f32 %v3645, %v3403
      %3655 = vrot.lane.b32.xlu0 %v3647, 105
      %v3656 = vpop.permute.xlu0 %3655
      %3657 = vrot.lane.b32.xlu0 %v3648, 105
      %v3658 = vpop.permute.xlu0 %3657
      %3659 = vrot.lane.b32.xlu0 %v3649, 105
      %v3660 = vpop.permute.xlu0 %3659
      %3661 = vrot.lane.b32.xlu0 %v3650, 105
      %v3662 = vpop.permute.xlu0 %3661
      %vm3663 = vcmask 859136
      %v3664 = vsel %vm3663, %v3656, %v3658
      %v3665 = vsel %vm3663, %v3658, %v3660
      %v3666 = vsel %vm3663, %v3660, %v3662
      %v3671 = vadd.f32 %v3638, %v3664
      %v3672 = vadd.f32 %v3639, %v3665
      %v3673 = vadd.f32 %v3640, %v3666
      %v3674 = vadd.f32 %v3641, %v3662
      %3676 = vset.pattern.permute.xlu0 0
      %3677 = vperm.xlu0 %3676, %v3374
      %v3678 = vpop.permute.xlu0 %3677
      %v3680 = vmul.f32 %v3678, %v3400
      %v3681 = vmul.f32 %v3678, %v3401
      %v3682 = vmul.f32 %v3678, %v3402
      %v3683 = vmul.f32 %v3678, %v3403
      %3688 = vrot.lane.b32.xlu0 %v3680, 104
      %v3689 = vpop.permute.xlu0 %3688
      %3690 = vrot.lane.b32.xlu0 %v3681, 104
      %v3691 = vpop.permute.xlu0 %3690
      %3692 = vrot.lane.b32.xlu0 %v3682, 104
      %v3693 = vpop.permute.xlu0 %3692
      %3694 = vrot.lane.b32.xlu0 %v3683, 104
      %v3695 = vpop.permute.xlu0 %3694
      %vm3696 = vcmask 850944
      %v3697 = vsel %vm3696, %v3689, %v3691
      %v3698 = vsel %vm3696, %v3691, %v3693
      %v3699 = vsel %vm3696, %v3693, %v3695
      %v3704 = vadd.f32 %v3671, %v3697
      %v3705 = vadd.f32 %v3672, %v3698
      %v3706 = vadd.f32 %v3673, %v3699
      %v3707 = vadd.f32 %v3674, %v3695
      %3709 = vset.pattern.permute.xlu0 0
      %3710 = vperm.xlu0 %3709, %v3375
      %v3711 = vpop.permute.xlu0 %3710
      %v3713 = vmul.f32 %v3711, %v3400
      %v3714 = vmul.f32 %v3711, %v3401
      %v3715 = vmul.f32 %v3711, %v3402
      %v3716 = vmul.f32 %v3711, %v3403
      %3721 = vrot.lane.b32.xlu0 %v3713, 88
      %v3722 = vpop.permute.xlu0 %3721
      %3723 = vrot.lane.b32.xlu0 %v3714, 88
      %v3724 = vpop.permute.xlu0 %3723
      %3725 = vrot.lane.b32.xlu0 %v3715, 88
      %v3726 = vpop.permute.xlu0 %3725
      %3727 = vrot.lane.b32.xlu0 %v3716, 88
      %v3728 = vpop.permute.xlu0 %3727
      %v3729 = vsel %vm834, %v3722, %v3724
      %v3730 = vsel %vm834, %v3724, %v3726
      %v3731 = vsel %vm834, %v3726, %v3728
      %v3736 = vadd.f32 %v3704, %v3729
      %v3737 = vadd.f32 %v3705, %v3730
      %v3738 = vadd.f32 %v3706, %v3731
      %v3739 = vadd.f32 %v3707, %v3728
      %3741 = vset.pattern.permute.xlu0 0
      %3742 = vperm.xlu0 %3741, %v3376
      %v3743 = vpop.permute.xlu0 %3742
      %v3745 = vmul.f32 %v3743, %v3400
      %v3746 = vmul.f32 %v3743, %v3401
      %v3747 = vmul.f32 %v3743, %v3402
      %v3748 = vmul.f32 %v3743, %v3403
      %3753 = vrot.lane.b32.xlu0 %v3745, 87
      %v3754 = vpop.permute.xlu0 %3753
      %3755 = vrot.lane.b32.xlu0 %v3746, 87
      %v3756 = vpop.permute.xlu0 %3755
      %3757 = vrot.lane.b32.xlu0 %v3747, 87
      %v3758 = vpop.permute.xlu0 %3757
      %3759 = vrot.lane.b32.xlu0 %v3748, 87
      %v3760 = vpop.permute.xlu0 %3759
      %v3761 = vsel %vm889, %v3754, %v3756
      %v3762 = vsel %vm889, %v3756, %v3758
      %v3763 = vsel %vm889, %v3758, %v3760
      %v3768 = vadd.f32 %v3736, %v3761
      %v3769 = vadd.f32 %v3737, %v3762
      %v3770 = vadd.f32 %v3738, %v3763
      %v3771 = vadd.f32 %v3739, %v3760
      %v3772 = vld [vmem:[%s448] ss:$8 sm:$0x7]
      %3774 = vset.pattern.permute.xlu0 0
      %3775 = vperm.xlu0 %3774, %v3377
      %v3776 = vpop.permute.xlu0 %3775
      %v3779 = vperm.slane %v3772, 0
      %v3780 = vperm.slane %v3772, 1
      %v3781 = vperm.slane %v3772, 2
      %v3785 = vmul.f32 %v3776, %v3779
      %v3786 = vmul.f32 %v3776, %v3780
      %v3787 = vmul.f32 %v3776, %v3781
      %3791 = vrot.lane.b32.xlu0 %v3785, 86
      %v3792 = vpop.permute.xlu0 %3791
      %3793 = vrot.lane.b32.xlu0 %v3786, 86
      %v3794 = vpop.permute.xlu0 %3793
      %3795 = vrot.lane.b32.xlu0 %v3787, 86
      %v3796 = vpop.permute.xlu0 %3795
      %v3797 = vsel %vm944, %v3792, %v3794
      %v3798 = vsel %vm944, %v3794, %v3796
      %v3803 = vadd.f32 %v3768, %v3792
      %v3804 = vadd.f32 %v3769, %v3797
      %v3805 = vadd.f32 %v3770, %v3798
      %v3806 = vadd.f32 %v3771, %v3796
      %3808 = vset.pattern.permute.xlu0 0
      %3809 = vperm.xlu0 %3808, %v3378
      %v3810 = vpop.permute.xlu0 %3809
      %v3812 = vmul.f32 %v3810, %v3779
      %v3813 = vmul.f32 %v3810, %v3780
      %v3814 = vmul.f32 %v3810, %v3781
      %3818 = vrot.lane.b32.xlu0 %v3812, 85
      %v3819 = vpop.permute.xlu0 %3818
      %3820 = vrot.lane.b32.xlu0 %v3813, 85
      %v3821 = vpop.permute.xlu0 %3820
      %3822 = vrot.lane.b32.xlu0 %v3814, 85
      %v3823 = vpop.permute.xlu0 %3822
      %vm3824 = vcmask 695296
      %v3825 = vsel %vm3824, %v3819, %v3821
      %v3826 = vsel %vm3824, %v3821, %v3823
      %v3831 = vadd.f32 %v3803, %v3819
      %v3832 = vadd.f32 %v3804, %v3825
      %v3833 = vadd.f32 %v3805, %v3826
      %v3834 = vadd.f32 %v3806, %v3823
      %3836 = vset.pattern.permute.xlu0 0
      %3837 = vperm.xlu0 %3836, %v3379
      %v3838 = vpop.permute.xlu0 %3837
      %v3840 = vmul.f32 %v3838, %v3779
      %v3841 = vmul.f32 %v3838, %v3780
      %v3842 = vmul.f32 %v3838, %v3781
      %3846 = vrot.lane.b32.xlu0 %v3840, 84
      %v3847 = vpop.permute.xlu0 %3846
      %3848 = vrot.lane.b32.xlu0 %v3841, 84
      %v3849 = vpop.permute.xlu0 %3848
      %3850 = vrot.lane.b32.xlu0 %v3842, 84
      %v3851 = vpop.permute.xlu0 %3850
      %vm3852 = vcmask 687104
      %v3853 = vsel %vm3852, %v3847, %v3849
      %v3854 = vsel %vm3852, %v3849, %v3851
      %v3859 = vadd.f32 %v3831, %v3847
      %v3860 = vadd.f32 %v3832, %v3853
      %v3861 = vadd.f32 %v3833, %v3854
      %v3862 = vadd.f32 %v3834, %v3851
      %3864 = vset.pattern.permute.xlu0 0
      %3865 = vperm.xlu0 %3864, %v3380
      %v3866 = vpop.permute.xlu0 %3865
      %v3868 = vmul.f32 %v3866, %v3779
      %v3869 = vmul.f32 %v3866, %v3780
      %v3870 = vmul.f32 %v3866, %v3781
      %3874 = vrot.lane.b32.xlu0 %v3868, 68
      %v3875 = vpop.permute.xlu0 %3874
      %3876 = vrot.lane.b32.xlu0 %v3869, 68
      %v3877 = vpop.permute.xlu0 %3876
      %3878 = vrot.lane.b32.xlu0 %v3870, 68
      %v3879 = vpop.permute.xlu0 %3878
      %vm3880 = vcmask 556032
      %v3881 = vsel %vm3880, %v3875, %v3877
      %v3882 = vsel %vm3880, %v3877, %v3879
      %v3887 = vadd.f32 %v3859, %v3875
      %v3888 = vadd.f32 %v3860, %v3881
      %v3889 = vadd.f32 %v3861, %v3882
      %v3890 = vadd.f32 %v3862, %v3879
      %3892 = vset.pattern.permute.xlu0 0
      %3893 = vperm.xlu0 %3892, %v3381
      %v3894 = vpop.permute.xlu0 %3893
      %v3896 = vmul.f32 %v3894, %v3779
      %v3897 = vmul.f32 %v3894, %v3780
      %v3898 = vmul.f32 %v3894, %v3781
      %3902 = vrot.lane.b32.xlu0 %v3896, 67
      %v3903 = vpop.permute.xlu0 %3902
      %3904 = vrot.lane.b32.xlu0 %v3897, 67
      %v3905 = vpop.permute.xlu0 %3904
      %3906 = vrot.lane.b32.xlu0 %v3898, 67
      %v3907 = vpop.permute.xlu0 %3906
      %vm3908 = vcmask 547840
      %v3909 = vsel %vm3908, %v3903, %v3905
      %v3910 = vsel %vm3908, %v3905, %v3907
      %v3915 = vadd.f32 %v3887, %v3903
      %v3916 = vadd.f32 %v3888, %v3909
      %v3917 = vadd.f32 %v3889, %v3910
      %v3918 = vadd.f32 %v3890, %v3907
      %3920 = vset.pattern.permute.xlu0 0
      %3921 = vperm.xlu0 %3920, %v3382
      %v3922 = vpop.permute.xlu0 %3921
      %v3924 = vmul.f32 %v3922, %v3779
      %v3925 = vmul.f32 %v3922, %v3780
      %v3926 = vmul.f32 %v3922, %v3781
      %3930 = vrot.lane.b32.xlu0 %v3924, 66
      %v3931 = vpop.permute.xlu0 %3930
      %3932 = vrot.lane.b32.xlu0 %v3925, 66
      %v3933 = vpop.permute.xlu0 %3932
      %3934 = vrot.lane.b32.xlu0 %v3926, 66
      %v3935 = vpop.permute.xlu0 %3934
      %vm3936 = vcmask 539648
      %v3937 = vsel %vm3936, %v3931, %v3933
      %v3938 = vsel %vm3936, %v3933, %v3935
      %v3943 = vadd.f32 %v3915, %v3931
      %v3944 = vadd.f32 %v3916, %v3937
      %v3945 = vadd.f32 %v3917, %v3938
      %v3946 = vadd.f32 %v3918, %v3935
      %3948 = vset.pattern.permute.xlu0 0
      %3949 = vperm.xlu0 %3948, %v3383
      %v3950 = vpop.permute.xlu0 %3949
      %v3952 = vmul.f32 %v3950, %v3779
      %v3953 = vmul.f32 %v3950, %v3780
      %v3954 = vmul.f32 %v3950, %v3781
      %3958 = vrot.lane.b32.xlu0 %v3952, 65
      %v3959 = vpop.permute.xlu0 %3958
      %3960 = vrot.lane.b32.xlu0 %v3953, 65
      %v3961 = vpop.permute.xlu0 %3960
      %3962 = vrot.lane.b32.xlu0 %v3954, 65
      %v3963 = vpop.permute.xlu0 %3962
      %vm3964 = vcmask 531456
      %v3965 = vsel %vm3964, %v3959, %v3961
      %v3966 = vsel %vm3964, %v3961, %v3963
      %v3971 = vadd.f32 %v3943, %v3959
      %v3972 = vadd.f32 %v3944, %v3965
      %v3973 = vadd.f32 %v3945, %v3966
      %v3974 = vadd.f32 %v3946, %v3963
      %3976 = vset.pattern.permute.xlu0 0
      %3977 = vperm.xlu0 %3976, %v3384
      %v3978 = vpop.permute.xlu0 %3977
      %v3980 = vmul.f32 %v3978, %v3779
      %v3981 = vmul.f32 %v3978, %v3780
      %v3982 = vmul.f32 %v3978, %v3781
      %3986 = vrot.lane.b32.xlu0 %v3980, 64
      %v3987 = vpop.permute.xlu0 %3986
      %3988 = vrot.lane.b32.xlu0 %v3981, 64
      %v3989 = vpop.permute.xlu0 %3988
      %3990 = vrot.lane.b32.xlu0 %v3982, 64
      %v3991 = vpop.permute.xlu0 %3990
      %v3992 = vsel %vm2828, %v3987, %v3989
      %v3993 = vsel %vm2828, %v3989, %v3991
      %v3998 = vadd.f32 %v3971, %v3987
      %v3999 = vadd.f32 %v3972, %v3992
      %v4000 = vadd.f32 %v3973, %v3993
      %v4001 = vadd.f32 %v3974, %v3991
      %4003 = vset.pattern.permute.xlu0 0
      %4004 = vperm.xlu0 %4003, %v3385
      %v4005 = vpop.permute.xlu0 %4004
      %v4007 = vmul.f32 %v4005, %v3779
      %v4008 = vmul.f32 %v4005, %v3780
      %v4009 = vmul.f32 %v4005, %v3781
      %4013 = vrot.lane.b32.xlu0 %v4007, 48
      %v4014 = vpop.permute.xlu0 %4013
      %4015 = vrot.lane.b32.xlu0 %v4008, 48
      %v4016 = vpop.permute.xlu0 %4015
      %4017 = vrot.lane.b32.xlu0 %v4009, 48
      %v4018 = vpop.permute.xlu0 %4017
      %vm4019 = vcmask 392192
      %v4020 = vsel %vm4019, %v4014, %v4016
      %v4021 = vsel %vm4019, %v4016, %v4018
      %v4026 = vadd.f32 %v3998, %v4014
      %v4027 = vadd.f32 %v3999, %v4020
      %v4028 = vadd.f32 %v4000, %v4021
      %v4029 = vadd.f32 %v4001, %v4018
      %4031 = vset.pattern.permute.xlu0 0
      %4032 = vperm.xlu0 %4031, %v3386
      %v4033 = vpop.permute.xlu0 %4032
      %v4035 = vmul.f32 %v4033, %v3779
      %v4036 = vmul.f32 %v4033, %v3780
      %v4037 = vmul.f32 %v4033, %v3781
      %4041 = vrot.lane.b32.xlu0 %v4035, 47
      %v4042 = vpop.permute.xlu0 %4041
      %4043 = vrot.lane.b32.xlu0 %v4036, 47
      %v4044 = vpop.permute.xlu0 %4043
      %4045 = vrot.lane.b32.xlu0 %v4037, 47
      %v4046 = vpop.permute.xlu0 %4045
      %vm4047 = vcmask 384000
      %v4048 = vsel %vm4047, %v4042, %v4044
      %v4049 = vsel %vm4047, %v4044, %v4046
      %v4054 = vadd.f32 %v4026, %v4042
      %v4055 = vadd.f32 %v4027, %v4048
      %v4056 = vadd.f32 %v4028, %v4049
      %v4057 = vadd.f32 %v4029, %v4046
      %4059 = vset.pattern.permute.xlu0 0
      %4060 = vperm.xlu0 %4059, %v3387
      %v4061 = vpop.permute.xlu0 %4060
      %v4063 = vmul.f32 %v4061, %v3779
      %v4064 = vmul.f32 %v4061, %v3780
      %v4065 = vmul.f32 %v4061, %v3781
      %4069 = vrot.lane.b32.xlu0 %v4063, 46
      %v4070 = vpop.permute.xlu0 %4069
      %4071 = vrot.lane.b32.xlu0 %v4064, 46
      %v4072 = vpop.permute.xlu0 %4071
      %4073 = vrot.lane.b32.xlu0 %v4065, 46
      %v4074 = vpop.permute.xlu0 %4073
      %vm4075 = vcmask 375808
      %v4076 = vsel %vm4075, %v4070, %v4072
      %v4077 = vsel %vm4075, %v4072, %v4074
      %v4082 = vadd.f32 %v4054, %v4070
      %v4083 = vadd.f32 %v4055, %v4076
      %v4084 = vadd.f32 %v4056, %v4077
      %v4085 = vadd.f32 %v4057, %v4074
      %4087 = vset.pattern.permute.xlu0 0
      %4088 = vperm.xlu0 %4087, %v3388
      %v4089 = vpop.permute.xlu0 %4088
      %v4091 = vmul.f32 %v4089, %v3779
      %v4092 = vmul.f32 %v4089, %v3780
      %v4093 = vmul.f32 %v4089, %v3781
      %4097 = vrot.lane.b32.xlu0 %v4091, 45
      %v4098 = vpop.permute.xlu0 %4097
      %4099 = vrot.lane.b32.xlu0 %v4092, 45
      %v4100 = vpop.permute.xlu0 %4099
      %4101 = vrot.lane.b32.xlu0 %v4093, 45
      %v4102 = vpop.permute.xlu0 %4101
      %vm4103 = vcmask 367616
      %v4104 = vsel %vm4103, %v4098, %v4100
      %v4105 = vsel %vm4103, %v4100, %v4102
      %v4110 = vadd.f32 %v4082, %v4098
      %v4111 = vadd.f32 %v4083, %v4104
      %v4112 = vadd.f32 %v4084, %v4105
      %v4113 = vadd.f32 %v4085, %v4102
      %4115 = vset.pattern.permute.xlu0 0
      %4116 = vperm.xlu0 %4115, %v3389
      %v4117 = vpop.permute.xlu0 %4116
      %v4119 = vmul.f32 %v4117, %v3779
      %v4120 = vmul.f32 %v4117, %v3780
      %v4121 = vmul.f32 %v4117, %v3781
      %4125 = vrot.lane.b32.xlu0 %v4119, 44
      %v4126 = vpop.permute.xlu0 %4125
      %4127 = vrot.lane.b32.xlu0 %v4120, 44
      %v4128 = vpop.permute.xlu0 %4127
      %4129 = vrot.lane.b32.xlu0 %v4121, 44
      %v4130 = vpop.permute.xlu0 %4129
      %vm4131 = vcmask 359424
      %v4132 = vsel %vm4131, %v4126, %v4128
      %v4133 = vsel %vm4131, %v4128, %v4130
      %v4138 = vadd.f32 %v4110, %v4126
      %v4139 = vadd.f32 %v4111, %v4132
      %v4140 = vadd.f32 %v4112, %v4133
      %v4141 = vadd.f32 %v4113, %v4130
      %4143 = vset.pattern.permute.xlu0 0
      %4144 = vperm.xlu0 %4143, %v3390
      %v4145 = vpop.permute.xlu0 %4144
      %v4147 = vadd.f32 %v4138, %v4145
      %v4148 = vadd.f32 %v4139, %v4145
      %v4149 = vadd.f32 %v4140, %v4145
      %v4150 = vadd.f32 %v4141, %v4145
      %4155 = vrot.lane.b32.xlu0 %v4147, 42
      %v4156 = vpop.permute.xlu0 %4155
      %4157 = vrot.lane.b32.xlu0 %v4148, 42
      %v4158 = vpop.permute.xlu0 %4157
      %4159 = vrot.lane.b32.xlu0 %v4149, 42
      %v4160 = vpop.permute.xlu0 %4159
      %4161 = vrot.lane.b32.xlu0 %v4150, 42
      %v4162 = vpop.permute.xlu0 %4161
      %vm4163 = vcmask 343040
      %v4164 = vsel %vm4163, %v4156, %v4158
      %v4165 = vsel %vm4163, %v4158, %v4160
      %v4166 = vsel %vm4163, %v4160, %v4162
      %v4170 = vadd.f32 %v3362, %v4164
      %v4171 = vadd.f32 %v3363, %v4165
      %v4172 = vadd.f32 %v3364, %v4166
      %v4175 = vrot.slane %v4171, 4
      %vm4176 = vcmask 1043456
      %v4177 = vsel %vm4176, %v4170, %v4175
      %4179 = vst [vmem:[%s410] sm:$0xff] %v4177
      %vm4180 = vcmask 519168
      %4181 = vst.msk [vmem:[%s410 + $0x8] sm:$0xf] %vm4180, %v4172
      %p4182 = scmp.lt.s32.totalorder %s23, 1
      %s4183 = scalar_select %p4182, %s23, 1
      %s4184 = smul.addr %s4183, 3
      %s4185 = smul.addr %s4184, 4
      %s4186 = scalar_lea.vmem %s12, %s4185
      // Predicated region
      $region76: #{wdsr_forward.1} parent=67 // pred_check
        %p4187 = pneg %p298
      $region77: #{wdsr_forward.1} parent=67 // pred_check_branch
        %4189 = sbr.rel (%p4187) target = $region79
      $region78: #{wdsr_forward.1} parent=67 // pred_region
        _
      $region79: #{wdsr_forward.1} parent=67 // pred_fallthru
        _
    $region68: #{wdsr_forward.1} parent=5 // pred_fallthru
      _
    %p4190 = scmp.le.s32.totalorder 2, %s18
    // Predicated region
    $region80: #{wdsr_forward.1} parent=5 // pred_check
      %p4191 = pneg %p4190
    $region81: #{wdsr_forward.1} parent=5 // pred_check_branch
      %4193 = sbr.rel (%p4191) target = $region83
    $region82: #{wdsr_forward.1} parent=5 // pred_region
      %s4194 = ssub.s32 %s18, 2
      // Predicated region
      $region84: #{wdsr_forward.1} parent=82 // pred_check
        %p4195 = pneg %p304
      $region85: #{wdsr_forward.1} parent=82 // pred_check_branch
        %4197 = sbr.rel (%p4195) target = $region87
      $region86: #{wdsr_forward.1} parent=82 // pred_region
        %p4198 = scmp.lt.s32.totalorder %s24, 1
        %s4199 = scalar_select %p4198, %s24, 1
        %s4200 = smul.addr %s4199, 3
        %s4201 = smul.addr %s4200, 4
        %s4202 = scalar_lea.vmem %s12, %s4201
      $region87: #{wdsr_forward.1} parent=82 // pred_fallthru
        _
    $region83: #{wdsr_forward.1} parent=5 // pred_fallthru
      _
  $region6: #{wdsr_forward.1} parent=0 // loop_footer
    %s22 = sadd.s32 1, %s18
  $region7: #{wdsr_forward.1} parent=0 // loop_footer_branch
    %17 = sbr.rel target = $region3
  $region8: #{wdsr_forward.1} parent=0 // loop_exit
    _

</llo_original>
